<compile_context>
chip_gen: v6e
topology: v6e:2x2x1
jax: 0.10.0
libtpu: 0.0.40
codegen_flags: <defaults>
</compile_context>

<pallas_src>
import numpy as np
import jax
import jax.numpy as jnp
from jax.experimental import pallas as pl
from jax.experimental.pallas import tpu as pltpu

# ----------------------------------------------------------------------------
# Static configuration and derived sizes
# ----------------------------------------------------------------------------
OBS = (4, 16, 16)                       # (ch, h, w)
CONV_LAYERS = [(8, 4, 2, 0), (16, 3, 1, 0)]
FC_DIM = 32
ACTION_SIZE = 6

LANE = 128                              # TPU lane width; every feature dim padded to it
CIN, IMG_H, IMG_W = OBS
C1, K1, S1, P1 = CONV_LAYERS[0]
C2, K2, S2, P2 = CONV_LAYERS[1]
H1 = (IMG_H + 2 * P1 - K1) // S1 + 1    # 7
W1 = (IMG_W + 2 * P1 - K1) // S1 + 1    # 7
H2 = (H1 + 2 * P2 - K2) // S2 + 1       # 5
W2 = (W1 + 2 * P2 - K2) // S2 + 1       # 5
NPOS2 = H2 * W2                         # 25 conv2 output positions per image
NTAPS2 = K2 * K2                        # 9 conv2 kernel taps
BGROUP = 8                              # images per group (batch packed into 8 sublanes)
P1ROWS = 400                            # conv1 rows per group: 49*8 -> padded to mult of 16
ROWS2 = NPOS2 * BGROUP                  # 200 conv2 rows per group
FCIN_PAD = 512                          # fc contraction dim: 25*16 = 400 -> padded to 512


# ----------------------------------------------------------------------------
# Single fused Pallas kernel: conv1 -> conv2 -> fc -> merged actor/critic heads
# One grid step processes one group of (up to) 8 images; weights stay resident.
# ----------------------------------------------------------------------------
def _fused_actor_critic_kernel(patches_ref, w1_ref, b1_ref,
                               w2_ref, b2_ref,
                               wfc_ref, bfc_ref,
                               whead_ref, bhead_ref,
                               out_ref, h1_scr):
    """Row layouts (per group of 8 images):
         patches / h1 : row = pos1*8 + n   (pos1 = ho1*7 + wo1, n = image in group)
         h2 / fc rows : row = (ho2*5 + wo2)*8 + n
       conv2's im2col is realized by slicing h1 row-groups (aligned, no gather matmul);
       the PyTorch (C,H,W) flatten order is honored via the compact per-position wfc."""
    f32 = jnp.float32
    bf16 = jnp.bfloat16

    # ---- conv1 + bias + ReLU (1/255 normalization folded into w1) ----
    h1 = jnp.dot(patches_ref[...], w1_ref[...], preferred_element_type=f32)
    h1_scr[...] = jnp.maximum(h1 + b1_ref[...], 0.0)                  # (400, 128) f32

    # ---- conv2 + ReLU: 9 taps; per tap the "im2col" is 5 aligned 40-row slices of
    #      h1 concatenated, then one bf16 MXU dot; f32 register accumulation ----
    h2 = None
    for t in range(NTAPS2):
        ki, kj = divmod(t, K2)
        parts = [h1_scr[((ho + ki) * W1 + kj) * BGROUP:
                        ((ho + ki) * W1 + kj) * BGROUP + W2 * BGROUP, :]
                 for ho in range(H2)]
        lhs = jnp.concatenate(parts, axis=0).astype(bf16)              # (200, 128)
        prod = jnp.dot(lhs, w2_ref[t * LANE:(t + 1) * LANE, :],
                       preferred_element_type=f32)
        h2 = prod if h2 is None else h2 + prod
    h2 = jnp.maximum(h2 + b2_ref[...], 0.0)                            # (200, 128) f32

    # ---- fc + ReLU: lay the 25 positions' 16 live channels along lanes -> (8, 512),
    #      then ONE dot against the compact (512,128) fc weight ----
    pieces = [h2[p * BGROUP:(p + 1) * BGROUP, :C2] for p in range(NPOS2)]
    pieces.append(jnp.zeros((BGROUP, FCIN_PAD - NPOS2 * C2), f32))
    fc_in = jnp.concatenate(pieces, axis=1).astype(bf16)               # (8, 512)
    fc = jnp.dot(fc_in, wfc_ref[...], preferred_element_type=f32)
    fc = jnp.maximum(fc + bfc_ref[...], 0.0)                           # (8, 128)

    # ---- merged actor + critic heads (cols 0:6 actor logits, col 6 critic value) ----
    out_ref[...] = (jnp.dot(fc.astype(bf16), whead_ref[...],
                            preferred_element_type=f32) + bhead_ref[...])


@jax.jit
def cnn_actor_critic_forward(kparams, x_nchw):
    """Returns (act_value (batch, 6), value_state (batch, 1)) from one pallas_call."""
    batch = x_nchw.shape[0]
    groups = -(-batch // BGROUP)
    patches = _build_conv1_patches(x_nchw)                             # (groups*400, 128) bf16

    weight_spec = lambda rows: pl.BlockSpec((rows, LANE), lambda g: (0, 0))
    out = pl.pallas_call(
        _fused_actor_critic_kernel,
        out_shape=jax.ShapeDtypeStruct((groups * BGROUP, LANE), jnp.float32),
        grid=(groups,),
        in_specs=[
            pl.BlockSpec((P1ROWS, LANE), lambda g: (g, 0)),            # per-group patches
            weight_spec(LANE),            # w1   (resident across the grid)
            weight_spec(1),               # b1
            weight_spec(NTAPS2 * LANE),   # w2
            weight_spec(1),               # b2
            weight_spec(FCIN_PAD),        # wfc
            weight_spec(1),               # bfc
            weight_spec(LANE),            # whead
            weight_spec(1),               # bhead
        ],
        out_specs=pl.BlockSpec((BGROUP, LANE), lambda g: (g, 0)),
        scratch_shapes=[pltpu.VMEM((P1ROWS, LANE), jnp.float32)],
        compiler_params=pltpu.CompilerParams(dimension_semantics=("parallel",)),
    )(patches,
      kparams["w1"], kparams["b1"],
      kparams["w2"], kparams["b2"],
      kparams["wfc"], kparams["bfc"],
      kparams["whead"], kparams["bhead"])

    act_value = out[:batch, :ACTION_SIZE]
    value_state = out[:batch, ACTION_SIZE:ACTION_SIZE + 1]
    return act_value, value_state


# ----------------------------------------------------------------------------
# Host-side prep: conv1 im2col of the input and one-time parameter repacking
# ----------------------------------------------------------------------------
def _build_conv1_patches(x_nchw):
    """NCHW image -> lane-dense, position-major conv1 im2col matrix, bf16.

    Per group of 8 images, row pos1*8 + n holds image n's (ki,kj,ci)-ordered 4x4x4
    patch at conv1 output position pos1 (64 values, zero-padded to 128 lanes);
    rows 392..399 of each group block are zero."""
    # TODO(synk): optionally fold this im2col into the kernel (raw image is ~4 KiB);
    # kept in the XLA wrapper since the pass is dispatch/DMA-latency bound anyway.
    n = x_nchw.shape[0]
    groups = -(-n // BGROUP)
    x = jnp.transpose(x_nchw.astype(jnp.float32), (0, 2, 3, 1))        # NHWC
    taps = []
    for ki in range(K1):
        for kj in range(K1):
            taps.append(x[:, ki:ki + S1 * H1:S1, kj:kj + S1 * W1:S1, :])   # (n,7,7,4)
    p = jnp.stack(taps, axis=3).reshape(n, H1 * W1, K1 * K1 * CIN)     # (n,49,64)
    p = jnp.pad(p, ((0, groups * BGROUP - n), (0, 0), (0, LANE - K1 * K1 * CIN)))
    p = p.reshape(groups, BGROUP, H1 * W1, LANE).transpose(0, 2, 1, 3)  # (g,49,8,128)
    p = p.reshape(groups, H1 * W1 * BGROUP, LANE)
    p = jnp.pad(p, ((0, 0), (0, P1ROWS - H1 * W1 * BGROUP), (0, 0)))    # (g,400,128)
    return p.reshape(groups * P1ROWS, LANE).astype(jnp.bfloat16)


def prepare_kernel_params(params, *, normalize_input=True):
    """Pad / repack parameters once into lane-dense bf16 layouts (batch-agnostic)."""
    (w1t, b1t, _k1, _s1, p1), (w2t, b2t, _k2, _s2, p2) = params["convs"]
    # TODO(synk): generalize the im2col prep to conv padding > 0 (this config uses p=0).
    assert p1 == 0 and p2 == 0, "conv padding != 0 not implemented in the im2col prep"
    wfc, bfc = params["fc"]
    wa, ba = params["actor"]
    wc, bc = params["critic"]

    # conv1 weight as im2col matrix, with the 1/255 input normalization folded in.
    scale = (1.0 / 255.0) if normalize_input else 1.0
    w1m = np.zeros((LANE, LANE), np.float32)
    w1m[:K1 * K1 * CIN, :C1] = (
        np.transpose(np.asarray(w1t), (2, 3, 1, 0)).reshape(K1 * K1 * CIN, C1) * scale)
    b1p = np.zeros((1, LANE), np.float32)
    b1p[0, :C1] = np.asarray(b1t)

    # conv2: stacked per-tap weight blocks (rows 0:8 of each 128-row block live).
    w2m = np.zeros((NTAPS2 * LANE, LANE), np.float32)
    w2np = np.asarray(w2t)                                             # (C2, C1, 3, 3)
    for t in range(NTAPS2):
        ki, kj = divmod(t, K2)
        w2m[t * LANE:t * LANE + C1, :C2] = w2np[:, :, ki, kj].T
    b2p = np.zeros((1, LANE), np.float32)
    b2p[0, :C2] = np.asarray(b2t)

    # fc weight compact + re-grouped per conv2 spatial position so PyTorch's (C,H,W)
    # flatten order is honored:  wfcm[p*16 + c, j] = wfc[c*25 + p, j]
    wfcnp = np.asarray(wfc)                                            # (400, 32)
    wfcm = np.zeros((FCIN_PAD, LANE), np.float32)
    for p in range(NPOS2):
        for c in range(C2):
            wfcm[p * C2 + c, :FC_DIM] = wfcnp[c * NPOS2 + p, :]
    bfcp = np.zeros((1, LANE), np.float32)
    bfcp[0, :FC_DIM] = np.asarray(bfc)

    # merged actor/critic head: cols [0:6] actor logits, col 6 critic value.
    wh = np.zeros((LANE, LANE), np.float32)
    wh[:FC_DIM, :ACTION_SIZE] = np.asarray(wa)
    wh[:FC_DIM, ACTION_SIZE:ACTION_SIZE + 1] = np.asarray(wc)
    bh = np.zeros((1, LANE), np.float32)
    bh[0, :ACTION_SIZE] = np.asarray(ba)
    bh[0, ACTION_SIZE] = float(np.asarray(bc)[0])

    bf16 = jnp.bfloat16
    return {"w1": jnp.asarray(w1m, bf16), "b1": jnp.asarray(b1p),
            "w2": jnp.asarray(w2m, bf16), "b2": jnp.asarray(b2p),
            "wfc": jnp.asarray(wfcm, bf16), "bfc": jnp.asarray(bfcp),
            "whead": jnp.asarray(wh, bf16), "bhead": jnp.asarray(bh)}


# ----------------------------------------------------------------------------
# Deterministic parameter init (PyTorch-like uniform fan-in init)
# ----------------------------------------------------------------------------
def _uniform(key, shape, bound):
    return jax.random.uniform(key, shape, jnp.float32, minval=-bound, maxval=bound)


def init_params(key, obs_size, conv_layers, fc_dim, action_size):
    # TODO(synk): fc_num / actor_fc_num / critic_fc_num > 1 not implemented (config uses 1).
    params = {}
    ch, h, w = obs_size
    in_ch = ch
    keys = jax.random.split(key, 16)
    ki = 0
    params["convs"] = []
    for (n_ch, k, s, p) in conv_layers:
        fan_in = in_ch * k * k
        bound = float(fan_in) ** -0.5
        wgt = _uniform(keys[ki], (n_ch, in_ch, k, k), bound); ki += 1
        bias = _uniform(keys[ki], (n_ch,), bound); ki += 1
        params["convs"].append((wgt, bias, k, s, p))
        in_ch = n_ch
        w = (w + 2 * p - k) // s + 1
        h = (h + 2 * p - k) // s + 1
    flat = in_ch * w * h

    def linear(kw, kb, fin, fout):
        bound = float(fin) ** -0.5
        return _uniform(kw, (fin, fout), bound), _uniform(kb, (fout,), bound)

    params["fc"] = linear(keys[ki], keys[ki + 1], flat, fc_dim); ki += 2
    params["actor"] = linear(keys[ki], keys[ki + 1], fc_dim, action_size); ki += 2
    params["critic"] = linear(keys[ki], keys[ki + 1], fc_dim, 1); ki += 2
    return params


# ----------------------------------------------------------------------------
# Pure-JAX reference of the PyTorch module (for a numerical cross-check)
# ----------------------------------------------------------------------------
def reference_forward(params, x_nchw, normalize_input=True):
    x = x_nchw.astype(jnp.float32)
    if normalize_input:
        x = x / 255.0
    for (wgt, bias, _k, s, p) in params["convs"]:
        x = jax.lax.conv_general_dilated(
            x, wgt, window_strides=(s, s), padding=[(p, p), (p, p)],
            dimension_numbers=("NCHW", "OIHW", "NCHW"))
        x = jnp.maximum(x + bias.reshape(1, -1, 1, 1), 0.0)
    x = x.reshape(x.shape[0], -1)
    wfc, bfc = params["fc"]
    x = jnp.maximum(x @ wfc + bfc, 0.0)
    wa, ba = params["actor"]
    wc, bc = params["critic"]
    return x @ wa + ba, x @ wc + bc


if __name__ == "__main__":
    key = jax.random.PRNGKey(0)
    k_param, k_data = jax.random.split(key)

    batch = 2
    params = init_params(k_param, OBS, CONV_LAYERS, FC_DIM, ACTION_SIZE)
    kparams = prepare_kernel_params(params, normalize_input=True)

    # pixel-like inputs in [0, 255), NCHW as in PyTorch
    x = jax.random.uniform(k_data, (batch,) + OBS, jnp.float32, 0.0, 255.0)

    act_value, value_state = cnn_actor_critic_forward(kparams, x)
    jax.block_until_ready(act_value)
    jax.block_until_ready(value_state)

    assert act_value.shape == (batch, ACTION_SIZE)
    assert value_state.shape == (batch, 1)

    # cross-check against the pure-f32 JAX reference; tolerance reflects the bf16 MXU
    # operands (f32 accumulation) -- large enough for rounding, small enough to catch
    # any layout/indexing bug (those produce O(0.1-1) errors).
    ref_act, ref_val = reference_forward(params, x, normalize_input=True)
    np.testing.assert_allclose(np.asarray(act_value), np.asarray(ref_act),
                               rtol=5e-2, atol=5e-2)
    np.testing.assert_allclose(np.asarray(value_state), np.asarray(ref_val),
                               rtol=5e-2, atol=5e-2)

    print("KERNEL_OK")
</pallas_src>

<mosaic_0001>
module attributes {stable_mosaic.version = 11 : i64} {
  func.func @_fused_actor_critic_kernel(%arg0: i32, %arg1: memref<400x128xbf16, #tpu.memory_space<vmem>>, %arg2: memref<128x128xbf16, #tpu.memory_space<vmem>>, %arg3: memref<1x128xf32, #tpu.memory_space<vmem>>, %arg4: memref<1152x128xbf16, #tpu.memory_space<vmem>>, %arg5: memref<1x128xf32, #tpu.memory_space<vmem>>, %arg6: memref<512x128xbf16, #tpu.memory_space<vmem>>, %arg7: memref<1x128xf32, #tpu.memory_space<vmem>>, %arg8: memref<128x128xbf16, #tpu.memory_space<vmem>>, %arg9: memref<1x128xf32, #tpu.memory_space<vmem>>, %arg10: memref<8x128xf32, #tpu.memory_space<vmem>>, %arg11: memref<400x128xf32, #tpu.memory_space<vmem>>) attributes {dimension_semantics = [#tpu.dimension_semantics<parallel>], iteration_bounds = array<i64: 1>, scalar_prefetch = 0 : i64, scratch_operands = 1 : i64, tpu.core_type = #tpu.core_type<tc>, window_params = [{transform_indices = @transform_0, window_bounds = array<i64: 400, 128>}, {pipeline_mode = #tpu.pipeline_mode<synchronous>, transform_indices = @transform_1, window_bounds = array<i64: 128, 128>}, {pipeline_mode = #tpu.pipeline_mode<synchronous>, transform_indices = @transform_2, window_bounds = array<i64: 1, 128>}, {pipeline_mode = #tpu.pipeline_mode<synchronous>, transform_indices = @transform_3, window_bounds = array<i64: 1152, 128>}, {pipeline_mode = #tpu.pipeline_mode<synchronous>, transform_indices = @transform_4, window_bounds = array<i64: 1, 128>}, {pipeline_mode = #tpu.pipeline_mode<synchronous>, transform_indices = @transform_5, window_bounds = array<i64: 512, 128>}, {pipeline_mode = #tpu.pipeline_mode<synchronous>, transform_indices = @transform_6, window_bounds = array<i64: 1, 128>}, {pipeline_mode = #tpu.pipeline_mode<synchronous>, transform_indices = @transform_7, window_bounds = array<i64: 128, 128>}, {pipeline_mode = #tpu.pipeline_mode<synchronous>, transform_indices = @transform_8, window_bounds = array<i64: 1, 128>}, {transform_indices = @transform_9, window_bounds = array<i64: 8, 128>}]} {
    %c0 = arith.constant 0 : index
    %c0_0 = arith.constant 0 : index
    %0 = vector.load %arg1[%c0, %c0_0] : memref<400x128xbf16, #tpu.memory_space<vmem>>, vector<400x128xbf16>
    %c0_1 = arith.constant 0 : index
    %c0_2 = arith.constant 0 : index
    %1 = vector.load %arg2[%c0_1, %c0_2] : memref<128x128xbf16, #tpu.memory_space<vmem>>, vector<128x128xbf16>
    %cst = arith.constant dense<0.000000e+00> : vector<400x128xf32>
    %2 = tpu.matmul %0, %1, %cst {dimension_numbers = #tpu.dot_dimension_numbers<[1], [0], [0], [1], [0, 0, 1, 1], [], []>} : vector<400x128xbf16>, vector<128x128xbf16>, vector<400x128xf32> -> vector<400x128xf32>
    %c0_3 = arith.constant 0 : index
    %c0_4 = arith.constant 0 : index
    %3 = vector.load %arg3[%c0_3, %c0_4] : memref<1x128xf32, #tpu.memory_space<vmem>>, vector<1x128xf32>
    %4 = vector.broadcast %3 : vector<1x128xf32> to vector<400x128xf32>
    %5 = arith.addf %2, %4 : vector<400x128xf32>
    %cst_5 = arith.constant 0.000000e+00 : f32
    %6 = vector.broadcast %cst_5 : f32 to vector<400x128xf32>
    %7 = arith.maximumf %5, %6 : vector<400x128xf32>
    %c0_6 = arith.constant 0 : index
    %c0_7 = arith.constant 0 : index
    %8 = vector.load %arg11[%c0_6, %c0_7] : memref<400x128xf32, #tpu.memory_space<vmem>>, vector<400x128xf32>
    tpu.vector_store %arg11[%c0_6, %c0_7], %7 {strides = array<i32>} : memref<400x128xf32, #tpu.memory_space<vmem>>, vector<400x128xf32>,
    %c0_8 = arith.constant 0 : index
    %c0_9 = arith.constant 0 : index
    %9 = vector.load %arg11[%c0_8, %c0_9] : memref<400x128xf32, #tpu.memory_space<vmem>>, vector<40x128xf32>
    %c56 = arith.constant 56 : index
    %c0_10 = arith.constant 0 : index
    %10 = vector.load %arg11[%c56, %c0_10] : memref<400x128xf32, #tpu.memory_space<vmem>>, vector<40x128xf32>
    %c112 = arith.constant 112 : index
    %c0_11 = arith.constant 0 : index
    %11 = vector.load %arg11[%c112, %c0_11] : memref<400x128xf32, #tpu.memory_space<vmem>>, vector<40x128xf32>
    %c168 = arith.constant 168 : index
    %c0_12 = arith.constant 0 : index
    %12 = vector.load %arg11[%c168, %c0_12] : memref<400x128xf32, #tpu.memory_space<vmem>>, vector<40x128xf32>
    %c224 = arith.constant 224 : index
    %c0_13 = arith.constant 0 : index
    %13 = vector.load %arg11[%c224, %c0_13] : memref<400x128xf32, #tpu.memory_space<vmem>>, vector<40x128xf32>
    %14 = tpu.concatenate %9, %10, %11, %12, %13 in 0 : vector<40x128xf32>, vector<40x128xf32>, vector<40x128xf32>, vector<40x128xf32>, vector<40x128xf32> -> vector<200x128xf32>
    %15 = arith.truncf %14 : vector<200x128xf32> to vector<200x128xbf16>
    %c0_14 = arith.constant 0 : index
    %c0_15 = arith.constant 0 : index
    %16 = vector.load %arg4[%c0_14, %c0_15] : memref<1152x128xbf16, #tpu.memory_space<vmem>>, vector<128x128xbf16>
    %cst_16 = arith.constant dense<0.000000e+00> : vector<200x128xf32>
    %17 = tpu.matmul %15, %16, %cst_16 {dimension_numbers = #tpu.dot_dimension_numbers<[1], [0], [0], [1], [0, 0, 1, 1], [], []>} : vector<200x128xbf16>, vector<128x128xbf16>, vector<200x128xf32> -> vector<200x128xf32>
    %c8 = arith.constant 8 : index
    %c0_17 = arith.constant 0 : index
    %18 = vector.load %arg11[%c8, %c0_17] : memref<400x128xf32, #tpu.memory_space<vmem>>, vector<40x128xf32>
    %c64 = arith.constant 64 : index
    %c0_18 = arith.constant 0 : index
    %19 = vector.load %arg11[%c64, %c0_18] : memref<400x128xf32, #tpu.memory_space<vmem>>, vector<40x128xf32>
    %c120 = arith.constant 120 : index
    %c0_19 = arith.constant 0 : index
    %20 = vector.load %arg11[%c120, %c0_19] : memref<400x128xf32, #tpu.memory_space<vmem>>, vector<40x128xf32>
    %c176 = arith.constant 176 : index
    %c0_20 = arith.constant 0 : index
    %21 = vector.load %arg11[%c176, %c0_20] : memref<400x128xf32, #tpu.memory_space<vmem>>, vector<40x128xf32>
    %c232 = arith.constant 232 : index
    %c0_21 = arith.constant 0 : index
    %22 = vector.load %arg11[%c232, %c0_21] : memref<400x128xf32, #tpu.memory_space<vmem>>, vector<40x128xf32>
    %23 = tpu.concatenate %18, %19, %20, %21, %22 in 0 : vector<40x128xf32>, vector<40x128xf32>, vector<40x128xf32>, vector<40x128xf32>, vector<40x128xf32> -> vector<200x128xf32>
    %24 = arith.truncf %23 : vector<200x128xf32> to vector<200x128xbf16>
    %c128 = arith.constant 128 : index
    %c0_22 = arith.constant 0 : index
    %25 = vector.load %arg4[%c128, %c0_22] : memref<1152x128xbf16, #tpu.memory_space<vmem>>, vector<128x128xbf16>
    %cst_23 = arith.constant dense<0.000000e+00> : vector<200x128xf32>
    %26 = tpu.matmul %24, %25, %cst_23 {dimension_numbers = #tpu.dot_dimension_numbers<[1], [0], [0], [1], [0, 0, 1, 1], [], []>} : vector<200x128xbf16>, vector<128x128xbf16>, vector<200x128xf32> -> vector<200x128xf32>
    %27 = arith.addf %17, %26 : vector<200x128xf32>
    %c16 = arith.constant 16 : index
    %c0_24 = arith.constant 0 : index
    %28 = vector.load %arg11[%c16, %c0_24] : memref<400x128xf32, #tpu.memory_space<vmem>>, vector<40x128xf32>
    %c72 = arith.constant 72 : index
    %c0_25 = arith.constant 0 : index
    %29 = vector.load %arg11[%c72, %c0_25] : memref<400x128xf32, #tpu.memory_space<vmem>>, vector<40x128xf32>
    %c128_26 = arith.constant 128 : index
    %c0_27 = arith.constant 0 : index
    %30 = vector.load %arg11[%c128_26, %c0_27] : memref<400x128xf32, #tpu.memory_space<vmem>>, vector<40x128xf32>
    %c184 = arith.constant 184 : index
    %c0_28 = arith.constant 0 : index
    %31 = vector.load %arg11[%c184, %c0_28] : memref<400x128xf32, #tpu.memory_space<vmem>>, vector<40x128xf32>
    %c240 = arith.constant 240 : index
    %c0_29 = arith.constant 0 : index
    %32 = vector.load %arg11[%c240, %c0_29] : memref<400x128xf32, #tpu.memory_space<vmem>>, vector<40x128xf32>
    %33 = tpu.concatenate %28, %29, %30, %31, %32 in 0 : vector<40x128xf32>, vector<40x128xf32>, vector<40x128xf32>, vector<40x128xf32>, vector<40x128xf32> -> vector<200x128xf32>
    %34 = arith.truncf %33 : vector<200x128xf32> to vector<200x128xbf16>
    %c256 = arith.constant 256 : index
    %c0_30 = arith.constant 0 : index
    %35 = vector.load %arg4[%c256, %c0_30] : memref<1152x128xbf16, #tpu.memory_space<vmem>>, vector<128x128xbf16>
    %cst_31 = arith.constant dense<0.000000e+00> : vector<200x128xf32>
    %36 = tpu.matmul %34, %35, %cst_31 {dimension_numbers = #tpu.dot_dimension_numbers<[1], [0], [0], [1], [0, 0, 1, 1], [], []>} : vector<200x128xbf16>, vector<128x128xbf16>, vector<200x128xf32> -> vector<200x128xf32>
    %37 = arith.addf %27, %36 : vector<200x128xf32>
    %c56_32 = arith.constant 56 : index
    %c0_33 = arith.constant 0 : index
    %38 = vector.load %arg11[%c56_32, %c0_33] : memref<400x128xf32, #tpu.memory_space<vmem>>, vector<40x128xf32>
    %c112_34 = arith.constant 112 : index
    %c0_35 = arith.constant 0 : index
    %39 = vector.load %arg11[%c112_34, %c0_35] : memref<400x128xf32, #tpu.memory_space<vmem>>, vector<40x128xf32>
    %c168_36 = arith.constant 168 : index
    %c0_37 = arith.constant 0 : index
    %40 = vector.load %arg11[%c168_36, %c0_37] : memref<400x128xf32, #tpu.memory_space<vmem>>, vector<40x128xf32>
    %c224_38 = arith.constant 224 : index
    %c0_39 = arith.constant 0 : index
    %41 = vector.load %arg11[%c224_38, %c0_39] : memref<400x128xf32, #tpu.memory_space<vmem>>, vector<40x128xf32>
    %c280 = arith.constant 280 : index
    %c0_40 = arith.constant 0 : index
    %42 = vector.load %arg11[%c280, %c0_40] : memref<400x128xf32, #tpu.memory_space<vmem>>, vector<40x128xf32>
    %43 = tpu.concatenate %38, %39, %40, %41, %42 in 0 : vector<40x128xf32>, vector<40x128xf32>, vector<40x128xf32>, vector<40x128xf32>, vector<40x128xf32> -> vector<200x128xf32>
    %44 = arith.truncf %43 : vector<200x128xf32> to vector<200x128xbf16>
    %c384 = arith.constant 384 : index
    %c0_41 = arith.constant 0 : index
    %45 = vector.load %arg4[%c384, %c0_41] : memref<1152x128xbf16, #tpu.memory_space<vmem>>, vector<128x128xbf16>
    %cst_42 = arith.constant dense<0.000000e+00> : vector<200x128xf32>
    %46 = tpu.matmul %44, %45, %cst_42 {dimension_numbers = #tpu.dot_dimension_numbers<[1], [0], [0], [1], [0, 0, 1, 1], [], []>} : vector<200x128xbf16>, vector<128x128xbf16>, vector<200x128xf32> -> vector<200x128xf32>
    %47 = arith.addf %37, %46 : vector<200x128xf32>
    %c64_43 = arith.constant 64 : index
    %c0_44 = arith.constant 0 : index
    %48 = vector.load %arg11[%c64_43, %c0_44] : memref<400x128xf32, #tpu.memory_space<vmem>>, vector<40x128xf32>
    %c120_45 = arith.constant 120 : index
    %c0_46 = arith.constant 0 : index
    %49 = vector.load %arg11[%c120_45, %c0_46] : memref<400x128xf32, #tpu.memory_space<vmem>>, vector<40x128xf32>
    %c176_47 = arith.constant 176 : index
    %c0_48 = arith.constant 0 : index
    %50 = vector.load %arg11[%c176_47, %c0_48] : memref<400x128xf32, #tpu.memory_space<vmem>>, vector<40x128xf32>
    %c232_49 = arith.constant 232 : index
    %c0_50 = arith.constant 0 : index
    %51 = vector.load %arg11[%c232_49, %c0_50] : memref<400x128xf32, #tpu.memory_space<vmem>>, vector<40x128xf32>
    %c288 = arith.constant 288 : index
    %c0_51 = arith.constant 0 : index
    %52 = vector.load %arg11[%c288, %c0_51] : memref<400x128xf32, #tpu.memory_space<vmem>>, vector<40x128xf32>
    %53 = tpu.concatenate %48, %49, %50, %51, %52 in 0 : vector<40x128xf32>, vector<40x128xf32>, vector<40x128xf32>, vector<40x128xf32>, vector<40x128xf32> -> vector<200x128xf32>
    %54 = arith.truncf %53 : vector<200x128xf32> to vector<200x128xbf16>
    %c512 = arith.constant 512 : index
    %c0_52 = arith.constant 0 : index
    %55 = vector.load %arg4[%c512, %c0_52] : memref<1152x128xbf16, #tpu.memory_space<vmem>>, vector<128x128xbf16>
    %cst_53 = arith.constant dense<0.000000e+00> : vector<200x128xf32>
    %56 = tpu.matmul %54, %55, %cst_53 {dimension_numbers = #tpu.dot_dimension_numbers<[1], [0], [0], [1], [0, 0, 1, 1], [], []>} : vector<200x128xbf16>, vector<128x128xbf16>, vector<200x128xf32> -> vector<200x128xf32>
    %57 = arith.addf %47, %56 : vector<200x128xf32>
    %c72_54 = arith.constant 72 : index
    %c0_55 = arith.constant 0 : index
    %58 = vector.load %arg11[%c72_54, %c0_55] : memref<400x128xf32, #tpu.memory_space<vmem>>, vector<40x128xf32>
    %c128_56 = arith.constant 128 : index
    %c0_57 = arith.constant 0 : index
    %59 = vector.load %arg11[%c128_56, %c0_57] : memref<400x128xf32, #tpu.memory_space<vmem>>, vector<40x128xf32>
    %c184_58 = arith.constant 184 : index
    %c0_59 = arith.constant 0 : index
    %60 = vector.load %arg11[%c184_58, %c0_59] : memref<400x128xf32, #tpu.memory_space<vmem>>, vector<40x128xf32>
    %c240_60 = arith.constant 240 : index
    %c0_61 = arith.constant 0 : index
    %61 = vector.load %arg11[%c240_60, %c0_61] : memref<400x128xf32, #tpu.memory_space<vmem>>, vector<40x128xf32>
    %c296 = arith.constant 296 : index
    %c0_62 = arith.constant 0 : index
    %62 = vector.load %arg11[%c296, %c0_62] : memref<400x128xf32, #tpu.memory_space<vmem>>, vector<40x128xf32>
    %63 = tpu.concatenate %58, %59, %60, %61, %62 in 0 : vector<40x128xf32>, vector<40x128xf32>, vector<40x128xf32>, vector<40x128xf32>, vector<40x128xf32> -> vector<200x128xf32>
    %64 = arith.truncf %63 : vector<200x128xf32> to vector<200x128xbf16>
    %c640 = arith.constant 640 : index
    %c0_63 = arith.constant 0 : index
    %65 = vector.load %arg4[%c640, %c0_63] : memref<1152x128xbf16, #tpu.memory_space<vmem>>, vector<128x128xbf16>
    %cst_64 = arith.constant dense<0.000000e+00> : vector<200x128xf32>
    %66 = tpu.matmul %64, %65, %cst_64 {dimension_numbers = #tpu.dot_dimension_numbers<[1], [0], [0], [1], [0, 0, 1, 1], [], []>} : vector<200x128xbf16>, vector<128x128xbf16>, vector<200x128xf32> -> vector<200x128xf32>
    %67 = arith.addf %57, %66 : vector<200x128xf32>
    %c112_65 = arith.constant 112 : index
    %c0_66 = arith.constant 0 : index
    %68 = vector.load %arg11[%c112_65, %c0_66] : memref<400x128xf32, #tpu.memory_space<vmem>>, vector<40x128xf32>
    %c168_67 = arith.constant 168 : index
    %c0_68 = arith.constant 0 : index
    %69 = vector.load %arg11[%c168_67, %c0_68] : memref<400x128xf32, #tpu.memory_space<vmem>>, vector<40x128xf32>
    %c224_69 = arith.constant 224 : index
    %c0_70 = arith.constant 0 : index
    %70 = vector.load %arg11[%c224_69, %c0_70] : memref<400x128xf32, #tpu.memory_space<vmem>>, vector<40x128xf32>
    %c280_71 = arith.constant 280 : index
    %c0_72 = arith.constant 0 : index
    %71 = vector.load %arg11[%c280_71, %c0_72] : memref<400x128xf32, #tpu.memory_space<vmem>>, vector<40x128xf32>
    %c336 = arith.constant 336 : index
    %c0_73 = arith.constant 0 : index
    %72 = vector.load %arg11[%c336, %c0_73] : memref<400x128xf32, #tpu.memory_space<vmem>>, vector<40x128xf32>
    %73 = tpu.concatenate %68, %69, %70, %71, %72 in 0 : vector<40x128xf32>, vector<40x128xf32>, vector<40x128xf32>, vector<40x128xf32>, vector<40x128xf32> -> vector<200x128xf32>
    %74 = arith.truncf %73 : vector<200x128xf32> to vector<200x128xbf16>
    %c768 = arith.constant 768 : index
    %c0_74 = arith.constant 0 : index
    %75 = vector.load %arg4[%c768, %c0_74] : memref<1152x128xbf16, #tpu.memory_space<vmem>>, vector<128x128xbf16>
    %cst_75 = arith.constant dense<0.000000e+00> : vector<200x128xf32>
    %76 = tpu.matmul %74, %75, %cst_75 {dimension_numbers = #tpu.dot_dimension_numbers<[1], [0], [0], [1], [0, 0, 1, 1], [], []>} : vector<200x128xbf16>, vector<128x128xbf16>, vector<200x128xf32> -> vector<200x128xf32>
    %77 = arith.addf %67, %76 : vector<200x128xf32>
    %c120_76 = arith.constant 120 : index
    %c0_77 = arith.constant 0 : index
    %78 = vector.load %arg11[%c120_76, %c0_77] : memref<400x128xf32, #tpu.memory_space<vmem>>, vector<40x128xf32>
    %c176_78 = arith.constant 176 : index
    %c0_79 = arith.constant 0 : index
    %79 = vector.load %arg11[%c176_78, %c0_79] : memref<400x128xf32, #tpu.memory_space<vmem>>, vector<40x128xf32>
    %c232_80 = arith.constant 232 : index
    %c0_81 = arith.constant 0 : index
    %80 = vector.load %arg11[%c232_80, %c0_81] : memref<400x128xf32, #tpu.memory_space<vmem>>, vector<40x128xf32>
    %c288_82 = arith.constant 288 : index
    %c0_83 = arith.constant 0 : index
    %81 = vector.load %arg11[%c288_82, %c0_83] : memref<400x128xf32, #tpu.memory_space<vmem>>, vector<40x128xf32>
    %c344 = arith.constant 344 : index
    %c0_84 = arith.constant 0 : index
    %82 = vector.load %arg11[%c344, %c0_84] : memref<400x128xf32, #tpu.memory_space<vmem>>, vector<40x128xf32>
    %83 = tpu.concatenate %78, %79, %80, %81, %82 in 0 : vector<40x128xf32>, vector<40x128xf32>, vector<40x128xf32>, vector<40x128xf32>, vector<40x128xf32> -> vector<200x128xf32>
    %84 = arith.truncf %83 : vector<200x128xf32> to vector<200x128xbf16>
    %c896 = arith.constant 896 : index
    %c0_85 = arith.constant 0 : index
    %85 = vector.load %arg4[%c896, %c0_85] : memref<1152x128xbf16, #tpu.memory_space<vmem>>, vector<128x128xbf16>
    %cst_86 = arith.constant dense<0.000000e+00> : vector<200x128xf32>
    %86 = tpu.matmul %84, %85, %cst_86 {dimension_numbers = #tpu.dot_dimension_numbers<[1], [0], [0], [1], [0, 0, 1, 1], [], []>} : vector<200x128xbf16>, vector<128x128xbf16>, vector<200x128xf32> -> vector<200x128xf32>
    %87 = arith.addf %77, %86 : vector<200x128xf32>
    %c128_87 = arith.constant 128 : index
    %c0_88 = arith.constant 0 : index
    %88 = vector.load %arg11[%c128_87, %c0_88] : memref<400x128xf32, #tpu.memory_space<vmem>>, vector<40x128xf32>
    %c184_89 = arith.constant 184 : index
    %c0_90 = arith.constant 0 : index
    %89 = vector.load %arg11[%c184_89, %c0_90] : memref<400x128xf32, #tpu.memory_space<vmem>>, vector<40x128xf32>
    %c240_91 = arith.constant 240 : index
    %c0_92 = arith.constant 0 : index
    %90 = vector.load %arg11[%c240_91, %c0_92] : memref<400x128xf32, #tpu.memory_space<vmem>>, vector<40x128xf32>
    %c296_93 = arith.constant 296 : index
    %c0_94 = arith.constant 0 : index
    %91 = vector.load %arg11[%c296_93, %c0_94] : memref<400x128xf32, #tpu.memory_space<vmem>>, vector<40x128xf32>
    %c352 = arith.constant 352 : index
    %c0_95 = arith.constant 0 : index
    %92 = vector.load %arg11[%c352, %c0_95] : memref<400x128xf32, #tpu.memory_space<vmem>>, vector<40x128xf32>
    %93 = tpu.concatenate %88, %89, %90, %91, %92 in 0 : vector<40x128xf32>, vector<40x128xf32>, vector<40x128xf32>, vector<40x128xf32>, vector<40x128xf32> -> vector<200x128xf32>
    %94 = arith.truncf %93 : vector<200x128xf32> to vector<200x128xbf16>
    %c1024 = arith.constant 1024 : index
    %c0_96 = arith.constant 0 : index
    %95 = vector.load %arg4[%c1024, %c0_96] : memref<1152x128xbf16, #tpu.memory_space<vmem>>, vector<128x128xbf16>
    %cst_97 = arith.constant dense<0.000000e+00> : vector<200x128xf32>
    %96 = tpu.matmul %94, %95, %cst_97 {dimension_numbers = #tpu.dot_dimension_numbers<[1], [0], [0], [1], [0, 0, 1, 1], [], []>} : vector<200x128xbf16>, vector<128x128xbf16>, vector<200x128xf32> -> vector<200x128xf32>
    %97 = arith.addf %87, %96 : vector<200x128xf32>
    %c0_98 = arith.constant 0 : index
    %c0_99 = arith.constant 0 : index
    %98 = vector.load %arg5[%c0_98, %c0_99] : memref<1x128xf32, #tpu.memory_space<vmem>>, vector<1x128xf32>
    %99 = vector.broadcast %98 : vector<1x128xf32> to vector<200x128xf32>
    %100 = arith.addf %97, %99 : vector<200x128xf32>
    %cst_100 = arith.constant 0.000000e+00 : f32
    %101 = vector.broadcast %cst_100 : f32 to vector<200x128xf32>
    %102 = arith.maximumf %100, %101 : vector<200x128xf32>
    %103 = vector.extract_strided_slice %102 {offsets = [0, 0], sizes = [8, 16], strides = [1, 1]} : vector<200x128xf32> to vector<8x16xf32>
    %104 = vector.extract_strided_slice %102 {offsets = [8, 0], sizes = [8, 16], strides = [1, 1]} : vector<200x128xf32> to vector<8x16xf32>
    %105 = vector.extract_strided_slice %102 {offsets = [16, 0], sizes = [8, 16], strides = [1, 1]} : vector<200x128xf32> to vector<8x16xf32>
    %106 = vector.extract_strided_slice %102 {offsets = [24, 0], sizes = [8, 16], strides = [1, 1]} : vector<200x128xf32> to vector<8x16xf32>
    %107 = vector.extract_strided_slice %102 {offsets = [32, 0], sizes = [8, 16], strides = [1, 1]} : vector<200x128xf32> to vector<8x16xf32>
    %108 = vector.extract_strided_slice %102 {offsets = [40, 0], sizes = [8, 16], strides = [1, 1]} : vector<200x128xf32> to vector<8x16xf32>
    %109 = vector.extract_strided_slice %102 {offsets = [48, 0], sizes = [8, 16], strides = [1, 1]} : vector<200x128xf32> to vector<8x16xf32>
    %110 = vector.extract_strided_slice %102 {offsets = [56, 0], sizes = [8, 16], strides = [1, 1]} : vector<200x128xf32> to vector<8x16xf32>
    %111 = vector.extract_strided_slice %102 {offsets = [64, 0], sizes = [8, 16], strides = [1, 1]} : vector<200x128xf32> to vector<8x16xf32>
    %112 = vector.extract_strided_slice %102 {offsets = [72, 0], sizes = [8, 16], strides = [1, 1]} : vector<200x128xf32> to vector<8x16xf32>
    %113 = vector.extract_strided_slice %102 {offsets = [80, 0], sizes = [8, 16], strides = [1, 1]} : vector<200x128xf32> to vector<8x16xf32>
    %114 = vector.extract_strided_slice %102 {offsets = [88, 0], sizes = [8, 16], strides = [1, 1]} : vector<200x128xf32> to vector<8x16xf32>
    %115 = vector.extract_strided_slice %102 {offsets = [96, 0], sizes = [8, 16], strides = [1, 1]} : vector<200x128xf32> to vector<8x16xf32>
    %116 = vector.extract_strided_slice %102 {offsets = [104, 0], sizes = [8, 16], strides = [1, 1]} : vector<200x128xf32> to vector<8x16xf32>
    %117 = vector.extract_strided_slice %102 {offsets = [112, 0], sizes = [8, 16], strides = [1, 1]} : vector<200x128xf32> to vector<8x16xf32>
    %118 = vector.extract_strided_slice %102 {offsets = [120, 0], sizes = [8, 16], strides = [1, 1]} : vector<200x128xf32> to vector<8x16xf32>
    %119 = vector.extract_strided_slice %102 {offsets = [128, 0], sizes = [8, 16], strides = [1, 1]} : vector<200x128xf32> to vector<8x16xf32>
    %120 = vector.extract_strided_slice %102 {offsets = [136, 0], sizes = [8, 16], strides = [1, 1]} : vector<200x128xf32> to vector<8x16xf32>
    %121 = vector.extract_strided_slice %102 {offsets = [144, 0], sizes = [8, 16], strides = [1, 1]} : vector<200x128xf32> to vector<8x16xf32>
    %122 = vector.extract_strided_slice %102 {offsets = [152, 0], sizes = [8, 16], strides = [1, 1]} : vector<200x128xf32> to vector<8x16xf32>
    %123 = vector.extract_strided_slice %102 {offsets = [160, 0], sizes = [8, 16], strides = [1, 1]} : vector<200x128xf32> to vector<8x16xf32>
    %124 = vector.extract_strided_slice %102 {offsets = [168, 0], sizes = [8, 16], strides = [1, 1]} : vector<200x128xf32> to vector<8x16xf32>
    %125 = vector.extract_strided_slice %102 {offsets = [176, 0], sizes = [8, 16], strides = [1, 1]} : vector<200x128xf32> to vector<8x16xf32>
    %126 = vector.extract_strided_slice %102 {offsets = [184, 0], sizes = [8, 16], strides = [1, 1]} : vector<200x128xf32> to vector<8x16xf32>
    %127 = vector.extract_strided_slice %102 {offsets = [192, 0], sizes = [8, 16], strides = [1, 1]} : vector<200x128xf32> to vector<8x16xf32>
    %cst_101 = arith.constant 0.000000e+00 : f32
    %128 = vector.broadcast %cst_101 : f32 to vector<8x112xf32>
    %129 = tpu.concatenate %103, %104, %105, %106, %107, %108, %109, %110, %111, %112, %113, %114, %115, %116, %117, %118 in 1 : vector<8x16xf32>, vector<8x16xf32>, vector<8x16xf32>, vector<8x16xf32>, vector<8x16xf32>, vector<8x16xf32>, vector<8x16xf32>, vector<8x16xf32>, vector<8x16xf32>, vector<8x16xf32>, vector<8x16xf32>, vector<8x16xf32>, vector<8x16xf32>, vector<8x16xf32>, vector<8x16xf32>, vector<8x16xf32> -> vector<8x256xf32>
    %130 = tpu.concatenate %119, %120, %121, %122, %123, %124, %125, %126, %127, %128 in 1 : vector<8x16xf32>, vector<8x16xf32>, vector<8x16xf32>, vector<8x16xf32>, vector<8x16xf32>, vector<8x16xf32>, vector<8x16xf32>, vector<8x16xf32>, vector<8x16xf32>, vector<8x112xf32> -> vector<8x256xf32>
    %131 = tpu.concatenate %129, %130 in 1 : vector<8x256xf32>, vector<8x256xf32> -> vector<8x512xf32>
    %132 = arith.truncf %131 : vector<8x512xf32> to vector<8x512xbf16>
    %c0_102 = arith.constant 0 : index
    %c0_103 = arith.constant 0 : index
    %133 = vector.load %arg6[%c0_102, %c0_103] : memref<512x128xbf16, #tpu.memory_space<vmem>>, vector<512x128xbf16>
    %cst_104 = arith.constant dense<0.000000e+00> : vector<8x128xf32>
    %134 = tpu.matmul %132, %133, %cst_104 {dimension_numbers = #tpu.dot_dimension_numbers<[1], [0], [0], [1], [0, 0, 1, 1], [], []>} : vector<8x512xbf16>, vector<512x128xbf16>, vector<8x128xf32> -> vector<8x128xf32>
    %c0_105 = arith.constant 0 : index
    %c0_106 = arith.constant 0 : index
    %135 = vector.load %arg7[%c0_105, %c0_106] : memref<1x128xf32, #tpu.memory_space<vmem>>, vector<1x128xf32>
    %136 = vector.broadcast %135 : vector<1x128xf32> to vector<8x128xf32>
    %137 = arith.addf %134, %136 : vector<8x128xf32>
    %cst_107 = arith.constant 0.000000e+00 : f32
    %138 = vector.broadcast %cst_107 : f32 to vector<8x128xf32>
    %139 = arith.maximumf %137, %138 : vector<8x128xf32>
    %140 = arith.truncf %139 : vector<8x128xf32> to vector<8x128xbf16>
    %c0_108 = arith.constant 0 : index
    %c0_109 = arith.constant 0 : index
    %141 = vector.load %arg8[%c0_108, %c0_109] : memref<128x128xbf16, #tpu.memory_space<vmem>>, vector<128x128xbf16>
    %cst_110 = arith.constant dense<0.000000e+00> : vector<8x128xf32>
    %142 = tpu.matmul %140, %141, %cst_110 {dimension_numbers = #tpu.dot_dimension_numbers<[1], [0], [0], [1], [0, 0, 1, 1], [], []>} : vector<8x128xbf16>, vector<128x128xbf16>, vector<8x128xf32> -> vector<8x128xf32>
    %c0_111 = arith.constant 0 : index
    %c0_112 = arith.constant 0 : index
    %143 = vector.load %arg9[%c0_111, %c0_112] : memref<1x128xf32, #tpu.memory_space<vmem>>, vector<1x128xf32>
    %144 = vector.broadcast %143 : vector<1x128xf32> to vector<8x128xf32>
    %145 = arith.addf %142, %144 : vector<8x128xf32>
    %c0_113 = arith.constant 0 : index
    %c0_114 = arith.constant 0 : index
    %146 = vector.load %arg10[%c0_113, %c0_114] : memref<8x128xf32, #tpu.memory_space<vmem>>, vector<8x128xf32>
    tpu.vector_store %arg10[%c0_113, %c0_114], %145 {strides = array<i32>} : memref<8x128xf32, #tpu.memory_space<vmem>>, vector<8x128xf32>,
    return
  }
  func.func @transform_0(%arg0: i32) -> (i32, i32) {
    %c0_i32 = arith.constant 0 : i32
    %c0_i32_0 = arith.constant 0 : i32
    return %arg0, %c0_i32 : i32, i32
  }
  func.func @transform_1(%arg0: i32) -> (i32, i32) {
    %c0_i32 = arith.constant 0 : i32
    %c0_i32_0 = arith.constant 0 : i32
    %c0_i32_1 = arith.constant 0 : i32
    return %c0_i32, %c0_i32_0 : i32, i32
  }
  func.func @transform_2(%arg0: i32) -> (i32, i32) {
    %c0_i32 = arith.constant 0 : i32
    %c0_i32_0 = arith.constant 0 : i32
    %c0_i32_1 = arith.constant 0 : i32
    return %c0_i32, %c0_i32_0 : i32, i32
  }
  func.func @transform_3(%arg0: i32) -> (i32, i32) {
    %c0_i32 = arith.constant 0 : i32
    %c0_i32_0 = arith.constant 0 : i32
    %c0_i32_1 = arith.constant 0 : i32
    return %c0_i32, %c0_i32_0 : i32, i32
  }
  func.func @transform_4(%arg0: i32) -> (i32, i32) {
    %c0_i32 = arith.constant 0 : i32
    %c0_i32_0 = arith.constant 0 : i32
    %c0_i32_1 = arith.constant 0 : i32
    return %c0_i32, %c0_i32_0 : i32, i32
  }
  func.func @transform_5(%arg0: i32) -> (i32, i32) {
    %c0_i32 = arith.constant 0 : i32
    %c0_i32_0 = arith.constant 0 : i32
    %c0_i32_1 = arith.constant 0 : i32
    return %c0_i32, %c0_i32_0 : i32, i32
  }
  func.func @transform_6(%arg0: i32) -> (i32, i32) {
    %c0_i32 = arith.constant 0 : i32
    %c0_i32_0 = arith.constant 0 : i32
    %c0_i32_1 = arith.constant 0 : i32
    return %c0_i32, %c0_i32_0 : i32, i32
  }
  func.func @transform_7(%arg0: i32) -> (i32, i32) {
    %c0_i32 = arith.constant 0 : i32
    %c0_i32_0 = arith.constant 0 : i32
    %c0_i32_1 = arith.constant 0 : i32
    return %c0_i32, %c0_i32_0 : i32, i32
  }
  func.func @transform_8(%arg0: i32) -> (i32, i32) {
    %c0_i32 = arith.constant 0 : i32
    %c0_i32_0 = arith.constant 0 : i32
    %c0_i32_1 = arith.constant 0 : i32
    return %c0_i32, %c0_i32_0 : i32, i32
  }
  func.func @transform_9(%arg0: i32) -> (i32, i32) {
    %c0_i32 = arith.constant 0 : i32
    %c0_i32_0 = arith.constant 0 : i32
    return %arg0, %c0_i32 : i32, i32
  }
}

</mosaic_0001>

<llo_original>
// kernel: cnn_actor_critic_forward.1
$region0: #{cnn_actor_critic_forward.1}
  #allocation0 [shape = 'u32[]', space=smem, size = 0x4, offset = 0x4, fixed_abs, tag = 'smem constant byte address 0x4 - core index']
  #allocation1 [shape = 'u32[144,128]{1,0:T(1,128)}', space=vmem, size = 0x12000, scoped, tag = 'internal scratch']
  #allocation2 [shape = 'f32[400,128]{1,0:T(8,128)}', space=vmem, size = 0x32000, scoped, tag = 'scratch operand']
  %s0 = inlined_call_operand.vmem [shape: bf16[400,128], index: 0, kind: input, shape index: {}]
  %s1 = inlined_call_operand.vmem [shape: bf16[128,128], index: 1, kind: input, shape index: {}]
  %s2 = inlined_call_operand.vmem [shape: f32[1,128], index: 2, kind: input, shape index: {}]
  %s3 = inlined_call_operand.vmem [shape: bf16[1152,128], index: 3, kind: input, shape index: {}]
  %s4 = inlined_call_operand.vmem [shape: f32[1,128], index: 4, kind: input, shape index: {}]
  %s5 = inlined_call_operand.vmem [shape: bf16[512,128], index: 5, kind: input, shape index: {}]
  %s6 = inlined_call_operand.vmem [shape: f32[1,128], index: 6, kind: input, shape index: {}]
  %s7 = inlined_call_operand.vmem [shape: bf16[128,128], index: 7, kind: input, shape index: {}]
  %s8 = inlined_call_operand.vmem [shape: f32[1,128], index: 8, kind: input, shape index: {}]
  %s9 = inlined_call_operand.vmem [shape: f32[8,128], index: 9, kind: output, shape index: {}]
  %s10 = sld [smem:[#allocation0]]
  $region46: #{cnn_actor_critic_forward.1} parent=0
    _
  %s12 = ssub.s32 1, %s10
  %s13 = scalar_select 0, %s12, %s10
  // Predicated region
  $region2: #{cnn_actor_critic_forward.1} parent=0 // pred_check
    _
  $region3: #{cnn_actor_critic_forward.1} parent=0 // pred_check_branch
    %15 = sbr.rel (0) target = $region5
  $region4: #{cnn_actor_critic_forward.1} parent=0 // pred_region
    _
  $region5: #{cnn_actor_critic_forward.1} parent=0 // pred_fallthru
    _
  // Predicated region
  $region6: #{cnn_actor_critic_forward.1} parent=0 // pred_check
    _
  $region7: #{cnn_actor_critic_forward.1} parent=0 // pred_check_branch
    %17 = sbr.rel (0) target = $region9
  $region8: #{cnn_actor_critic_forward.1} parent=0 // pred_region
    _
  $region9: #{cnn_actor_critic_forward.1} parent=0 // pred_fallthru
    _
  // Predicated region
  $region10: #{cnn_actor_critic_forward.1} parent=0 // pred_check
    _
  $region11: #{cnn_actor_critic_forward.1} parent=0 // pred_check_branch
    %19 = sbr.rel (0) target = $region13
  $region12: #{cnn_actor_critic_forward.1} parent=0 // pred_region
    _
  $region13: #{cnn_actor_critic_forward.1} parent=0 // pred_fallthru
    _
  // Predicated region
  $region14: #{cnn_actor_critic_forward.1} parent=0 // pred_check
    _
  $region15: #{cnn_actor_critic_forward.1} parent=0 // pred_check_branch
    %21 = sbr.rel (0) target = $region17
  $region16: #{cnn_actor_critic_forward.1} parent=0 // pred_region
    _
  $region17: #{cnn_actor_critic_forward.1} parent=0 // pred_fallthru
    _
  // Predicated region
  $region18: #{cnn_actor_critic_forward.1} parent=0 // pred_check
    _
  $region19: #{cnn_actor_critic_forward.1} parent=0 // pred_check_branch
    %23 = sbr.rel (0) target = $region21
  $region20: #{cnn_actor_critic_forward.1} parent=0 // pred_region
    _
  $region21: #{cnn_actor_critic_forward.1} parent=0 // pred_fallthru
    _
  // Predicated region
  $region22: #{cnn_actor_critic_forward.1} parent=0 // pred_check
    _
  $region23: #{cnn_actor_critic_forward.1} parent=0 // pred_check_branch
    %25 = sbr.rel (0) target = $region25
  $region24: #{cnn_actor_critic_forward.1} parent=0 // pred_region
    _
  $region25: #{cnn_actor_critic_forward.1} parent=0 // pred_fallthru
    _
  // Predicated region
  $region26: #{cnn_actor_critic_forward.1} parent=0 // pred_check
    _
  $region27: #{cnn_actor_critic_forward.1} parent=0 // pred_check_branch
    %27 = sbr.rel (0) target = $region29
  $region28: #{cnn_actor_critic_forward.1} parent=0 // pred_region
    _
  $region29: #{cnn_actor_critic_forward.1} parent=0 // pred_fallthru
    _
  // Predicated region
  $region30: #{cnn_actor_critic_forward.1} parent=0 // pred_check
    _
  $region31: #{cnn_actor_critic_forward.1} parent=0 // pred_check_branch
    %29 = sbr.rel (0) target = $region33
  $region32: #{cnn_actor_critic_forward.1} parent=0 // pred_region
    _
  $region33: #{cnn_actor_critic_forward.1} parent=0 // pred_fallthru
    _
  // Predicated region
  $region34: #{cnn_actor_critic_forward.1} parent=0 // pred_check
    _
  $region35: #{cnn_actor_critic_forward.1} parent=0 // pred_check_branch
    %31 = sbr.rel (0) target = $region37
  $region36: #{cnn_actor_critic_forward.1} parent=0 // pred_region
    _
  $region37: #{cnn_actor_critic_forward.1} parent=0 // pred_fallthru
    _
  %v33 = vld [vmem:[%s0] sm:$0xf]
  %v34 = vld [vmem:[%s0 + $0x4] sm:$0xf]
  %v35 = vld [vmem:[%s0 + $0x8] sm:$0xf]
  %v36 = vld [vmem:[%s0 + $0xc] sm:$0xf]
  %v37 = vld [vmem:[%s0 + $0x10] sm:$0xf]
  %v38 = vld [vmem:[%s0 + $0x14] sm:$0xf]
  %v39 = vld [vmem:[%s0 + $0x18] sm:$0xf]
  %v40 = vld [vmem:[%s0 + $0x1c] sm:$0xf]
  %v41 = vld [vmem:[%s0 + $0x20] sm:$0xf]
  %v42 = vld [vmem:[%s0 + $0x24] sm:$0xf]
  %v43 = vld [vmem:[%s0 + $0x28] sm:$0xf]
  %v44 = vld [vmem:[%s0 + $0x2c] sm:$0xf]
  %v45 = vld [vmem:[%s0 + $0x30] sm:$0xf]
  %v46 = vld [vmem:[%s0 + $0x34] sm:$0xf]
  %v47 = vld [vmem:[%s0 + $0x38] sm:$0xf]
  %v48 = vld [vmem:[%s0 + $0x3c] sm:$0xf]
  %v49 = vld [vmem:[%s0 + $0x40] sm:$0xf]
  %v50 = vld [vmem:[%s0 + $0x44] sm:$0xf]
  %v51 = vld [vmem:[%s0 + $0x48] sm:$0xf]
  %v52 = vld [vmem:[%s0 + $0x4c] sm:$0xf]
  %v53 = vld [vmem:[%s0 + $0x50] sm:$0xf]
  %v54 = vld [vmem:[%s0 + $0x54] sm:$0xf]
  %v55 = vld [vmem:[%s0 + $0x58] sm:$0xf]
  %v56 = vld [vmem:[%s0 + $0x5c] sm:$0xf]
  %v57 = vld [vmem:[%s0 + $0x60] sm:$0xf]
  %v58 = vld [vmem:[%s0 + $0x64] sm:$0xf]
  %v59 = vld [vmem:[%s0 + $0x68] sm:$0xf]
  %v60 = vld [vmem:[%s0 + $0x6c] sm:$0xf]
  %v61 = vld [vmem:[%s0 + $0x70] sm:$0xf]
  %v62 = vld [vmem:[%s0 + $0x74] sm:$0xf]
  %v63 = vld [vmem:[%s0 + $0x78] sm:$0xf]
  %v64 = vld [vmem:[%s0 + $0x7c] sm:$0xf]
  %v65 = vld [vmem:[%s0 + $0x80] sm:$0xf]
  %v66 = vld [vmem:[%s0 + $0x84] sm:$0xf]
  %v67 = vld [vmem:[%s0 + $0x88] sm:$0xf]
  %v68 = vld [vmem:[%s0 + $0x8c] sm:$0xf]
  %v69 = vld [vmem:[%s0 + $0x90] sm:$0xf]
  %v70 = vld [vmem:[%s0 + $0x94] sm:$0xf]
  %v71 = vld [vmem:[%s0 + $0x98] sm:$0xf]
  %v72 = vld [vmem:[%s0 + $0x9c] sm:$0xf]
  %v73 = vld [vmem:[%s0 + $0xa0] sm:$0xf]
  %v74 = vld [vmem:[%s0 + $0xa4] sm:$0xf]
  %v75 = vld [vmem:[%s0 + $0xa8] sm:$0xf]
  %v76 = vld [vmem:[%s0 + $0xac] sm:$0xf]
  %v77 = vld [vmem:[%s0 + $0xb0] sm:$0xf]
  %v78 = vld [vmem:[%s0 + $0xb4] sm:$0xf]
  %v79 = vld [vmem:[%s0 + $0xb8] sm:$0xf]
  %v80 = vld [vmem:[%s0 + $0xbc] sm:$0xf]
  %v81 = vld [vmem:[%s0 + $0xc0] sm:$0xf]
  %v82 = vld [vmem:[%s0 + $0xc4] sm:$0xf]
  %v83 = vld [vmem:[%s1] sm:$0xf]
  %v84 = vld [vmem:[%s1 + $0x4] sm:$0xf]
  %v85 = vld [vmem:[%s1 + $0x8] sm:$0xf]
  %v86 = vld [vmem:[%s1 + $0xc] sm:$0xf]
  %v87 = vld [vmem:[%s1 + $0x10] sm:$0xf]
  %v88 = vld [vmem:[%s1 + $0x14] sm:$0xf]
  %v89 = vld [vmem:[%s1 + $0x18] sm:$0xf]
  %v90 = vld [vmem:[%s1 + $0x1c] sm:$0xf]
  %v91 = vld [vmem:[%s1 + $0x20] sm:$0xf]
  %v92 = vld [vmem:[%s1 + $0x24] sm:$0xf]
  %v93 = vld [vmem:[%s1 + $0x28] sm:$0xf]
  %v94 = vld [vmem:[%s1 + $0x2c] sm:$0xf]
  %v95 = vld [vmem:[%s1 + $0x30] sm:$0xf]
  %v96 = vld [vmem:[%s1 + $0x34] sm:$0xf]
  %v97 = vld [vmem:[%s1 + $0x38] sm:$0xf]
  %v98 = vld [vmem:[%s1 + $0x3c] sm:$0xf]
  %v99 = vld [vmem:[%s2] sm:$0x1]
  %v101 = vlaneseq
  %v102 = vshrl.u32 %v101, 7
  %v103 = vsub.s32 0, %v102
  %v104 = vrot.slane %v99, %v103
  %v156 = vunpack.c.l.b16 %v33
  %v157 = vunpack.c.l.b16 %v34
  %v158 = vunpack.c.l.b16 %v35
  %v159 = vunpack.c.l.b16 %v36
  %v160 = vunpack.c.l.b16 %v37
  %v161 = vunpack.c.l.b16 %v38
  %v162 = vunpack.c.l.b16 %v39
  %v163 = vunpack.c.l.b16 %v40
  %v164 = vunpack.c.l.b16 %v41
  %v165 = vunpack.c.l.b16 %v42
  %v166 = vunpack.c.l.b16 %v43
  %v167 = vunpack.c.l.b16 %v44
  %v168 = vunpack.c.l.b16 %v45
  %v169 = vunpack.c.l.b16 %v46
  %v170 = vunpack.c.l.b16 %v47
  %v171 = vunpack.c.l.b16 %v48
  %v172 = vunpack.c.l.b16 %v49
  %v173 = vunpack.c.l.b16 %v50
  %v174 = vunpack.c.l.b16 %v51
  %v175 = vunpack.c.l.b16 %v52
  %v176 = vunpack.c.l.b16 %v53
  %v177 = vunpack.c.l.b16 %v54
  %v178 = vunpack.c.l.b16 %v55
  %v179 = vunpack.c.l.b16 %v56
  %v180 = vunpack.c.l.b16 %v57
  %v181 = vunpack.c.l.b16 %v58
  %v182 = vunpack.c.l.b16 %v59
  %v183 = vunpack.c.l.b16 %v60
  %v184 = vunpack.c.l.b16 %v61
  %v185 = vunpack.c.l.b16 %v62
  %v186 = vunpack.c.l.b16 %v63
  %v187 = vunpack.c.l.b16 %v64
  %v188 = vunpack.c.l.b16 %v65
  %v189 = vunpack.c.l.b16 %v66
  %v190 = vunpack.c.l.b16 %v67
  %v191 = vunpack.c.l.b16 %v68
  %v192 = vunpack.c.l.b16 %v69
  %v193 = vunpack.c.l.b16 %v70
  %v194 = vunpack.c.l.b16 %v71
  %v195 = vunpack.c.l.b16 %v72
  %v196 = vunpack.c.l.b16 %v73
  %v197 = vunpack.c.l.b16 %v74
  %v198 = vunpack.c.l.b16 %v75
  %v199 = vunpack.c.l.b16 %v76
  %v200 = vunpack.c.l.b16 %v77
  %v201 = vunpack.c.l.b16 %v78
  %v202 = vunpack.c.l.b16 %v79
  %v203 = vunpack.c.l.b16 %v80
  %v204 = vunpack.c.l.b16 %v81
  %v205 = vunpack.c.l.b16 %v82
  %v206 = vpack.c.b16 %v157, %v156
  %v207 = vpack.c.b16 %v159, %v158
  %v208 = vpack.c.b16 %v161, %v160
  %v209 = vpack.c.b16 %v163, %v162
  %v210 = vpack.c.b16 %v165, %v164
  %v211 = vpack.c.b16 %v167, %v166
  %v212 = vpack.c.b16 %v169, %v168
  %v213 = vpack.c.b16 %v171, %v170
  %v214 = vpack.c.b16 %v173, %v172
  %v215 = vpack.c.b16 %v175, %v174
  %v216 = vpack.c.b16 %v177, %v176
  %v217 = vpack.c.b16 %v179, %v178
  %v218 = vpack.c.b16 %v181, %v180
  %v219 = vpack.c.b16 %v183, %v182
  %v220 = vpack.c.b16 %v185, %v184
  %v221 = vpack.c.b16 %v187, %v186
  %v222 = vpack.c.b16 %v189, %v188
  %v223 = vpack.c.b16 %v191, %v190
  %v224 = vpack.c.b16 %v193, %v192
  %v225 = vpack.c.b16 %v195, %v194
  %v226 = vpack.c.b16 %v197, %v196
  %v227 = vpack.c.b16 %v199, %v198
  %v228 = vpack.c.b16 %v201, %v200
  %v229 = vpack.c.b16 %v203, %v202
  %v230 = vpack.c.b16 %v205, %v204
  %v272 = vunpack.c.l.b16 %v83
  %v273 = vunpack.c.l.b16 %v84
  %v274 = vunpack.c.l.b16 %v85
  %v275 = vunpack.c.l.b16 %v86
  %v276 = vunpack.c.l.b16 %v87
  %v277 = vunpack.c.l.b16 %v88
  %v278 = vunpack.c.l.b16 %v89
  %v279 = vunpack.c.l.b16 %v90
  %v280 = vunpack.c.l.b16 %v91
  %v281 = vunpack.c.l.b16 %v92
  %v282 = vunpack.c.l.b16 %v93
  %v283 = vunpack.c.l.b16 %v94
  %v284 = vunpack.c.l.b16 %v95
  %v285 = vunpack.c.l.b16 %v96
  %v286 = vunpack.c.l.b16 %v97
  %v287 = vunpack.c.l.b16 %v98
  %v288 = vpack.c.b16 %v273, %v272
  %v289 = vpack.c.b16 %v275, %v274
  %v290 = vpack.c.b16 %v277, %v276
  %v291 = vpack.c.b16 %v279, %v278
  %v292 = vpack.c.b16 %v281, %v280
  %v293 = vpack.c.b16 %v283, %v282
  %v294 = vpack.c.b16 %v285, %v284
  %v295 = vpack.c.b16 %v287, %v286
  %304 = vmatprep.subr.bf16.mxu0 0
  %305 = vmatpush1.bf16.msra.mxu0 %v295
  %306 = vmatprep.subr.bf16.mxu0 0
  %307 = vmatpush1.bf16.msra.mxu0 %v294
  %308 = vmatprep.subr.bf16.mxu0 0
  %309 = vmatpush1.bf16.msra.mxu0 %v293
  %310 = vmatprep.subr.bf16.mxu0 0
  %311 = vmatpush1.bf16.msra.mxu0 %v292
  %312 = vmatprep.subr.bf16.mxu0 0
  %313 = vmatpush1.bf16.msra.mxu0 %v291
  %314 = vmatprep.subr.bf16.mxu0 0
  %315 = vmatpush1.bf16.msra.mxu0 %v290
  %316 = vmatprep.subr.bf16.mxu0 0
  %317 = vmatpush1.bf16.msra.mxu0 %v289
  %318 = vmatprep.subr.bf16.mxu0 0
  %319 = vmatpush1.bf16.msra.mxu0 %v288
  %320 = vmatprep.subr.bf16.mxu0 0
  %321 = vmatpush2.bf16.msra.mxu0 0
  %322 = vmatprep.subr.bf16.mxu0 0
  %323 = vmatpush2.bf16.msra.mxu0 0
  %324 = vmatprep.subr.bf16.mxu0 0
  %325 = vmatpush2.bf16.msra.mxu0 0
  %326 = vmatprep.subr.bf16.mxu0 0
  %327 = vmatpush2.bf16.msra.mxu0 0
  %328 = vmatprep.subr.bf16.mxu0 0
  %329 = vmatpush2.bf16.msra.mxu0 0
  %330 = vmatprep.subr.bf16.mxu0 0
  %331 = vmatpush2.bf16.msra.mxu0 0
  %332 = vmatprep.subr.bf16.mxu0 0
  %333 = vmatpush2.bf16.msra.mxu0 0
  %334 = vmatprep.subr.bf16.mxu0 0
  %335 = vmatpush2.bf16.msra.mxu0 0
  %336 = vmatprep.mubr.bf16.mxu0 0
  %337 = vmatmul.mubr.bf16.gmra.mxu0 %v206
  %v338 = vpop.f32.mrf.mxu0
  %v339 = vadd.f32 %v104, %v338
  %v340 = vpop.f32.mrf.mxu0
  %v341 = vpop.f32.mrf.mxu0
  %v342 = vadd.f32 %v104, %v341
  %v343 = vpop.f32.mrf.mxu0
  %344 = vmatprep.mubr.bf16.mxu0 0
  %345 = vmatmul.mubr.bf16.gmra.mxu0 %v207
  %v346 = vpop.f32.mrf.mxu0
  %v347 = vadd.f32 %v104, %v346
  %v348 = vpop.f32.mrf.mxu0
  %v349 = vpop.f32.mrf.mxu0
  %v350 = vadd.f32 %v104, %v349
  %v351 = vpop.f32.mrf.mxu0
  %352 = vmatprep.mubr.bf16.mxu0 0
  %353 = vmatmul.mubr.bf16.gmra.mxu0 %v208
  %v354 = vpop.f32.mrf.mxu0
  %v355 = vadd.f32 %v104, %v354
  %v356 = vpop.f32.mrf.mxu0
  %v357 = vpop.f32.mrf.mxu0
  %v358 = vadd.f32 %v104, %v357
  %v359 = vpop.f32.mrf.mxu0
  %360 = vmatprep.mubr.bf16.mxu0 0
  %361 = vmatmul.mubr.bf16.gmra.mxu0 %v209
  %v362 = vpop.f32.mrf.mxu0
  %v363 = vadd.f32 %v104, %v362
  %v364 = vpop.f32.mrf.mxu0
  %v365 = vpop.f32.mrf.mxu0
  %v366 = vadd.f32 %v104, %v365
  %v367 = vpop.f32.mrf.mxu0
  %368 = vmatprep.mubr.bf16.mxu0 0
  %369 = vmatmul.mubr.bf16.gmra.mxu0 %v210
  %v370 = vpop.f32.mrf.mxu0
  %v371 = vadd.f32 %v104, %v370
  %v372 = vpop.f32.mrf.mxu0
  %v373 = vpop.f32.mrf.mxu0
  %v374 = vadd.f32 %v104, %v373
  %v375 = vpop.f32.mrf.mxu0
  %376 = vmatprep.mubr.bf16.mxu0 0
  %377 = vmatmul.mubr.bf16.gmra.mxu0 %v211
  %v378 = vpop.f32.mrf.mxu0
  %v379 = vadd.f32 %v104, %v378
  %v380 = vpop.f32.mrf.mxu0
  %v381 = vpop.f32.mrf.mxu0
  %v382 = vadd.f32 %v104, %v381
  %v383 = vpop.f32.mrf.mxu0
  %384 = vmatprep.mubr.bf16.mxu0 0
  %385 = vmatmul.mubr.bf16.gmra.mxu0 %v212
  %v386 = vpop.f32.mrf.mxu0
  %v387 = vadd.f32 %v104, %v386
  %v388 = vpop.f32.mrf.mxu0
  %v389 = vpop.f32.mrf.mxu0
  %v390 = vadd.f32 %v104, %v389
  %v391 = vpop.f32.mrf.mxu0
  %392 = vmatprep.mubr.bf16.mxu0 0
  %393 = vmatmul.mubr.bf16.gmra.mxu0 %v213
  %v394 = vpop.f32.mrf.mxu0
  %v395 = vadd.f32 %v104, %v394
  %v396 = vpop.f32.mrf.mxu0
  %v397 = vpop.f32.mrf.mxu0
  %v398 = vadd.f32 %v104, %v397
  %v399 = vpop.f32.mrf.mxu0
  %400 = vmatprep.mubr.bf16.mxu0 0
  %401 = vmatmul.mubr.bf16.gmra.mxu0 %v214
  %v402 = vpop.f32.mrf.mxu0
  %v403 = vadd.f32 %v104, %v402
  %v404 = vpop.f32.mrf.mxu0
  %v405 = vpop.f32.mrf.mxu0
  %v406 = vadd.f32 %v104, %v405
  %v407 = vpop.f32.mrf.mxu0
  %408 = vmatprep.mubr.bf16.mxu0 0
  %409 = vmatmul.mubr.bf16.gmra.mxu0 %v215
  %v410 = vpop.f32.mrf.mxu0
  %v411 = vadd.f32 %v104, %v410
  %v412 = vpop.f32.mrf.mxu0
  %v413 = vpop.f32.mrf.mxu0
  %v414 = vadd.f32 %v104, %v413
  %v415 = vpop.f32.mrf.mxu0
  %416 = vmatprep.mubr.bf16.mxu0 0
  %417 = vmatmul.mubr.bf16.gmra.mxu0 %v216
  %v418 = vpop.f32.mrf.mxu0
  %v419 = vadd.f32 %v104, %v418
  %v420 = vpop.f32.mrf.mxu0
  %v421 = vpop.f32.mrf.mxu0
  %v422 = vadd.f32 %v104, %v421
  %v423 = vpop.f32.mrf.mxu0
  %424 = vmatprep.mubr.bf16.mxu0 0
  %425 = vmatmul.mubr.bf16.gmra.mxu0 %v217
  %v426 = vpop.f32.mrf.mxu0
  %v427 = vadd.f32 %v104, %v426
  %v428 = vpop.f32.mrf.mxu0
  %v429 = vpop.f32.mrf.mxu0
  %v430 = vadd.f32 %v104, %v429
  %v431 = vpop.f32.mrf.mxu0
  %432 = vmatprep.mubr.bf16.mxu0 0
  %433 = vmatmul.mubr.bf16.gmra.mxu0 %v218
  %v434 = vpop.f32.mrf.mxu0
  %v435 = vadd.f32 %v104, %v434
  %v436 = vpop.f32.mrf.mxu0
  %v437 = vpop.f32.mrf.mxu0
  %v438 = vadd.f32 %v104, %v437
  %v439 = vpop.f32.mrf.mxu0
  %440 = vmatprep.mubr.bf16.mxu0 0
  %441 = vmatmul.mubr.bf16.gmra.mxu0 %v219
  %v442 = vpop.f32.mrf.mxu0
  %v443 = vadd.f32 %v104, %v442
  %v444 = vpop.f32.mrf.mxu0
  %v445 = vpop.f32.mrf.mxu0
  %v446 = vadd.f32 %v104, %v445
  %v447 = vpop.f32.mrf.mxu0
  %448 = vmatprep.mubr.bf16.mxu0 0
  %449 = vmatmul.mubr.bf16.gmra.mxu0 %v220
  %v450 = vpop.f32.mrf.mxu0
  %v451 = vadd.f32 %v104, %v450
  %v452 = vpop.f32.mrf.mxu0
  %v453 = vpop.f32.mrf.mxu0
  %v454 = vadd.f32 %v104, %v453
  %v455 = vpop.f32.mrf.mxu0
  %456 = vmatprep.mubr.bf16.mxu0 0
  %457 = vmatmul.mubr.bf16.gmra.mxu0 %v221
  %v458 = vpop.f32.mrf.mxu0
  %v459 = vadd.f32 %v104, %v458
  %v460 = vpop.f32.mrf.mxu0
  %v461 = vpop.f32.mrf.mxu0
  %v462 = vadd.f32 %v104, %v461
  %v463 = vpop.f32.mrf.mxu0
  %464 = vmatprep.mubr.bf16.mxu0 0
  %465 = vmatmul.mubr.bf16.gmra.mxu0 %v222
  %v466 = vpop.f32.mrf.mxu0
  %v467 = vadd.f32 %v104, %v466
  %v468 = vpop.f32.mrf.mxu0
  %v469 = vpop.f32.mrf.mxu0
  %v470 = vadd.f32 %v104, %v469
  %v471 = vpop.f32.mrf.mxu0
  %472 = vmatprep.mubr.bf16.mxu0 0
  %473 = vmatmul.mubr.bf16.gmra.mxu0 %v223
  %v474 = vpop.f32.mrf.mxu0
  %v475 = vadd.f32 %v104, %v474
  %v476 = vpop.f32.mrf.mxu0
  %v477 = vpop.f32.mrf.mxu0
  %v478 = vadd.f32 %v104, %v477
  %v479 = vpop.f32.mrf.mxu0
  %480 = vmatprep.mubr.bf16.mxu0 0
  %481 = vmatmul.mubr.bf16.gmra.mxu0 %v224
  %v482 = vpop.f32.mrf.mxu0
  %v483 = vadd.f32 %v104, %v482
  %v484 = vpop.f32.mrf.mxu0
  %v485 = vpop.f32.mrf.mxu0
  %v486 = vadd.f32 %v104, %v485
  %v487 = vpop.f32.mrf.mxu0
  %488 = vmatprep.mubr.bf16.mxu0 0
  %489 = vmatmul.mubr.bf16.gmra.mxu0 %v225
  %v490 = vpop.f32.mrf.mxu0
  %v491 = vadd.f32 %v104, %v490
  %v492 = vpop.f32.mrf.mxu0
  %v493 = vpop.f32.mrf.mxu0
  %v494 = vadd.f32 %v104, %v493
  %v495 = vpop.f32.mrf.mxu0
  %496 = vmatprep.mubr.bf16.mxu0 0
  %497 = vmatmul.mubr.bf16.gmra.mxu0 %v226
  %v498 = vpop.f32.mrf.mxu0
  %v499 = vadd.f32 %v104, %v498
  %v500 = vpop.f32.mrf.mxu0
  %v501 = vpop.f32.mrf.mxu0
  %v502 = vadd.f32 %v104, %v501
  %v503 = vpop.f32.mrf.mxu0
  %504 = vmatprep.mubr.bf16.mxu0 0
  %505 = vmatmul.mubr.bf16.gmra.mxu0 %v227
  %v506 = vpop.f32.mrf.mxu0
  %v507 = vadd.f32 %v104, %v506
  %v508 = vpop.f32.mrf.mxu0
  %v509 = vpop.f32.mrf.mxu0
  %v510 = vadd.f32 %v104, %v509
  %v511 = vpop.f32.mrf.mxu0
  %512 = vmatprep.mubr.bf16.mxu0 0
  %513 = vmatmul.mubr.bf16.gmra.mxu0 %v228
  %v514 = vpop.f32.mrf.mxu0
  %v515 = vadd.f32 %v104, %v514
  %v516 = vpop.f32.mrf.mxu0
  %v517 = vpop.f32.mrf.mxu0
  %v518 = vadd.f32 %v104, %v517
  %v519 = vpop.f32.mrf.mxu0
  %520 = vmatprep.mubr.bf16.mxu0 0
  %521 = vmatmul.mubr.bf16.gmra.mxu0 %v229
  %v522 = vpop.f32.mrf.mxu0
  %v523 = vadd.f32 %v104, %v522
  %v524 = vpop.f32.mrf.mxu0
  %v525 = vpop.f32.mrf.mxu0
  %v526 = vadd.f32 %v104, %v525
  %v527 = vpop.f32.mrf.mxu0
  %528 = vmatprep.mubr.bf16.mxu0 0
  %529 = vmatmul.mubr.bf16.gmra.mxu0 %v230
  %v530 = vpop.f32.mrf.mxu0
  %v531 = vadd.f32 %v104, %v530
  %v532 = vpop.f32.mrf.mxu0
  %v533 = vpop.f32.mrf.mxu0
  %v534 = vadd.f32 %v104, %v533
  %v535 = vpop.f32.mrf.mxu0
  %536 = vdwg.mxu0
  %v537 = vmax.f32 %v339, 0.0
  %v538 = vmax.f32 %v342, 0.0
  %v539 = vmax.f32 %v347, 0.0
  %v540 = vmax.f32 %v350, 0.0
  %v541 = vmax.f32 %v355, 0.0
  %v542 = vmax.f32 %v358, 0.0
  %v543 = vmax.f32 %v363, 0.0
  %v544 = vmax.f32 %v366, 0.0
  %v545 = vmax.f32 %v371, 0.0
  %v546 = vmax.f32 %v374, 0.0
  %v547 = vmax.f32 %v379, 0.0
  %v548 = vmax.f32 %v382, 0.0
  %v549 = vmax.f32 %v387, 0.0
  %v550 = vmax.f32 %v390, 0.0
  %v551 = vmax.f32 %v395, 0.0
  %v552 = vmax.f32 %v398, 0.0
  %v553 = vmax.f32 %v403, 0.0
  %v554 = vmax.f32 %v406, 0.0
  %v555 = vmax.f32 %v411, 0.0
  %v556 = vmax.f32 %v414, 0.0
  %v557 = vmax.f32 %v419, 0.0
  %v558 = vmax.f32 %v422, 0.0
  %v559 = vmax.f32 %v427, 0.0
  %v560 = vmax.f32 %v430, 0.0
  %v561 = vmax.f32 %v435, 0.0
  %v562 = vmax.f32 %v438, 0.0
  %v563 = vmax.f32 %v443, 0.0
  %v564 = vmax.f32 %v446, 0.0
  %v565 = vmax.f32 %v451, 0.0
  %v566 = vmax.f32 %v454, 0.0
  %v567 = vmax.f32 %v459, 0.0
  %v568 = vmax.f32 %v462, 0.0
  %v569 = vmax.f32 %v467, 0.0
  %v570 = vmax.f32 %v470, 0.0
  %v571 = vmax.f32 %v475, 0.0
  %v572 = vmax.f32 %v478, 0.0
  %v573 = vmax.f32 %v483, 0.0
  %v574 = vmax.f32 %v486, 0.0
  %v575 = vmax.f32 %v491, 0.0
  %v576 = vmax.f32 %v494, 0.0
  %v577 = vmax.f32 %v499, 0.0
  %v578 = vmax.f32 %v502, 0.0
  %v579 = vmax.f32 %v507, 0.0
  %v580 = vmax.f32 %v510, 0.0
  %v581 = vmax.f32 %v515, 0.0
  %v582 = vmax.f32 %v518, 0.0
  %v583 = vmax.f32 %v523, 0.0
  %v584 = vmax.f32 %v526, 0.0
  %v585 = vmax.f32 %v531, 0.0
  %v586 = vmax.f32 %v534, 0.0
  %587 = vst [vmem:[#allocation2] sm:$0xff] %v537
  %588 = vst [vmem:[#allocation2 + $0x8] sm:$0xff] %v538
  %589 = vst [vmem:[#allocation2 + $0x10] sm:$0xff] %v539
  %590 = vst [vmem:[#allocation2 + $0x18] sm:$0xff] %v540
  %591 = vst [vmem:[#allocation2 + $0x20] sm:$0xff] %v541
  %592 = vst [vmem:[#allocation2 + $0x28] sm:$0xff] %v542
  %593 = vst [vmem:[#allocation2 + $0x30] sm:$0xff] %v543
  %594 = vst [vmem:[#allocation2 + $0x38] sm:$0xff] %v544
  %595 = vst [vmem:[#allocation2 + $0x40] sm:$0xff] %v545
  %596 = vst [vmem:[#allocation2 + $0x48] sm:$0xff] %v546
  %597 = vst [vmem:[#allocation2 + $0x50] sm:$0xff] %v547
  %598 = vst [vmem:[#allocation2 + $0x58] sm:$0xff] %v548
  %599 = vst [vmem:[#allocation2 + $0x60] sm:$0xff] %v549
  %600 = vst [vmem:[#allocation2 + $0x68] sm:$0xff] %v550
  %601 = vst [vmem:[#allocation2 + $0x70] sm:$0xff] %v551
  %602 = vst [vmem:[#allocation2 + $0x78] sm:$0xff] %v552
  %603 = vst [vmem:[#allocation2 + $0x80] sm:$0xff] %v553
  %604 = vst [vmem:[#allocation2 + $0x88] sm:$0xff] %v554
  %605 = vst [vmem:[#allocation2 + $0x90] sm:$0xff] %v555
  %606 = vst [vmem:[#allocation2 + $0x98] sm:$0xff] %v556
  %607 = vst [vmem:[#allocation2 + $0xa0] sm:$0xff] %v557
  %608 = vst [vmem:[#allocation2 + $0xa8] sm:$0xff] %v558
  %609 = vst [vmem:[#allocation2 + $0xb0] sm:$0xff] %v559
  %610 = vst [vmem:[#allocation2 + $0xb8] sm:$0xff] %v560
  %611 = vst [vmem:[#allocation2 + $0xc0] sm:$0xff] %v561
  %612 = vst [vmem:[#allocation2 + $0xc8] sm:$0xff] %v562
  %613 = vst [vmem:[#allocation2 + $0xd0] sm:$0xff] %v563
  %614 = vst [vmem:[#allocation2 + $0xd8] sm:$0xff] %v564
  %615 = vst [vmem:[#allocation2 + $0xe0] sm:$0xff] %v565
  %616 = vst [vmem:[#allocation2 + $0xe8] sm:$0xff] %v566
  %617 = vst [vmem:[#allocation2 + $0xf0] sm:$0xff] %v567
  %618 = vst [vmem:[#allocation2 + $0xf8] sm:$0xff] %v568
  %619 = vst [vmem:[#allocation2 + $0x100] sm:$0xff] %v569
  %620 = vst [vmem:[#allocation2 + $0x108] sm:$0xff] %v570
  %621 = vst [vmem:[#allocation2 + $0x110] sm:$0xff] %v571
  %622 = vst [vmem:[#allocation2 + $0x118] sm:$0xff] %v572
  %623 = vst [vmem:[#allocation2 + $0x120] sm:$0xff] %v573
  %624 = vst [vmem:[#allocation2 + $0x128] sm:$0xff] %v574
  %625 = vst [vmem:[#allocation2 + $0x130] sm:$0xff] %v575
  %626 = vst [vmem:[#allocation2 + $0x138] sm:$0xff] %v576
  %627 = vst [vmem:[#allocation2 + $0x140] sm:$0xff] %v577
  %628 = vst [vmem:[#allocation2 + $0x148] sm:$0xff] %v578
  %629 = vst [vmem:[#allocation2 + $0x150] sm:$0xff] %v579
  %630 = vst [vmem:[#allocation2 + $0x158] sm:$0xff] %v580
  %631 = vst [vmem:[#allocation2 + $0x160] sm:$0xff] %v581
  %632 = vst [vmem:[#allocation2 + $0x168] sm:$0xff] %v582
  %633 = vst [vmem:[#allocation2 + $0x170] sm:$0xff] %v583
  %634 = vst [vmem:[#allocation2 + $0x178] sm:$0xff] %v584
  %635 = vst [vmem:[#allocation2 + $0x180] sm:$0xff] %v585
  %636 = vst [vmem:[#allocation2 + $0x188] sm:$0xff] %v586
  %v637 = vld [vmem:[#allocation2] sm:$0xff]
  %v638 = vld [vmem:[#allocation2 + $0x8] sm:$0xff]
  %v639 = vld [vmem:[#allocation2 + $0x10] sm:$0xff]
  %v640 = vld [vmem:[#allocation2 + $0x18] sm:$0xff]
  %v641 = vld [vmem:[#allocation2 + $0x20] sm:$0xff]
  %v642 = vld [vmem:[#allocation2 + $0x38] sm:$0xff]
  %v643 = vld [vmem:[#allocation2 + $0x40] sm:$0xff]
  %v644 = vld [vmem:[#allocation2 + $0x48] sm:$0xff]
  %v645 = vld [vmem:[#allocation2 + $0x50] sm:$0xff]
  %v646 = vld [vmem:[#allocation2 + $0x58] sm:$0xff]
  %v647 = vld [vmem:[#allocation2 + $0x70] sm:$0xff]
  %v648 = vld [vmem:[#allocation2 + $0x78] sm:$0xff]
  %v649 = vld [vmem:[#allocation2 + $0x80] sm:$0xff]
  %v650 = vld [vmem:[#allocation2 + $0x88] sm:$0xff]
  %v651 = vld [vmem:[#allocation2 + $0x90] sm:$0xff]
  %v652 = vld [vmem:[#allocation2 + $0xa8] sm:$0xff]
  %v653 = vld [vmem:[#allocation2 + $0xb0] sm:$0xff]
  %v654 = vld [vmem:[#allocation2 + $0xb8] sm:$0xff]
  %v655 = vld [vmem:[#allocation2 + $0xc0] sm:$0xff]
  %v656 = vld [vmem:[#allocation2 + $0xc8] sm:$0xff]
  %v657 = vld [vmem:[#allocation2 + $0xe0] sm:$0xff]
  %v658 = vld [vmem:[#allocation2 + $0xe8] sm:$0xff]
  %v659 = vld [vmem:[#allocation2 + $0xf0] sm:$0xff]
  %v660 = vld [vmem:[#allocation2 + $0xf8] sm:$0xff]
  %v661 = vld [vmem:[#allocation2 + $0x100] sm:$0xff]
  %v662 = vpack.c.bf16 %v638, %v637
  %v663 = vpack.c.bf16 %v640, %v639
  %v664 = vpack.c.bf16 %v642, %v641
  %v665 = vpack.c.bf16 %v644, %v643
  %v666 = vpack.c.bf16 %v646, %v645
  %v667 = vpack.c.bf16 %v648, %v647
  %v668 = vpack.c.bf16 %v650, %v649
  %v669 = vpack.c.bf16 %v652, %v651
  %v670 = vpack.c.bf16 %v654, %v653
  %v671 = vpack.c.bf16 %v656, %v655
  %v672 = vpack.c.bf16 %v658, %v657
  %v673 = vpack.c.bf16 %v660, %v659
  %v674 = vpack.c.bf16 %v661, %v661
  %v675 = vld [vmem:[%s3] sm:$0xf]
  %v676 = vld [vmem:[%s3 + $0x4] sm:$0xf]
  %v677 = vld [vmem:[%s3 + $0x8] sm:$0xf]
  %v678 = vld [vmem:[%s3 + $0xc] sm:$0xf]
  %v679 = vld [vmem:[%s3 + $0x10] sm:$0xf]
  %v680 = vld [vmem:[%s3 + $0x14] sm:$0xf]
  %v681 = vld [vmem:[%s3 + $0x18] sm:$0xf]
  %v682 = vld [vmem:[%s3 + $0x1c] sm:$0xf]
  %v683 = vld [vmem:[%s3 + $0x20] sm:$0xf]
  %v684 = vld [vmem:[%s3 + $0x24] sm:$0xf]
  %v685 = vld [vmem:[%s3 + $0x28] sm:$0xf]
  %v686 = vld [vmem:[%s3 + $0x2c] sm:$0xf]
  %v687 = vld [vmem:[%s3 + $0x30] sm:$0xf]
  %v688 = vld [vmem:[%s3 + $0x34] sm:$0xf]
  %v689 = vld [vmem:[%s3 + $0x38] sm:$0xf]
  %v690 = vld [vmem:[%s3 + $0x3c] sm:$0xf]
  %v691 = vld [vmem:[#allocation2 + $0x28] sm:$0xff]
  %v692 = vld [vmem:[#allocation2 + $0x60] sm:$0xff]
  %v693 = vld [vmem:[#allocation2 + $0x98] sm:$0xff]
  %v694 = vld [vmem:[#allocation2 + $0xd0] sm:$0xff]
  %v695 = vld [vmem:[#allocation2 + $0x108] sm:$0xff]
  %v696 = vpack.c.bf16 %v639, %v638
  %v697 = vpack.c.bf16 %v641, %v640
  %v698 = vpack.c.bf16 %v643, %v691
  %v699 = vpack.c.bf16 %v645, %v644
  %v700 = vpack.c.bf16 %v692, %v646
  %v701 = vpack.c.bf16 %v649, %v648
  %v702 = vpack.c.bf16 %v651, %v650
  %v703 = vpack.c.bf16 %v653, %v693
  %v704 = vpack.c.bf16 %v655, %v654
  %v705 = vpack.c.bf16 %v694, %v656
  %v706 = vpack.c.bf16 %v659, %v658
  %v707 = vpack.c.bf16 %v661, %v660
  %v708 = vpack.c.bf16 %v695, %v695
  %v709 = vld [vmem:[%s3 + $0x40] sm:$0xf]
  %v710 = vld [vmem:[%s3 + $0x44] sm:$0xf]
  %v711 = vld [vmem:[%s3 + $0x48] sm:$0xf]
  %v712 = vld [vmem:[%s3 + $0x4c] sm:$0xf]
  %v713 = vld [vmem:[%s3 + $0x50] sm:$0xf]
  %v714 = vld [vmem:[%s3 + $0x54] sm:$0xf]
  %v715 = vld [vmem:[%s3 + $0x58] sm:$0xf]
  %v716 = vld [vmem:[%s3 + $0x5c] sm:$0xf]
  %v717 = vld [vmem:[%s3 + $0x60] sm:$0xf]
  %v718 = vld [vmem:[%s3 + $0x64] sm:$0xf]
  %v719 = vld [vmem:[%s3 + $0x68] sm:$0xf]
  %v720 = vld [vmem:[%s3 + $0x6c] sm:$0xf]
  %v721 = vld [vmem:[%s3 + $0x70] sm:$0xf]
  %v722 = vld [vmem:[%s3 + $0x74] sm:$0xf]
  %v723 = vld [vmem:[%s3 + $0x78] sm:$0xf]
  %v724 = vld [vmem:[%s3 + $0x7c] sm:$0xf]
  %v741 = vunpack.c.l.b16 %v709
  %v742 = vunpack.c.l.b16 %v710
  %v743 = vunpack.c.l.b16 %v711
  %v744 = vunpack.c.l.b16 %v712
  %v745 = vunpack.c.l.b16 %v713
  %v746 = vunpack.c.l.b16 %v714
  %v747 = vunpack.c.l.b16 %v715
  %v748 = vunpack.c.l.b16 %v716
  %v749 = vunpack.c.l.b16 %v717
  %v750 = vunpack.c.l.b16 %v718
  %v751 = vunpack.c.l.b16 %v719
  %v752 = vunpack.c.l.b16 %v720
  %v753 = vunpack.c.l.b16 %v721
  %v754 = vunpack.c.l.b16 %v722
  %v755 = vunpack.c.l.b16 %v723
  %v756 = vunpack.c.l.b16 %v724
  %v757 = vpack.c.b16 %v742, %v741
  %v758 = vpack.c.b16 %v744, %v743
  %v759 = vpack.c.b16 %v746, %v745
  %v760 = vpack.c.b16 %v748, %v747
  %v761 = vpack.c.b16 %v750, %v749
  %v762 = vpack.c.b16 %v752, %v751
  %v763 = vpack.c.b16 %v754, %v753
  %v764 = vpack.c.b16 %v756, %v755
  %773 = vmatprep.subr.bf16.mxu0 0
  %774 = vmatpush1.bf16.msra.mxu0 %v764
  %775 = vmatprep.subr.bf16.mxu0 0
  %776 = vmatpush1.bf16.msra.mxu0 %v763
  %777 = vmatprep.subr.bf16.mxu0 0
  %778 = vmatpush1.bf16.msra.mxu0 %v762
  %779 = vmatprep.subr.bf16.mxu0 0
  %780 = vmatpush1.bf16.msra.mxu0 %v761
  %781 = vmatprep.subr.bf16.mxu0 0
  %782 = vmatpush1.bf16.msra.mxu0 %v760
  %783 = vmatprep.subr.bf16.mxu0 0
  %784 = vmatpush1.bf16.msra.mxu0 %v759
  %785 = vmatprep.subr.bf16.mxu0 0
  %786 = vmatpush1.bf16.msra.mxu0 %v758
  %787 = vmatprep.subr.bf16.mxu0 0
  %788 = vmatpush1.bf16.msra.mxu0 %v757
  %789 = vmatprep.subr.bf16.mxu0 0
  %790 = vmatpush2.bf16.msra.mxu0 0
  %791 = vmatprep.subr.bf16.mxu0 0
  %792 = vmatpush2.bf16.msra.mxu0 0
  %793 = vmatprep.subr.bf16.mxu0 0
  %794 = vmatpush2.bf16.msra.mxu0 0
  %795 = vmatprep.subr.bf16.mxu0 0
  %796 = vmatpush2.bf16.msra.mxu0 0
  %797 = vmatprep.subr.bf16.mxu0 0
  %798 = vmatpush2.bf16.msra.mxu0 0
  %799 = vmatprep.subr.bf16.mxu0 0
  %800 = vmatpush2.bf16.msra.mxu0 0
  %801 = vmatprep.subr.bf16.mxu0 0
  %802 = vmatpush2.bf16.msra.mxu0 0
  %803 = vmatprep.subr.bf16.mxu0 0
  %804 = vmatpush2.bf16.msra.mxu0 0
  %805 = vmatprep.mubr.bf16.mxu0 0
  %806 = vmatmul.mubr.bf16.gmra.mxu0 %v696
  %v807 = vpop.f32.mrf.mxu0
  %v808 = vadd.f32 0.0, %v807
  %v809 = vpop.f32.mrf.mxu0
  %v810 = vpop.f32.mrf.mxu0
  %v811 = vadd.f32 0.0, %v810
  %v812 = vpop.f32.mrf.mxu0
  %813 = vmatprep.mubr.bf16.mxu0 0
  %814 = vmatmul.mubr.bf16.gmra.mxu0 %v697
  %v815 = vpop.f32.mrf.mxu0
  %v816 = vadd.f32 0.0, %v815
  %v817 = vpop.f32.mrf.mxu0
  %v818 = vpop.f32.mrf.mxu0
  %v819 = vadd.f32 0.0, %v818
  %v820 = vpop.f32.mrf.mxu0
  %821 = vmatprep.mubr.bf16.mxu0 0
  %822 = vmatmul.mubr.bf16.gmra.mxu0 %v698
  %v823 = vpop.f32.mrf.mxu0
  %v824 = vadd.f32 0.0, %v823
  %v825 = vpop.f32.mrf.mxu0
  %v826 = vpop.f32.mrf.mxu0
  %v827 = vadd.f32 0.0, %v826
  %v828 = vpop.f32.mrf.mxu0
  %829 = vmatprep.mubr.bf16.mxu0 0
  %830 = vmatmul.mubr.bf16.gmra.mxu0 %v699
  %v831 = vpop.f32.mrf.mxu0
  %v832 = vadd.f32 0.0, %v831
  %v833 = vpop.f32.mrf.mxu0
  %v834 = vpop.f32.mrf.mxu0
  %v835 = vadd.f32 0.0, %v834
  %v836 = vpop.f32.mrf.mxu0
  %837 = vmatprep.mubr.bf16.mxu0 0
  %838 = vmatmul.mubr.bf16.gmra.mxu0 %v700
  %v839 = vpop.f32.mrf.mxu0
  %v840 = vadd.f32 0.0, %v839
  %v841 = vpop.f32.mrf.mxu0
  %v842 = vpop.f32.mrf.mxu0
  %v843 = vadd.f32 0.0, %v842
  %v844 = vpop.f32.mrf.mxu0
  %845 = vmatprep.mubr.bf16.mxu0 0
  %846 = vmatmul.mubr.bf16.gmra.mxu0 %v701
  %v847 = vpop.f32.mrf.mxu0
  %v848 = vadd.f32 0.0, %v847
  %v849 = vpop.f32.mrf.mxu0
  %v850 = vpop.f32.mrf.mxu0
  %v851 = vadd.f32 0.0, %v850
  %v852 = vpop.f32.mrf.mxu0
  %853 = vmatprep.mubr.bf16.mxu0 0
  %854 = vmatmul.mubr.bf16.gmra.mxu0 %v702
  %v855 = vpop.f32.mrf.mxu0
  %v856 = vadd.f32 0.0, %v855
  %v857 = vpop.f32.mrf.mxu0
  %v858 = vpop.f32.mrf.mxu0
  %v859 = vadd.f32 0.0, %v858
  %v860 = vpop.f32.mrf.mxu0
  %861 = vmatprep.mubr.bf16.mxu0 0
  %862 = vmatmul.mubr.bf16.gmra.mxu0 %v703
  %v863 = vpop.f32.mrf.mxu0
  %v864 = vadd.f32 0.0, %v863
  %v865 = vpop.f32.mrf.mxu0
  %v866 = vpop.f32.mrf.mxu0
  %v867 = vadd.f32 0.0, %v866
  %v868 = vpop.f32.mrf.mxu0
  %869 = vmatprep.mubr.bf16.mxu0 0
  %870 = vmatmul.mubr.bf16.gmra.mxu0 %v704
  %v871 = vpop.f32.mrf.mxu0
  %v872 = vadd.f32 0.0, %v871
  %v873 = vpop.f32.mrf.mxu0
  %v874 = vpop.f32.mrf.mxu0
  %v875 = vadd.f32 0.0, %v874
  %v876 = vpop.f32.mrf.mxu0
  %877 = vmatprep.mubr.bf16.mxu0 0
  %878 = vmatmul.mubr.bf16.gmra.mxu0 %v705
  %v879 = vpop.f32.mrf.mxu0
  %v880 = vadd.f32 0.0, %v879
  %v881 = vpop.f32.mrf.mxu0
  %v882 = vpop.f32.mrf.mxu0
  %v883 = vadd.f32 0.0, %v882
  %v884 = vpop.f32.mrf.mxu0
  %885 = vmatprep.mubr.bf16.mxu0 0
  %886 = vmatmul.mubr.bf16.gmra.mxu0 %v706
  %v887 = vpop.f32.mrf.mxu0
  %v888 = vadd.f32 0.0, %v887
  %v889 = vpop.f32.mrf.mxu0
  %v890 = vpop.f32.mrf.mxu0
  %v891 = vadd.f32 0.0, %v890
  %v892 = vpop.f32.mrf.mxu0
  %893 = vmatprep.mubr.bf16.mxu0 0
  %894 = vmatmul.mubr.bf16.gmra.mxu0 %v707
  %v895 = vpop.f32.mrf.mxu0
  %v896 = vadd.f32 0.0, %v895
  %v897 = vpop.f32.mrf.mxu0
  %v898 = vpop.f32.mrf.mxu0
  %v899 = vadd.f32 0.0, %v898
  %v900 = vpop.f32.mrf.mxu0
  %901 = vmatprep.mubr.bf16.mxu0 0
  %902 = vmatmul.mubr.bf16.gmra.mxu0 %v708
  %v903 = vpop.f32.mrf.mxu0
  %v904 = vadd.f32 0.0, %v903
  %v905 = vpop.f32.mrf.mxu0
  %v906 = vpop.f32.mrf.mxu0
  %v907 = vpop.f32.mrf.mxu0
  %908 = vdwg.mxu0
  %v925 = vunpack.c.l.b16 %v675
  %v926 = vunpack.c.l.b16 %v676
  %v927 = vunpack.c.l.b16 %v677
  %v928 = vunpack.c.l.b16 %v678
  %v929 = vunpack.c.l.b16 %v679
  %v930 = vunpack.c.l.b16 %v680
  %v931 = vunpack.c.l.b16 %v681
  %v932 = vunpack.c.l.b16 %v682
  %v933 = vunpack.c.l.b16 %v683
  %v934 = vunpack.c.l.b16 %v684
  %v935 = vunpack.c.l.b16 %v685
  %v936 = vunpack.c.l.b16 %v686
  %v937 = vunpack.c.l.b16 %v687
  %v938 = vunpack.c.l.b16 %v688
  %v939 = vunpack.c.l.b16 %v689
  %v940 = vunpack.c.l.b16 %v690
  %v941 = vpack.c.b16 %v926, %v925
  %v942 = vpack.c.b16 %v928, %v927
  %v943 = vpack.c.b16 %v930, %v929
  %v944 = vpack.c.b16 %v932, %v931
  %v945 = vpack.c.b16 %v934, %v933
  %v946 = vpack.c.b16 %v936, %v935
  %v947 = vpack.c.b16 %v938, %v937
  %v948 = vpack.c.b16 %v940, %v939
  %957 = vmatprep.subr.bf16.mxu0 0
  %958 = vmatpush1.bf16.msra.mxu0 %v948
  %959 = vmatprep.subr.bf16.mxu0 0
  %960 = vmatpush1.bf16.msra.mxu0 %v947
  %961 = vmatprep.subr.bf16.mxu0 0
  %962 = vmatpush1.bf16.msra.mxu0 %v946
  %963 = vmatprep.subr.bf16.mxu0 0
  %964 = vmatpush1.bf16.msra.mxu0 %v945
  %965 = vmatprep.subr.bf16.mxu0 0
  %966 = vmatpush1.bf16.msra.mxu0 %v944
  %967 = vmatprep.subr.bf16.mxu0 0
  %968 = vmatpush1.bf16.msra.mxu0 %v943
  %969 = vmatprep.subr.bf16.mxu0 0
  %970 = vmatpush1.bf16.msra.mxu0 %v942
  %971 = vmatprep.subr.bf16.mxu0 0
  %972 = vmatpush1.bf16.msra.mxu0 %v941
  %973 = vmatprep.subr.bf16.mxu0 0
  %974 = vmatpush2.bf16.msra.mxu0 0
  %975 = vmatprep.subr.bf16.mxu0 0
  %976 = vmatpush2.bf16.msra.mxu0 0
  %977 = vmatprep.subr.bf16.mxu0 0
  %978 = vmatpush2.bf16.msra.mxu0 0
  %979 = vmatprep.subr.bf16.mxu0 0
  %980 = vmatpush2.bf16.msra.mxu0 0
  %981 = vmatprep.subr.bf16.mxu0 0
  %982 = vmatpush2.bf16.msra.mxu0 0
  %983 = vmatprep.subr.bf16.mxu0 0
  %984 = vmatpush2.bf16.msra.mxu0 0
  %985 = vmatprep.subr.bf16.mxu0 0
  %986 = vmatpush2.bf16.msra.mxu0 0
  %987 = vmatprep.subr.bf16.mxu0 0
  %988 = vmatpush2.bf16.msra.mxu0 0
  %989 = vmatprep.mubr.bf16.mxu0 0
  %990 = vmatmul.mubr.bf16.gmra.mxu0 %v662
  %v991 = vpop.f32.mrf.mxu0
  %v992 = vadd.f32 %v808, %v991
  %v993 = vpop.f32.mrf.mxu0
  %v994 = vpop.f32.mrf.mxu0
  %v995 = vadd.f32 %v811, %v994
  %v996 = vpop.f32.mrf.mxu0
  %997 = vmatprep.mubr.bf16.mxu0 0
  %998 = vmatmul.mubr.bf16.gmra.mxu0 %v663
  %v999 = vpop.f32.mrf.mxu0
  %v1000 = vadd.f32 %v816, %v999
  %v1001 = vpop.f32.mrf.mxu0
  %v1002 = vpop.f32.mrf.mxu0
  %v1003 = vadd.f32 %v819, %v1002
  %v1004 = vpop.f32.mrf.mxu0
  %1005 = vmatprep.mubr.bf16.mxu0 0
  %1006 = vmatmul.mubr.bf16.gmra.mxu0 %v664
  %v1007 = vpop.f32.mrf.mxu0
  %v1008 = vadd.f32 %v824, %v1007
  %v1009 = vpop.f32.mrf.mxu0
  %v1010 = vpop.f32.mrf.mxu0
  %v1011 = vadd.f32 %v827, %v1010
  %v1012 = vpop.f32.mrf.mxu0
  %1013 = vmatprep.mubr.bf16.mxu0 0
  %1014 = vmatmul.mubr.bf16.gmra.mxu0 %v665
  %v1015 = vpop.f32.mrf.mxu0
  %v1016 = vadd.f32 %v832, %v1015
  %v1017 = vpop.f32.mrf.mxu0
  %v1018 = vpop.f32.mrf.mxu0
  %v1019 = vadd.f32 %v835, %v1018
  %v1020 = vpop.f32.mrf.mxu0
  %1021 = vmatprep.mubr.bf16.mxu0 0
  %1022 = vmatmul.mubr.bf16.gmra.mxu0 %v666
  %v1023 = vpop.f32.mrf.mxu0
  %v1024 = vadd.f32 %v840, %v1023
  %v1025 = vpop.f32.mrf.mxu0
  %v1026 = vpop.f32.mrf.mxu0
  %v1027 = vadd.f32 %v843, %v1026
  %v1028 = vpop.f32.mrf.mxu0
  %1029 = vmatprep.mubr.bf16.mxu0 0
  %1030 = vmatmul.mubr.bf16.gmra.mxu0 %v667
  %v1031 = vpop.f32.mrf.mxu0
  %v1032 = vadd.f32 %v848, %v1031
  %v1033 = vpop.f32.mrf.mxu0
  %v1034 = vpop.f32.mrf.mxu0
  %v1035 = vadd.f32 %v851, %v1034
  %v1036 = vpop.f32.mrf.mxu0
  %1037 = vmatprep.mubr.bf16.mxu0 0
  %1038 = vmatmul.mubr.bf16.gmra.mxu0 %v668
  %v1039 = vpop.f32.mrf.mxu0
  %v1040 = vadd.f32 %v856, %v1039
  %v1041 = vpop.f32.mrf.mxu0
  %v1042 = vpop.f32.mrf.mxu0
  %v1043 = vadd.f32 %v859, %v1042
  %v1044 = vpop.f32.mrf.mxu0
  %1045 = vmatprep.mubr.bf16.mxu0 0
  %1046 = vmatmul.mubr.bf16.gmra.mxu0 %v669
  %v1047 = vpop.f32.mrf.mxu0
  %v1048 = vadd.f32 %v864, %v1047
  %v1049 = vpop.f32.mrf.mxu0
  %v1050 = vpop.f32.mrf.mxu0
  %v1051 = vadd.f32 %v867, %v1050
  %v1052 = vpop.f32.mrf.mxu0
  %1053 = vmatprep.mubr.bf16.mxu0 0
  %1054 = vmatmul.mubr.bf16.gmra.mxu0 %v670
  %v1055 = vpop.f32.mrf.mxu0
  %v1056 = vadd.f32 %v872, %v1055
  %v1057 = vpop.f32.mrf.mxu0
  %v1058 = vpop.f32.mrf.mxu0
  %v1059 = vadd.f32 %v875, %v1058
  %v1060 = vpop.f32.mrf.mxu0
  %1061 = vmatprep.mubr.bf16.mxu0 0
  %1062 = vmatmul.mubr.bf16.gmra.mxu0 %v671
  %v1063 = vpop.f32.mrf.mxu0
  %v1064 = vadd.f32 %v880, %v1063
  %v1065 = vpop.f32.mrf.mxu0
  %v1066 = vpop.f32.mrf.mxu0
  %v1067 = vadd.f32 %v883, %v1066
  %v1068 = vpop.f32.mrf.mxu0
  %1069 = vmatprep.mubr.bf16.mxu0 0
  %1070 = vmatmul.mubr.bf16.gmra.mxu0 %v672
  %v1071 = vpop.f32.mrf.mxu0
  %v1072 = vadd.f32 %v888, %v1071
  %v1073 = vpop.f32.mrf.mxu0
  %v1074 = vpop.f32.mrf.mxu0
  %v1075 = vadd.f32 %v891, %v1074
  %v1076 = vpop.f32.mrf.mxu0
  %1077 = vmatprep.mubr.bf16.mxu0 0
  %1078 = vmatmul.mubr.bf16.gmra.mxu0 %v673
  %v1079 = vpop.f32.mrf.mxu0
  %v1080 = vadd.f32 %v896, %v1079
  %v1081 = vpop.f32.mrf.mxu0
  %v1082 = vpop.f32.mrf.mxu0
  %v1083 = vadd.f32 %v899, %v1082
  %v1084 = vpop.f32.mrf.mxu0
  %1085 = vmatprep.mubr.bf16.mxu0 0
  %1086 = vmatmul.mubr.bf16.gmra.mxu0 %v674
  %v1087 = vpop.f32.mrf.mxu0
  %v1088 = vadd.f32 %v904, %v1087
  %v1089 = vpop.f32.mrf.mxu0
  %v1090 = vpop.f32.mrf.mxu0
  %v1091 = vpop.f32.mrf.mxu0
  %1092 = vdwg.mxu0
  %v1093 = vld [vmem:[#allocation2 + $0x10] sm:$0xff]
  %v1094 = vld [vmem:[#allocation2 + $0x18] sm:$0xff]
  %v1095 = vld [vmem:[#allocation2 + $0x20] sm:$0xff]
  %v1096 = vld [vmem:[#allocation2 + $0x28] sm:$0xff]
  %v1097 = vld [vmem:[#allocation2 + $0x30] sm:$0xff]
  %v1098 = vld [vmem:[#allocation2 + $0x48] sm:$0xff]
  %v1099 = vld [vmem:[#allocation2 + $0x50] sm:$0xff]
  %v1100 = vld [vmem:[#allocation2 + $0x58] sm:$0xff]
  %v1101 = vld [vmem:[#allocation2 + $0x60] sm:$0xff]
  %v1102 = vld [vmem:[#allocation2 + $0x68] sm:$0xff]
  %v1103 = vld [vmem:[#allocation2 + $0x80] sm:$0xff]
  %v1104 = vld [vmem:[#allocation2 + $0x88] sm:$0xff]
  %v1105 = vld [vmem:[#allocation2 + $0x90] sm:$0xff]
  %v1106 = vld [vmem:[#allocation2 + $0x98] sm:$0xff]
  %v1107 = vld [vmem:[#allocation2 + $0xa0] sm:$0xff]
  %v1108 = vld [vmem:[#allocation2 + $0xb8] sm:$0xff]
  %v1109 = vld [vmem:[#allocation2 + $0xc0] sm:$0xff]
  %v1110 = vld [vmem:[#allocation2 + $0xc8] sm:$0xff]
  %v1111 = vld [vmem:[#allocation2 + $0xd0] sm:$0xff]
  %v1112 = vld [vmem:[#allocation2 + $0xd8] sm:$0xff]
  %v1113 = vld [vmem:[#allocation2 + $0xf0] sm:$0xff]
  %v1114 = vld [vmem:[#allocation2 + $0xf8] sm:$0xff]
  %v1115 = vld [vmem:[#allocation2 + $0x100] sm:$0xff]
  %v1116 = vld [vmem:[#allocation2 + $0x108] sm:$0xff]
  %v1117 = vld [vmem:[#allocation2 + $0x110] sm:$0xff]
  %v1118 = vpack.c.bf16 %v1094, %v1093
  %v1119 = vpack.c.bf16 %v1096, %v1095
  %v1120 = vpack.c.bf16 %v1098, %v1097
  %v1121 = vpack.c.bf16 %v1100, %v1099
  %v1122 = vpack.c.bf16 %v1102, %v1101
  %v1123 = vpack.c.bf16 %v1104, %v1103
  %v1124 = vpack.c.bf16 %v1106, %v1105
  %v1125 = vpack.c.bf16 %v1108, %v1107
  %v1126 = vpack.c.bf16 %v1110, %v1109
  %v1127 = vpack.c.bf16 %v1112, %v1111
  %v1128 = vpack.c.bf16 %v1114, %v1113
  %v1129 = vpack.c.bf16 %v1116, %v1115
  %v1130 = vpack.c.bf16 %v1117, %v1117
  %v1131 = vld [vmem:[%s3 + $0x80] sm:$0xf]
  %v1132 = vld [vmem:[%s3 + $0x84] sm:$0xf]
  %v1133 = vld [vmem:[%s3 + $0x88] sm:$0xf]
  %v1134 = vld [vmem:[%s3 + $0x8c] sm:$0xf]
  %v1135 = vld [vmem:[%s3 + $0x90] sm:$0xf]
  %v1136 = vld [vmem:[%s3 + $0x94] sm:$0xf]
  %v1137 = vld [vmem:[%s3 + $0x98] sm:$0xf]
  %v1138 = vld [vmem:[%s3 + $0x9c] sm:$0xf]
  %v1139 = vld [vmem:[%s3 + $0xa0] sm:$0xf]
  %v1140 = vld [vmem:[%s3 + $0xa4] sm:$0xf]
  %v1141 = vld [vmem:[%s3 + $0xa8] sm:$0xf]
  %v1142 = vld [vmem:[%s3 + $0xac] sm:$0xf]
  %v1143 = vld [vmem:[%s3 + $0xb0] sm:$0xf]
  %v1144 = vld [vmem:[%s3 + $0xb4] sm:$0xf]
  %v1145 = vld [vmem:[%s3 + $0xb8] sm:$0xf]
  %v1146 = vld [vmem:[%s3 + $0xbc] sm:$0xf]
  %v1163 = vunpack.c.l.b16 %v1131
  %v1164 = vunpack.c.l.b16 %v1132
  %v1165 = vunpack.c.l.b16 %v1133
  %v1166 = vunpack.c.l.b16 %v1134
  %v1167 = vunpack.c.l.b16 %v1135
  %v1168 = vunpack.c.l.b16 %v1136
  %v1169 = vunpack.c.l.b16 %v1137
  %v1170 = vunpack.c.l.b16 %v1138
  %v1171 = vunpack.c.l.b16 %v1139
  %v1172 = vunpack.c.l.b16 %v1140
  %v1173 = vunpack.c.l.b16 %v1141
  %v1174 = vunpack.c.l.b16 %v1142
  %v1175 = vunpack.c.l.b16 %v1143
  %v1176 = vunpack.c.l.b16 %v1144
  %v1177 = vunpack.c.l.b16 %v1145
  %v1178 = vunpack.c.l.b16 %v1146
  %v1179 = vpack.c.b16 %v1164, %v1163
  %v1180 = vpack.c.b16 %v1166, %v1165
  %v1181 = vpack.c.b16 %v1168, %v1167
  %v1182 = vpack.c.b16 %v1170, %v1169
  %v1183 = vpack.c.b16 %v1172, %v1171
  %v1184 = vpack.c.b16 %v1174, %v1173
  %v1185 = vpack.c.b16 %v1176, %v1175
  %v1186 = vpack.c.b16 %v1178, %v1177
  %1195 = vmatprep.subr.bf16.mxu0 0
  %1196 = vmatpush1.bf16.msra.mxu0 %v1186
  %1197 = vmatprep.subr.bf16.mxu0 0
  %1198 = vmatpush1.bf16.msra.mxu0 %v1185
  %1199 = vmatprep.subr.bf16.mxu0 0
  %1200 = vmatpush1.bf16.msra.mxu0 %v1184
  %1201 = vmatprep.subr.bf16.mxu0 0
  %1202 = vmatpush1.bf16.msra.mxu0 %v1183
  %1203 = vmatprep.subr.bf16.mxu0 0
  %1204 = vmatpush1.bf16.msra.mxu0 %v1182
  %1205 = vmatprep.subr.bf16.mxu0 0
  %1206 = vmatpush1.bf16.msra.mxu0 %v1181
  %1207 = vmatprep.subr.bf16.mxu0 0
  %1208 = vmatpush1.bf16.msra.mxu0 %v1180
  %1209 = vmatprep.subr.bf16.mxu0 0
  %1210 = vmatpush1.bf16.msra.mxu0 %v1179
  %1211 = vmatprep.subr.bf16.mxu0 0
  %1212 = vmatpush2.bf16.msra.mxu0 0
  %1213 = vmatprep.subr.bf16.mxu0 0
  %1214 = vmatpush2.bf16.msra.mxu0 0
  %1215 = vmatprep.subr.bf16.mxu0 0
  %1216 = vmatpush2.bf16.msra.mxu0 0
  %1217 = vmatprep.subr.bf16.mxu0 0
  %1218 = vmatpush2.bf16.msra.mxu0 0
  %1219 = vmatprep.subr.bf16.mxu0 0
  %1220 = vmatpush2.bf16.msra.mxu0 0
  %1221 = vmatprep.subr.bf16.mxu0 0
  %1222 = vmatpush2.bf16.msra.mxu0 0
  %1223 = vmatprep.subr.bf16.mxu0 0
  %1224 = vmatpush2.bf16.msra.mxu0 0
  %1225 = vmatprep.subr.bf16.mxu0 0
  %1226 = vmatpush2.bf16.msra.mxu0 0
  %1227 = vmatprep.mubr.bf16.mxu0 0
  %1228 = vmatmul.mubr.bf16.gmra.mxu0 %v1118
  %v1229 = vpop.f32.mrf.mxu0
  %v1230 = vadd.f32 0.0, %v1229
  %v1231 = vpop.f32.mrf.mxu0
  %v1232 = vpop.f32.mrf.mxu0
  %v1233 = vadd.f32 0.0, %v1232
  %v1234 = vpop.f32.mrf.mxu0
  %1235 = vmatprep.mubr.bf16.mxu0 0
  %1236 = vmatmul.mubr.bf16.gmra.mxu0 %v1119
  %v1237 = vpop.f32.mrf.mxu0
  %v1238 = vadd.f32 0.0, %v1237
  %v1239 = vpop.f32.mrf.mxu0
  %v1240 = vpop.f32.mrf.mxu0
  %v1241 = vadd.f32 0.0, %v1240
  %v1242 = vpop.f32.mrf.mxu0
  %1243 = vmatprep.mubr.bf16.mxu0 0
  %1244 = vmatmul.mubr.bf16.gmra.mxu0 %v1120
  %v1245 = vpop.f32.mrf.mxu0
  %v1246 = vadd.f32 0.0, %v1245
  %v1247 = vpop.f32.mrf.mxu0
  %v1248 = vpop.f32.mrf.mxu0
  %v1249 = vadd.f32 0.0, %v1248
  %v1250 = vpop.f32.mrf.mxu0
  %1251 = vmatprep.mubr.bf16.mxu0 0
  %1252 = vmatmul.mubr.bf16.gmra.mxu0 %v1121
  %v1253 = vpop.f32.mrf.mxu0
  %v1254 = vadd.f32 0.0, %v1253
  %v1255 = vpop.f32.mrf.mxu0
  %v1256 = vpop.f32.mrf.mxu0
  %v1257 = vadd.f32 0.0, %v1256
  %v1258 = vpop.f32.mrf.mxu0
  %1259 = vmatprep.mubr.bf16.mxu0 0
  %1260 = vmatmul.mubr.bf16.gmra.mxu0 %v1122
  %v1261 = vpop.f32.mrf.mxu0
  %v1262 = vadd.f32 0.0, %v1261
  %v1263 = vpop.f32.mrf.mxu0
  %v1264 = vpop.f32.mrf.mxu0
  %v1265 = vadd.f32 0.0, %v1264
  %v1266 = vpop.f32.mrf.mxu0
  %1267 = vmatprep.mubr.bf16.mxu0 0
  %1268 = vmatmul.mubr.bf16.gmra.mxu0 %v1123
  %v1269 = vpop.f32.mrf.mxu0
  %v1270 = vadd.f32 0.0, %v1269
  %v1271 = vpop.f32.mrf.mxu0
  %v1272 = vpop.f32.mrf.mxu0
  %v1273 = vadd.f32 0.0, %v1272
  %v1274 = vpop.f32.mrf.mxu0
  %1275 = vmatprep.mubr.bf16.mxu0 0
  %1276 = vmatmul.mubr.bf16.gmra.mxu0 %v1124
  %v1277 = vpop.f32.mrf.mxu0
  %v1278 = vadd.f32 0.0, %v1277
  %v1279 = vpop.f32.mrf.mxu0
  %v1280 = vpop.f32.mrf.mxu0
  %v1281 = vadd.f32 0.0, %v1280
  %v1282 = vpop.f32.mrf.mxu0
  %1283 = vmatprep.mubr.bf16.mxu0 0
  %1284 = vmatmul.mubr.bf16.gmra.mxu0 %v1125
  %v1285 = vpop.f32.mrf.mxu0
  %v1286 = vadd.f32 0.0, %v1285
  %v1287 = vpop.f32.mrf.mxu0
  %v1288 = vpop.f32.mrf.mxu0
  %v1289 = vadd.f32 0.0, %v1288
  %v1290 = vpop.f32.mrf.mxu0
  %1291 = vmatprep.mubr.bf16.mxu0 0
  %1292 = vmatmul.mubr.bf16.gmra.mxu0 %v1126
  %v1293 = vpop.f32.mrf.mxu0
  %v1294 = vadd.f32 0.0, %v1293
  %v1295 = vpop.f32.mrf.mxu0
  %v1296 = vpop.f32.mrf.mxu0
  %v1297 = vadd.f32 0.0, %v1296
  %v1298 = vpop.f32.mrf.mxu0
  %1299 = vmatprep.mubr.bf16.mxu0 0
  %1300 = vmatmul.mubr.bf16.gmra.mxu0 %v1127
  %v1301 = vpop.f32.mrf.mxu0
  %v1302 = vadd.f32 0.0, %v1301
  %v1303 = vpop.f32.mrf.mxu0
  %v1304 = vpop.f32.mrf.mxu0
  %v1305 = vadd.f32 0.0, %v1304
  %v1306 = vpop.f32.mrf.mxu0
  %1307 = vmatprep.mubr.bf16.mxu0 0
  %1308 = vmatmul.mubr.bf16.gmra.mxu0 %v1128
  %v1309 = vpop.f32.mrf.mxu0
  %v1310 = vadd.f32 0.0, %v1309
  %v1311 = vpop.f32.mrf.mxu0
  %v1312 = vpop.f32.mrf.mxu0
  %v1313 = vadd.f32 0.0, %v1312
  %v1314 = vpop.f32.mrf.mxu0
  %1315 = vmatprep.mubr.bf16.mxu0 0
  %1316 = vmatmul.mubr.bf16.gmra.mxu0 %v1129
  %v1317 = vpop.f32.mrf.mxu0
  %v1318 = vadd.f32 0.0, %v1317
  %v1319 = vpop.f32.mrf.mxu0
  %v1320 = vpop.f32.mrf.mxu0
  %v1321 = vadd.f32 0.0, %v1320
  %v1322 = vpop.f32.mrf.mxu0
  %1323 = vmatprep.mubr.bf16.mxu0 0
  %1324 = vmatmul.mubr.bf16.gmra.mxu0 %v1130
  %v1325 = vpop.f32.mrf.mxu0
  %v1326 = vadd.f32 0.0, %v1325
  %v1327 = vpop.f32.mrf.mxu0
  %v1328 = vpop.f32.mrf.mxu0
  %v1329 = vpop.f32.mrf.mxu0
  %1330 = vdwg.mxu0
  %v1331 = vadd.f32 %v992, %v1230
  %v1332 = vadd.f32 %v995, %v1233
  %v1333 = vadd.f32 %v1000, %v1238
  %v1334 = vadd.f32 %v1003, %v1241
  %v1335 = vadd.f32 %v1008, %v1246
  %v1336 = vadd.f32 %v1011, %v1249
  %v1337 = vadd.f32 %v1016, %v1254
  %v1338 = vadd.f32 %v1019, %v1257
  %v1339 = vadd.f32 %v1024, %v1262
  %v1340 = vadd.f32 %v1027, %v1265
  %v1341 = vadd.f32 %v1032, %v1270
  %v1342 = vadd.f32 %v1035, %v1273
  %v1343 = vadd.f32 %v1040, %v1278
  %v1344 = vadd.f32 %v1043, %v1281
  %v1345 = vadd.f32 %v1048, %v1286
  %v1346 = vadd.f32 %v1051, %v1289
  %v1347 = vadd.f32 %v1056, %v1294
  %v1348 = vadd.f32 %v1059, %v1297
  %v1349 = vadd.f32 %v1064, %v1302
  %v1350 = vadd.f32 %v1067, %v1305
  %v1351 = vadd.f32 %v1072, %v1310
  %v1352 = vadd.f32 %v1075, %v1313
  %v1353 = vadd.f32 %v1080, %v1318
  %v1354 = vadd.f32 %v1083, %v1321
  %v1355 = vadd.f32 %v1088, %v1326
  %v1356 = vld [vmem:[#allocation2 + $0x118] sm:$0xff]
  %v1357 = vld [vmem:[#allocation2 + $0x120] sm:$0xff]
  %v1358 = vld [vmem:[#allocation2 + $0x128] sm:$0xff]
  %v1359 = vld [vmem:[#allocation2 + $0x130] sm:$0xff]
  %v1360 = vld [vmem:[#allocation2 + $0x138] sm:$0xff]
  %v1361 = vpack.c.bf16 %v643, %v642
  %v1362 = vpack.c.bf16 %v647, %v646
  %v1363 = vpack.c.bf16 %v653, %v652
  %v1364 = vpack.c.bf16 %v657, %v656
  %v1365 = vpack.c.bf16 %v1357, %v1356
  %v1366 = vpack.c.bf16 %v1359, %v1358
  %v1367 = vpack.c.bf16 %v1360, %v1360
  %v1368 = vld [vmem:[%s3 + $0xc0] sm:$0xf]
  %v1369 = vld [vmem:[%s3 + $0xc4] sm:$0xf]
  %v1370 = vld [vmem:[%s3 + $0xc8] sm:$0xf]
  %v1371 = vld [vmem:[%s3 + $0xcc] sm:$0xf]
  %v1372 = vld [vmem:[%s3 + $0xd0] sm:$0xf]
  %v1373 = vld [vmem:[%s3 + $0xd4] sm:$0xf]
  %v1374 = vld [vmem:[%s3 + $0xd8] sm:$0xf]
  %v1375 = vld [vmem:[%s3 + $0xdc] sm:$0xf]
  %v1376 = vld [vmem:[%s3 + $0xe0] sm:$0xf]
  %v1377 = vld [vmem:[%s3 + $0xe4] sm:$0xf]
  %v1378 = vld [vmem:[%s3 + $0xe8] sm:$0xf]
  %v1379 = vld [vmem:[%s3 + $0xec] sm:$0xf]
  %v1380 = vld [vmem:[%s3 + $0xf0] sm:$0xf]
  %v1381 = vld [vmem:[%s3 + $0xf4] sm:$0xf]
  %v1382 = vld [vmem:[%s3 + $0xf8] sm:$0xf]
  %v1383 = vld [vmem:[%s3 + $0xfc] sm:$0xf]
  %v1400 = vunpack.c.l.b16 %v1368
  %v1401 = vunpack.c.l.b16 %v1369
  %v1402 = vunpack.c.l.b16 %v1370
  %v1403 = vunpack.c.l.b16 %v1371
  %v1404 = vunpack.c.l.b16 %v1372
  %v1405 = vunpack.c.l.b16 %v1373
  %v1406 = vunpack.c.l.b16 %v1374
  %v1407 = vunpack.c.l.b16 %v1375
  %v1408 = vunpack.c.l.b16 %v1376
  %v1409 = vunpack.c.l.b16 %v1377
  %v1410 = vunpack.c.l.b16 %v1378
  %v1411 = vunpack.c.l.b16 %v1379
  %v1412 = vunpack.c.l.b16 %v1380
  %v1413 = vunpack.c.l.b16 %v1381
  %v1414 = vunpack.c.l.b16 %v1382
  %v1415 = vunpack.c.l.b16 %v1383
  %v1416 = vpack.c.b16 %v1401, %v1400
  %v1417 = vpack.c.b16 %v1403, %v1402
  %v1418 = vpack.c.b16 %v1405, %v1404
  %v1419 = vpack.c.b16 %v1407, %v1406
  %v1420 = vpack.c.b16 %v1409, %v1408
  %v1421 = vpack.c.b16 %v1411, %v1410
  %v1422 = vpack.c.b16 %v1413, %v1412
  %v1423 = vpack.c.b16 %v1415, %v1414
  %1432 = vmatprep.subr.bf16.mxu0 0
  %1433 = vmatpush1.bf16.msra.mxu0 %v1423
  %1434 = vmatprep.subr.bf16.mxu0 0
  %1435 = vmatpush1.bf16.msra.mxu0 %v1422
  %1436 = vmatprep.subr.bf16.mxu0 0
  %1437 = vmatpush1.bf16.msra.mxu0 %v1421
  %1438 = vmatprep.subr.bf16.mxu0 0
  %1439 = vmatpush1.bf16.msra.mxu0 %v1420
  %1440 = vmatprep.subr.bf16.mxu0 0
  %1441 = vmatpush1.bf16.msra.mxu0 %v1419
  %1442 = vmatprep.subr.bf16.mxu0 0
  %1443 = vmatpush1.bf16.msra.mxu0 %v1418
  %1444 = vmatprep.subr.bf16.mxu0 0
  %1445 = vmatpush1.bf16.msra.mxu0 %v1417
  %1446 = vmatprep.subr.bf16.mxu0 0
  %1447 = vmatpush1.bf16.msra.mxu0 %v1416
  %1448 = vmatprep.subr.bf16.mxu0 0
  %1449 = vmatpush2.bf16.msra.mxu0 0
  %1450 = vmatprep.subr.bf16.mxu0 0
  %1451 = vmatpush2.bf16.msra.mxu0 0
  %1452 = vmatprep.subr.bf16.mxu0 0
  %1453 = vmatpush2.bf16.msra.mxu0 0
  %1454 = vmatprep.subr.bf16.mxu0 0
  %1455 = vmatpush2.bf16.msra.mxu0 0
  %1456 = vmatprep.subr.bf16.mxu0 0
  %1457 = vmatpush2.bf16.msra.mxu0 0
  %1458 = vmatprep.subr.bf16.mxu0 0
  %1459 = vmatpush2.bf16.msra.mxu0 0
  %1460 = vmatprep.subr.bf16.mxu0 0
  %1461 = vmatpush2.bf16.msra.mxu0 0
  %1462 = vmatprep.subr.bf16.mxu0 0
  %1463 = vmatpush2.bf16.msra.mxu0 0
  %1464 = vmatprep.mubr.bf16.mxu0 0
  %1465 = vmatmul.mubr.bf16.gmra.mxu0 %v1361
  %v1466 = vpop.f32.mrf.mxu0
  %v1467 = vadd.f32 0.0, %v1466
  %v1468 = vpop.f32.mrf.mxu0
  %v1469 = vpop.f32.mrf.mxu0
  %v1470 = vadd.f32 0.0, %v1469
  %v1471 = vpop.f32.mrf.mxu0
  %1472 = vmatprep.mubr.bf16.mxu0 0
  %1473 = vmatmul.mubr.bf16.gmra.mxu0 %v699
  %v1474 = vpop.f32.mrf.mxu0
  %v1475 = vadd.f32 0.0, %v1474
  %v1476 = vpop.f32.mrf.mxu0
  %v1477 = vpop.f32.mrf.mxu0
  %v1478 = vadd.f32 0.0, %v1477
  %v1479 = vpop.f32.mrf.mxu0
  %1480 = vmatprep.mubr.bf16.mxu0 0
  %1481 = vmatmul.mubr.bf16.gmra.mxu0 %v1362
  %v1482 = vpop.f32.mrf.mxu0
  %v1483 = vadd.f32 0.0, %v1482
  %v1484 = vpop.f32.mrf.mxu0
  %v1485 = vpop.f32.mrf.mxu0
  %v1486 = vadd.f32 0.0, %v1485
  %v1487 = vpop.f32.mrf.mxu0
  %1488 = vmatprep.mubr.bf16.mxu0 0
  %1489 = vmatmul.mubr.bf16.gmra.mxu0 %v701
  %v1490 = vpop.f32.mrf.mxu0
  %v1491 = vadd.f32 0.0, %v1490
  %v1492 = vpop.f32.mrf.mxu0
  %v1493 = vpop.f32.mrf.mxu0
  %v1494 = vadd.f32 0.0, %v1493
  %v1495 = vpop.f32.mrf.mxu0
  %1496 = vmatprep.mubr.bf16.mxu0 0
  %1497 = vmatmul.mubr.bf16.gmra.mxu0 %v702
  %v1498 = vpop.f32.mrf.mxu0
  %v1499 = vadd.f32 0.0, %v1498
  %v1500 = vpop.f32.mrf.mxu0
  %v1501 = vpop.f32.mrf.mxu0
  %v1502 = vadd.f32 0.0, %v1501
  %v1503 = vpop.f32.mrf.mxu0
  %1504 = vmatprep.mubr.bf16.mxu0 0
  %1505 = vmatmul.mubr.bf16.gmra.mxu0 %v1363
  %v1506 = vpop.f32.mrf.mxu0
  %v1507 = vadd.f32 0.0, %v1506
  %v1508 = vpop.f32.mrf.mxu0
  %v1509 = vpop.f32.mrf.mxu0
  %v1510 = vadd.f32 0.0, %v1509
  %v1511 = vpop.f32.mrf.mxu0
  %1512 = vmatprep.mubr.bf16.mxu0 0
  %1513 = vmatmul.mubr.bf16.gmra.mxu0 %v704
  %v1514 = vpop.f32.mrf.mxu0
  %v1515 = vadd.f32 0.0, %v1514
  %v1516 = vpop.f32.mrf.mxu0
  %v1517 = vpop.f32.mrf.mxu0
  %v1518 = vadd.f32 0.0, %v1517
  %v1519 = vpop.f32.mrf.mxu0
  %1520 = vmatprep.mubr.bf16.mxu0 0
  %1521 = vmatmul.mubr.bf16.gmra.mxu0 %v1364
  %v1522 = vpop.f32.mrf.mxu0
  %v1523 = vadd.f32 0.0, %v1522
  %v1524 = vpop.f32.mrf.mxu0
  %v1525 = vpop.f32.mrf.mxu0
  %v1526 = vadd.f32 0.0, %v1525
  %v1527 = vpop.f32.mrf.mxu0
  %1528 = vmatprep.mubr.bf16.mxu0 0
  %1529 = vmatmul.mubr.bf16.gmra.mxu0 %v706
  %v1530 = vpop.f32.mrf.mxu0
  %v1531 = vadd.f32 0.0, %v1530
  %v1532 = vpop.f32.mrf.mxu0
  %v1533 = vpop.f32.mrf.mxu0
  %v1534 = vadd.f32 0.0, %v1533
  %v1535 = vpop.f32.mrf.mxu0
  %1536 = vmatprep.mubr.bf16.mxu0 0
  %1537 = vmatmul.mubr.bf16.gmra.mxu0 %v707
  %v1538 = vpop.f32.mrf.mxu0
  %v1539 = vadd.f32 0.0, %v1538
  %v1540 = vpop.f32.mrf.mxu0
  %v1541 = vpop.f32.mrf.mxu0
  %v1542 = vadd.f32 0.0, %v1541
  %v1543 = vpop.f32.mrf.mxu0
  %1544 = vmatprep.mubr.bf16.mxu0 0
  %1545 = vmatmul.mubr.bf16.gmra.mxu0 %v1365
  %v1546 = vpop.f32.mrf.mxu0
  %v1547 = vadd.f32 0.0, %v1546
  %v1548 = vpop.f32.mrf.mxu0
  %v1549 = vpop.f32.mrf.mxu0
  %v1550 = vadd.f32 0.0, %v1549
  %v1551 = vpop.f32.mrf.mxu0
  %1552 = vmatprep.mubr.bf16.mxu0 0
  %1553 = vmatmul.mubr.bf16.gmra.mxu0 %v1366
  %v1554 = vpop.f32.mrf.mxu0
  %v1555 = vadd.f32 0.0, %v1554
  %v1556 = vpop.f32.mrf.mxu0
  %v1557 = vpop.f32.mrf.mxu0
  %v1558 = vadd.f32 0.0, %v1557
  %v1559 = vpop.f32.mrf.mxu0
  %1560 = vmatprep.mubr.bf16.mxu0 0
  %1561 = vmatmul.mubr.bf16.gmra.mxu0 %v1367
  %v1562 = vpop.f32.mrf.mxu0
  %v1563 = vadd.f32 0.0, %v1562
  %v1564 = vpop.f32.mrf.mxu0
  %v1565 = vpop.f32.mrf.mxu0
  %v1566 = vpop.f32.mrf.mxu0
  %1567 = vdwg.mxu0
  %v1568 = vadd.f32 %v1331, %v1467
  %v1569 = vadd.f32 %v1332, %v1470
  %v1570 = vadd.f32 %v1333, %v1475
  %v1571 = vadd.f32 %v1334, %v1478
  %v1572 = vadd.f32 %v1335, %v1483
  %v1573 = vadd.f32 %v1336, %v1486
  %v1574 = vadd.f32 %v1337, %v1491
  %v1575 = vadd.f32 %v1338, %v1494
  %v1576 = vadd.f32 %v1339, %v1499
  %v1577 = vadd.f32 %v1340, %v1502
  %v1578 = vadd.f32 %v1341, %v1507
  %v1579 = vadd.f32 %v1342, %v1510
  %v1580 = vadd.f32 %v1343, %v1515
  %v1581 = vadd.f32 %v1344, %v1518
  %v1582 = vadd.f32 %v1345, %v1523
  %v1583 = vadd.f32 %v1346, %v1526
  %v1584 = vadd.f32 %v1347, %v1531
  %v1585 = vadd.f32 %v1348, %v1534
  %v1586 = vadd.f32 %v1349, %v1539
  %v1587 = vadd.f32 %v1350, %v1542
  %v1588 = vadd.f32 %v1351, %v1547
  %v1589 = vadd.f32 %v1352, %v1550
  %v1590 = vadd.f32 %v1353, %v1555
  %v1591 = vadd.f32 %v1354, %v1558
  %v1592 = vadd.f32 %v1355, %v1563
  %v1593 = vld [vmem:[#allocation2 + $0x120] sm:$0xff]
  %v1594 = vld [vmem:[#allocation2 + $0x128] sm:$0xff]
  %v1595 = vld [vmem:[#allocation2 + $0x130] sm:$0xff]
  %v1596 = vld [vmem:[#allocation2 + $0x138] sm:$0xff]
  %v1597 = vld [vmem:[#allocation2 + $0x140] sm:$0xff]
  %v1598 = vpack.c.bf16 %v648, %v692
  %v1599 = vpack.c.bf16 %v693, %v651
  %v1600 = vpack.c.bf16 %v658, %v694
  %v1601 = vpack.c.bf16 %v695, %v661
  %v1602 = vpack.c.bf16 %v1594, %v1593
  %v1603 = vpack.c.bf16 %v1596, %v1595
  %v1604 = vpack.c.bf16 %v1597, %v1597
  %v1605 = vld [vmem:[%s3 + $0x100] sm:$0xf]
  %v1606 = vld [vmem:[%s3 + $0x104] sm:$0xf]
  %v1607 = vld [vmem:[%s3 + $0x108] sm:$0xf]
  %v1608 = vld [vmem:[%s3 + $0x10c] sm:$0xf]
  %v1609 = vld [vmem:[%s3 + $0x110] sm:$0xf]
  %v1610 = vld [vmem:[%s3 + $0x114] sm:$0xf]
  %v1611 = vld [vmem:[%s3 + $0x118] sm:$0xf]
  %v1612 = vld [vmem:[%s3 + $0x11c] sm:$0xf]
  %v1613 = vld [vmem:[%s3 + $0x120] sm:$0xf]
  %v1614 = vld [vmem:[%s3 + $0x124] sm:$0xf]
  %v1615 = vld [vmem:[%s3 + $0x128] sm:$0xf]
  %v1616 = vld [vmem:[%s3 + $0x12c] sm:$0xf]
  %v1617 = vld [vmem:[%s3 + $0x130] sm:$0xf]
  %v1618 = vld [vmem:[%s3 + $0x134] sm:$0xf]
  %v1619 = vld [vmem:[%s3 + $0x138] sm:$0xf]
  %v1620 = vld [vmem:[%s3 + $0x13c] sm:$0xf]
  %v1637 = vunpack.c.l.b16 %v1605
  %v1638 = vunpack.c.l.b16 %v1606
  %v1639 = vunpack.c.l.b16 %v1607
  %v1640 = vunpack.c.l.b16 %v1608
  %v1641 = vunpack.c.l.b16 %v1609
  %v1642 = vunpack.c.l.b16 %v1610
  %v1643 = vunpack.c.l.b16 %v1611
  %v1644 = vunpack.c.l.b16 %v1612
  %v1645 = vunpack.c.l.b16 %v1613
  %v1646 = vunpack.c.l.b16 %v1614
  %v1647 = vunpack.c.l.b16 %v1615
  %v1648 = vunpack.c.l.b16 %v1616
  %v1649 = vunpack.c.l.b16 %v1617
  %v1650 = vunpack.c.l.b16 %v1618
  %v1651 = vunpack.c.l.b16 %v1619
  %v1652 = vunpack.c.l.b16 %v1620
  %v1653 = vpack.c.b16 %v1638, %v1637
  %v1654 = vpack.c.b16 %v1640, %v1639
  %v1655 = vpack.c.b16 %v1642, %v1641
  %v1656 = vpack.c.b16 %v1644, %v1643
  %v1657 = vpack.c.b16 %v1646, %v1645
  %v1658 = vpack.c.b16 %v1648, %v1647
  %v1659 = vpack.c.b16 %v1650, %v1649
  %v1660 = vpack.c.b16 %v1652, %v1651
  %1669 = vmatprep.subr.bf16.mxu0 0
  %1670 = vmatpush1.bf16.msra.mxu0 %v1660
  %1671 = vmatprep.subr.bf16.mxu0 0
  %1672 = vmatpush1.bf16.msra.mxu0 %v1659
  %1673 = vmatprep.subr.bf16.mxu0 0
  %1674 = vmatpush1.bf16.msra.mxu0 %v1658
  %1675 = vmatprep.subr.bf16.mxu0 0
  %1676 = vmatpush1.bf16.msra.mxu0 %v1657
  %1677 = vmatprep.subr.bf16.mxu0 0
  %1678 = vmatpush1.bf16.msra.mxu0 %v1656
  %1679 = vmatprep.subr.bf16.mxu0 0
  %1680 = vmatpush1.bf16.msra.mxu0 %v1655
  %1681 = vmatprep.subr.bf16.mxu0 0
  %1682 = vmatpush1.bf16.msra.mxu0 %v1654
  %1683 = vmatprep.subr.bf16.mxu0 0
  %1684 = vmatpush1.bf16.msra.mxu0 %v1653
  %1685 = vmatprep.subr.bf16.mxu0 0
  %1686 = vmatpush2.bf16.msra.mxu0 0
  %1687 = vmatprep.subr.bf16.mxu0 0
  %1688 = vmatpush2.bf16.msra.mxu0 0
  %1689 = vmatprep.subr.bf16.mxu0 0
  %1690 = vmatpush2.bf16.msra.mxu0 0
  %1691 = vmatprep.subr.bf16.mxu0 0
  %1692 = vmatpush2.bf16.msra.mxu0 0
  %1693 = vmatprep.subr.bf16.mxu0 0
  %1694 = vmatpush2.bf16.msra.mxu0 0
  %1695 = vmatprep.subr.bf16.mxu0 0
  %1696 = vmatpush2.bf16.msra.mxu0 0
  %1697 = vmatprep.subr.bf16.mxu0 0
  %1698 = vmatpush2.bf16.msra.mxu0 0
  %1699 = vmatprep.subr.bf16.mxu0 0
  %1700 = vmatpush2.bf16.msra.mxu0 0
  %1701 = vmatprep.mubr.bf16.mxu0 0
  %1702 = vmatmul.mubr.bf16.gmra.mxu0 %v665
  %v1703 = vpop.f32.mrf.mxu0
  %v1704 = vadd.f32 0.0, %v1703
  %v1705 = vpop.f32.mrf.mxu0
  %v1706 = vpop.f32.mrf.mxu0
  %v1707 = vadd.f32 0.0, %v1706
  %v1708 = vpop.f32.mrf.mxu0
  %1709 = vmatprep.mubr.bf16.mxu0 0
  %1710 = vmatmul.mubr.bf16.gmra.mxu0 %v666
  %v1711 = vpop.f32.mrf.mxu0
  %v1712 = vadd.f32 0.0, %v1711
  %v1713 = vpop.f32.mrf.mxu0
  %v1714 = vpop.f32.mrf.mxu0
  %v1715 = vadd.f32 0.0, %v1714
  %v1716 = vpop.f32.mrf.mxu0
  %1717 = vmatprep.mubr.bf16.mxu0 0
  %1718 = vmatmul.mubr.bf16.gmra.mxu0 %v1598
  %v1719 = vpop.f32.mrf.mxu0
  %v1720 = vadd.f32 0.0, %v1719
  %v1721 = vpop.f32.mrf.mxu0
  %v1722 = vpop.f32.mrf.mxu0
  %v1723 = vadd.f32 0.0, %v1722
  %v1724 = vpop.f32.mrf.mxu0
  %1725 = vmatprep.mubr.bf16.mxu0 0
  %1726 = vmatmul.mubr.bf16.gmra.mxu0 %v668
  %v1727 = vpop.f32.mrf.mxu0
  %v1728 = vadd.f32 0.0, %v1727
  %v1729 = vpop.f32.mrf.mxu0
  %v1730 = vpop.f32.mrf.mxu0
  %v1731 = vadd.f32 0.0, %v1730
  %v1732 = vpop.f32.mrf.mxu0
  %1733 = vmatprep.mubr.bf16.mxu0 0
  %1734 = vmatmul.mubr.bf16.gmra.mxu0 %v1599
  %v1735 = vpop.f32.mrf.mxu0
  %v1736 = vadd.f32 0.0, %v1735
  %v1737 = vpop.f32.mrf.mxu0
  %v1738 = vpop.f32.mrf.mxu0
  %v1739 = vadd.f32 0.0, %v1738
  %v1740 = vpop.f32.mrf.mxu0
  %1741 = vmatprep.mubr.bf16.mxu0 0
  %1742 = vmatmul.mubr.bf16.gmra.mxu0 %v670
  %v1743 = vpop.f32.mrf.mxu0
  %v1744 = vadd.f32 0.0, %v1743
  %v1745 = vpop.f32.mrf.mxu0
  %v1746 = vpop.f32.mrf.mxu0
  %v1747 = vadd.f32 0.0, %v1746
  %v1748 = vpop.f32.mrf.mxu0
  %1749 = vmatprep.mubr.bf16.mxu0 0
  %1750 = vmatmul.mubr.bf16.gmra.mxu0 %v671
  %v1751 = vpop.f32.mrf.mxu0
  %v1752 = vadd.f32 0.0, %v1751
  %v1753 = vpop.f32.mrf.mxu0
  %v1754 = vpop.f32.mrf.mxu0
  %v1755 = vadd.f32 0.0, %v1754
  %v1756 = vpop.f32.mrf.mxu0
  %1757 = vmatprep.mubr.bf16.mxu0 0
  %1758 = vmatmul.mubr.bf16.gmra.mxu0 %v1600
  %v1759 = vpop.f32.mrf.mxu0
  %v1760 = vadd.f32 0.0, %v1759
  %v1761 = vpop.f32.mrf.mxu0
  %v1762 = vpop.f32.mrf.mxu0
  %v1763 = vadd.f32 0.0, %v1762
  %v1764 = vpop.f32.mrf.mxu0
  %1765 = vmatprep.mubr.bf16.mxu0 0
  %1766 = vmatmul.mubr.bf16.gmra.mxu0 %v673
  %v1767 = vpop.f32.mrf.mxu0
  %v1768 = vadd.f32 0.0, %v1767
  %v1769 = vpop.f32.mrf.mxu0
  %v1770 = vpop.f32.mrf.mxu0
  %v1771 = vadd.f32 0.0, %v1770
  %v1772 = vpop.f32.mrf.mxu0
  %1773 = vmatprep.mubr.bf16.mxu0 0
  %1774 = vmatmul.mubr.bf16.gmra.mxu0 %v1601
  %v1775 = vpop.f32.mrf.mxu0
  %v1776 = vadd.f32 0.0, %v1775
  %v1777 = vpop.f32.mrf.mxu0
  %v1778 = vpop.f32.mrf.mxu0
  %v1779 = vadd.f32 0.0, %v1778
  %v1780 = vpop.f32.mrf.mxu0
  %1781 = vmatprep.mubr.bf16.mxu0 0
  %1782 = vmatmul.mubr.bf16.gmra.mxu0 %v1602
  %v1783 = vpop.f32.mrf.mxu0
  %v1784 = vadd.f32 0.0, %v1783
  %v1785 = vpop.f32.mrf.mxu0
  %v1786 = vpop.f32.mrf.mxu0
  %v1787 = vadd.f32 0.0, %v1786
  %v1788 = vpop.f32.mrf.mxu0
  %1789 = vmatprep.mubr.bf16.mxu0 0
  %1790 = vmatmul.mubr.bf16.gmra.mxu0 %v1603
  %v1791 = vpop.f32.mrf.mxu0
  %v1792 = vadd.f32 0.0, %v1791
  %v1793 = vpop.f32.mrf.mxu0
  %v1794 = vpop.f32.mrf.mxu0
  %v1795 = vadd.f32 0.0, %v1794
  %v1796 = vpop.f32.mrf.mxu0
  %1797 = vmatprep.mubr.bf16.mxu0 0
  %1798 = vmatmul.mubr.bf16.gmra.mxu0 %v1604
  %v1799 = vpop.f32.mrf.mxu0
  %v1800 = vadd.f32 0.0, %v1799
  %v1801 = vpop.f32.mrf.mxu0
  %v1802 = vpop.f32.mrf.mxu0
  %v1803 = vpop.f32.mrf.mxu0
  %1804 = vdwg.mxu0
  %v1805 = vadd.f32 %v1568, %v1704
  %v1806 = vadd.f32 %v1569, %v1707
  %v1807 = vadd.f32 %v1570, %v1712
  %v1808 = vadd.f32 %v1571, %v1715
  %v1809 = vadd.f32 %v1572, %v1720
  %v1810 = vadd.f32 %v1573, %v1723
  %v1811 = vadd.f32 %v1574, %v1728
  %v1812 = vadd.f32 %v1575, %v1731
  %v1813 = vadd.f32 %v1576, %v1736
  %v1814 = vadd.f32 %v1577, %v1739
  %v1815 = vadd.f32 %v1578, %v1744
  %v1816 = vadd.f32 %v1579, %v1747
  %v1817 = vadd.f32 %v1580, %v1752
  %v1818 = vadd.f32 %v1581, %v1755
  %v1819 = vadd.f32 %v1582, %v1760
  %v1820 = vadd.f32 %v1583, %v1763
  %v1821 = vadd.f32 %v1584, %v1768
  %v1822 = vadd.f32 %v1585, %v1771
  %v1823 = vadd.f32 %v1586, %v1776
  %v1824 = vadd.f32 %v1587, %v1779
  %v1825 = vadd.f32 %v1588, %v1784
  %v1826 = vadd.f32 %v1589, %v1787
  %v1827 = vadd.f32 %v1590, %v1792
  %v1828 = vadd.f32 %v1591, %v1795
  %v1829 = vadd.f32 %v1592, %v1800
  %v1830 = vld [vmem:[#allocation2 + $0x128] sm:$0xff]
  %v1831 = vld [vmem:[#allocation2 + $0x130] sm:$0xff]
  %v1832 = vld [vmem:[#allocation2 + $0x138] sm:$0xff]
  %v1833 = vld [vmem:[#allocation2 + $0x140] sm:$0xff]
  %v1834 = vld [vmem:[#allocation2 + $0x148] sm:$0xff]
  %v1835 = vpack.c.bf16 %v1099, %v1098
  %v1836 = vpack.c.bf16 %v1101, %v1100
  %v1837 = vpack.c.bf16 %v1103, %v1102
  %v1838 = vpack.c.bf16 %v1105, %v1104
  %v1839 = vpack.c.bf16 %v1107, %v1106
  %v1840 = vpack.c.bf16 %v1109, %v1108
  %v1841 = vpack.c.bf16 %v1111, %v1110
  %v1842 = vpack.c.bf16 %v1113, %v1112
  %v1843 = vpack.c.bf16 %v1115, %v1114
  %v1844 = vpack.c.bf16 %v1117, %v1116
  %v1845 = vpack.c.bf16 %v1831, %v1830
  %v1846 = vpack.c.bf16 %v1833, %v1832
  %v1847 = vpack.c.bf16 %v1834, %v1834
  %v1848 = vld [vmem:[%s3 + $0x140] sm:$0xf]
  %v1849 = vld [vmem:[%s3 + $0x144] sm:$0xf]
  %v1850 = vld [vmem:[%s3 + $0x148] sm:$0xf]
  %v1851 = vld [vmem:[%s3 + $0x14c] sm:$0xf]
  %v1852 = vld [vmem:[%s3 + $0x150] sm:$0xf]
  %v1853 = vld [vmem:[%s3 + $0x154] sm:$0xf]
  %v1854 = vld [vmem:[%s3 + $0x158] sm:$0xf]
  %v1855 = vld [vmem:[%s3 + $0x15c] sm:$0xf]
  %v1856 = vld [vmem:[%s3 + $0x160] sm:$0xf]
  %v1857 = vld [vmem:[%s3 + $0x164] sm:$0xf]
  %v1858 = vld [vmem:[%s3 + $0x168] sm:$0xf]
  %v1859 = vld [vmem:[%s3 + $0x16c] sm:$0xf]
  %v1860 = vld [vmem:[%s3 + $0x170] sm:$0xf]
  %v1861 = vld [vmem:[%s3 + $0x174] sm:$0xf]
  %v1862 = vld [vmem:[%s3 + $0x178] sm:$0xf]
  %v1863 = vld [vmem:[%s3 + $0x17c] sm:$0xf]
  %v1880 = vunpack.c.l.b16 %v1848
  %v1881 = vunpack.c.l.b16 %v1849
  %v1882 = vunpack.c.l.b16 %v1850
  %v1883 = vunpack.c.l.b16 %v1851
  %v1884 = vunpack.c.l.b16 %v1852
  %v1885 = vunpack.c.l.b16 %v1853
  %v1886 = vunpack.c.l.b16 %v1854
  %v1887 = vunpack.c.l.b16 %v1855
  %v1888 = vunpack.c.l.b16 %v1856
  %v1889 = vunpack.c.l.b16 %v1857
  %v1890 = vunpack.c.l.b16 %v1858
  %v1891 = vunpack.c.l.b16 %v1859
  %v1892 = vunpack.c.l.b16 %v1860
  %v1893 = vunpack.c.l.b16 %v1861
  %v1894 = vunpack.c.l.b16 %v1862
  %v1895 = vunpack.c.l.b16 %v1863
  %v1896 = vpack.c.b16 %v1881, %v1880
  %v1897 = vpack.c.b16 %v1883, %v1882
  %v1898 = vpack.c.b16 %v1885, %v1884
  %v1899 = vpack.c.b16 %v1887, %v1886
  %v1900 = vpack.c.b16 %v1889, %v1888
  %v1901 = vpack.c.b16 %v1891, %v1890
  %v1902 = vpack.c.b16 %v1893, %v1892
  %v1903 = vpack.c.b16 %v1895, %v1894
  %1912 = vmatprep.subr.bf16.mxu0 0
  %1913 = vmatpush1.bf16.msra.mxu0 %v1903
  %1914 = vmatprep.subr.bf16.mxu0 0
  %1915 = vmatpush1.bf16.msra.mxu0 %v1902
  %1916 = vmatprep.subr.bf16.mxu0 0
  %1917 = vmatpush1.bf16.msra.mxu0 %v1901
  %1918 = vmatprep.subr.bf16.mxu0 0
  %1919 = vmatpush1.bf16.msra.mxu0 %v1900
  %1920 = vmatprep.subr.bf16.mxu0 0
  %1921 = vmatpush1.bf16.msra.mxu0 %v1899
  %1922 = vmatprep.subr.bf16.mxu0 0
  %1923 = vmatpush1.bf16.msra.mxu0 %v1898
  %1924 = vmatprep.subr.bf16.mxu0 0
  %1925 = vmatpush1.bf16.msra.mxu0 %v1897
  %1926 = vmatprep.subr.bf16.mxu0 0
  %1927 = vmatpush1.bf16.msra.mxu0 %v1896
  %1928 = vmatprep.subr.bf16.mxu0 0
  %1929 = vmatpush2.bf16.msra.mxu0 0
  %1930 = vmatprep.subr.bf16.mxu0 0
  %1931 = vmatpush2.bf16.msra.mxu0 0
  %1932 = vmatprep.subr.bf16.mxu0 0
  %1933 = vmatpush2.bf16.msra.mxu0 0
  %1934 = vmatprep.subr.bf16.mxu0 0
  %1935 = vmatpush2.bf16.msra.mxu0 0
  %1936 = vmatprep.subr.bf16.mxu0 0
  %1937 = vmatpush2.bf16.msra.mxu0 0
  %1938 = vmatprep.subr.bf16.mxu0 0
  %1939 = vmatpush2.bf16.msra.mxu0 0
  %1940 = vmatprep.subr.bf16.mxu0 0
  %1941 = vmatpush2.bf16.msra.mxu0 0
  %1942 = vmatprep.subr.bf16.mxu0 0
  %1943 = vmatpush2.bf16.msra.mxu0 0
  %1944 = vmatprep.mubr.bf16.mxu0 0
  %1945 = vmatmul.mubr.bf16.gmra.mxu0 %v1835
  %v1946 = vpop.f32.mrf.mxu0
  %v1947 = vadd.f32 0.0, %v1946
  %v1948 = vpop.f32.mrf.mxu0
  %v1949 = vpop.f32.mrf.mxu0
  %v1950 = vadd.f32 0.0, %v1949
  %v1951 = vpop.f32.mrf.mxu0
  %1952 = vmatprep.mubr.bf16.mxu0 0
  %1953 = vmatmul.mubr.bf16.gmra.mxu0 %v1836
  %v1954 = vpop.f32.mrf.mxu0
  %v1955 = vadd.f32 0.0, %v1954
  %v1956 = vpop.f32.mrf.mxu0
  %v1957 = vpop.f32.mrf.mxu0
  %v1958 = vadd.f32 0.0, %v1957
  %v1959 = vpop.f32.mrf.mxu0
  %1960 = vmatprep.mubr.bf16.mxu0 0
  %1961 = vmatmul.mubr.bf16.gmra.mxu0 %v1837
  %v1962 = vpop.f32.mrf.mxu0
  %v1963 = vadd.f32 0.0, %v1962
  %v1964 = vpop.f32.mrf.mxu0
  %v1965 = vpop.f32.mrf.mxu0
  %v1966 = vadd.f32 0.0, %v1965
  %v1967 = vpop.f32.mrf.mxu0
  %1968 = vmatprep.mubr.bf16.mxu0 0
  %1969 = vmatmul.mubr.bf16.gmra.mxu0 %v1838
  %v1970 = vpop.f32.mrf.mxu0
  %v1971 = vadd.f32 0.0, %v1970
  %v1972 = vpop.f32.mrf.mxu0
  %v1973 = vpop.f32.mrf.mxu0
  %v1974 = vadd.f32 0.0, %v1973
  %v1975 = vpop.f32.mrf.mxu0
  %1976 = vmatprep.mubr.bf16.mxu0 0
  %1977 = vmatmul.mubr.bf16.gmra.mxu0 %v1839
  %v1978 = vpop.f32.mrf.mxu0
  %v1979 = vadd.f32 0.0, %v1978
  %v1980 = vpop.f32.mrf.mxu0
  %v1981 = vpop.f32.mrf.mxu0
  %v1982 = vadd.f32 0.0, %v1981
  %v1983 = vpop.f32.mrf.mxu0
  %1984 = vmatprep.mubr.bf16.mxu0 0
  %1985 = vmatmul.mubr.bf16.gmra.mxu0 %v1840
  %v1986 = vpop.f32.mrf.mxu0
  %v1987 = vadd.f32 0.0, %v1986
  %v1988 = vpop.f32.mrf.mxu0
  %v1989 = vpop.f32.mrf.mxu0
  %v1990 = vadd.f32 0.0, %v1989
  %v1991 = vpop.f32.mrf.mxu0
  %1992 = vmatprep.mubr.bf16.mxu0 0
  %1993 = vmatmul.mubr.bf16.gmra.mxu0 %v1841
  %v1994 = vpop.f32.mrf.mxu0
  %v1995 = vadd.f32 0.0, %v1994
  %v1996 = vpop.f32.mrf.mxu0
  %v1997 = vpop.f32.mrf.mxu0
  %v1998 = vadd.f32 0.0, %v1997
  %v1999 = vpop.f32.mrf.mxu0
  %2000 = vmatprep.mubr.bf16.mxu0 0
  %2001 = vmatmul.mubr.bf16.gmra.mxu0 %v1842
  %v2002 = vpop.f32.mrf.mxu0
  %v2003 = vadd.f32 0.0, %v2002
  %v2004 = vpop.f32.mrf.mxu0
  %v2005 = vpop.f32.mrf.mxu0
  %v2006 = vadd.f32 0.0, %v2005
  %v2007 = vpop.f32.mrf.mxu0
  %2008 = vmatprep.mubr.bf16.mxu0 0
  %2009 = vmatmul.mubr.bf16.gmra.mxu0 %v1843
  %v2010 = vpop.f32.mrf.mxu0
  %v2011 = vadd.f32 0.0, %v2010
  %v2012 = vpop.f32.mrf.mxu0
  %v2013 = vpop.f32.mrf.mxu0
  %v2014 = vadd.f32 0.0, %v2013
  %v2015 = vpop.f32.mrf.mxu0
  %2016 = vmatprep.mubr.bf16.mxu0 0
  %2017 = vmatmul.mubr.bf16.gmra.mxu0 %v1844
  %v2018 = vpop.f32.mrf.mxu0
  %v2019 = vadd.f32 0.0, %v2018
  %v2020 = vpop.f32.mrf.mxu0
  %v2021 = vpop.f32.mrf.mxu0
  %v2022 = vadd.f32 0.0, %v2021
  %v2023 = vpop.f32.mrf.mxu0
  %2024 = vmatprep.mubr.bf16.mxu0 0
  %2025 = vmatmul.mubr.bf16.gmra.mxu0 %v1845
  %v2026 = vpop.f32.mrf.mxu0
  %v2027 = vadd.f32 0.0, %v2026
  %v2028 = vpop.f32.mrf.mxu0
  %v2029 = vpop.f32.mrf.mxu0
  %v2030 = vadd.f32 0.0, %v2029
  %v2031 = vpop.f32.mrf.mxu0
  %2032 = vmatprep.mubr.bf16.mxu0 0
  %2033 = vmatmul.mubr.bf16.gmra.mxu0 %v1846
  %v2034 = vpop.f32.mrf.mxu0
  %v2035 = vadd.f32 0.0, %v2034
  %v2036 = vpop.f32.mrf.mxu0
  %v2037 = vpop.f32.mrf.mxu0
  %v2038 = vadd.f32 0.0, %v2037
  %v2039 = vpop.f32.mrf.mxu0
  %2040 = vmatprep.mubr.bf16.mxu0 0
  %2041 = vmatmul.mubr.bf16.gmra.mxu0 %v1847
  %v2042 = vpop.f32.mrf.mxu0
  %v2043 = vadd.f32 0.0, %v2042
  %v2044 = vpop.f32.mrf.mxu0
  %v2045 = vpop.f32.mrf.mxu0
  %v2046 = vpop.f32.mrf.mxu0
  %2047 = vdwg.mxu0
  %v2048 = vadd.f32 %v1805, %v1947
  %v2049 = vadd.f32 %v1806, %v1950
  %v2050 = vadd.f32 %v1807, %v1955
  %v2051 = vadd.f32 %v1808, %v1958
  %v2052 = vadd.f32 %v1809, %v1963
  %v2053 = vadd.f32 %v1810, %v1966
  %v2054 = vadd.f32 %v1811, %v1971
  %v2055 = vadd.f32 %v1812, %v1974
  %v2056 = vadd.f32 %v1813, %v1979
  %v2057 = vadd.f32 %v1814, %v1982
  %v2058 = vadd.f32 %v1815, %v1987
  %v2059 = vadd.f32 %v1816, %v1990
  %v2060 = vadd.f32 %v1817, %v1995
  %v2061 = vadd.f32 %v1818, %v1998
  %v2062 = vadd.f32 %v1819, %v2003
  %v2063 = vadd.f32 %v1820, %v2006
  %v2064 = vadd.f32 %v1821, %v2011
  %v2065 = vadd.f32 %v1822, %v2014
  %v2066 = vadd.f32 %v1823, %v2019
  %v2067 = vadd.f32 %v1824, %v2022
  %v2068 = vadd.f32 %v1825, %v2027
  %v2069 = vadd.f32 %v1826, %v2030
  %v2070 = vadd.f32 %v1827, %v2035
  %v2071 = vadd.f32 %v1828, %v2038
  %v2072 = vadd.f32 %v1829, %v2043
  %v2073 = vld [vmem:[#allocation2 + $0x150] sm:$0xff]
  %v2074 = vld [vmem:[#allocation2 + $0x158] sm:$0xff]
  %v2075 = vld [vmem:[#allocation2 + $0x160] sm:$0xff]
  %v2076 = vld [vmem:[#allocation2 + $0x168] sm:$0xff]
  %v2077 = vld [vmem:[#allocation2 + $0x170] sm:$0xff]
  %v2078 = vpack.c.bf16 %v1356, %v661
  %v2079 = vpack.c.bf16 %v1358, %v1357
  %v2080 = vpack.c.bf16 %v1360, %v1359
  %v2081 = vpack.c.bf16 %v2074, %v2073
  %v2082 = vpack.c.bf16 %v2076, %v2075
  %v2083 = vpack.c.bf16 %v2077, %v2077
  %v2084 = vld [vmem:[%s3 + $0x180] sm:$0xf]
  %v2085 = vld [vmem:[%s3 + $0x184] sm:$0xf]
  %v2086 = vld [vmem:[%s3 + $0x188] sm:$0xf]
  %v2087 = vld [vmem:[%s3 + $0x18c] sm:$0xf]
  %v2088 = vld [vmem:[%s3 + $0x190] sm:$0xf]
  %v2089 = vld [vmem:[%s3 + $0x194] sm:$0xf]
  %v2090 = vld [vmem:[%s3 + $0x198] sm:$0xf]
  %v2091 = vld [vmem:[%s3 + $0x19c] sm:$0xf]
  %v2092 = vld [vmem:[%s3 + $0x1a0] sm:$0xf]
  %v2093 = vld [vmem:[%s3 + $0x1a4] sm:$0xf]
  %v2094 = vld [vmem:[%s3 + $0x1a8] sm:$0xf]
  %v2095 = vld [vmem:[%s3 + $0x1ac] sm:$0xf]
  %v2096 = vld [vmem:[%s3 + $0x1b0] sm:$0xf]
  %v2097 = vld [vmem:[%s3 + $0x1b4] sm:$0xf]
  %v2098 = vld [vmem:[%s3 + $0x1b8] sm:$0xf]
  %v2099 = vld [vmem:[%s3 + $0x1bc] sm:$0xf]
  %v2116 = vunpack.c.l.b16 %v2084
  %v2117 = vunpack.c.l.b16 %v2085
  %v2118 = vunpack.c.l.b16 %v2086
  %v2119 = vunpack.c.l.b16 %v2087
  %v2120 = vunpack.c.l.b16 %v2088
  %v2121 = vunpack.c.l.b16 %v2089
  %v2122 = vunpack.c.l.b16 %v2090
  %v2123 = vunpack.c.l.b16 %v2091
  %v2124 = vunpack.c.l.b16 %v2092
  %v2125 = vunpack.c.l.b16 %v2093
  %v2126 = vunpack.c.l.b16 %v2094
  %v2127 = vunpack.c.l.b16 %v2095
  %v2128 = vunpack.c.l.b16 %v2096
  %v2129 = vunpack.c.l.b16 %v2097
  %v2130 = vunpack.c.l.b16 %v2098
  %v2131 = vunpack.c.l.b16 %v2099
  %v2132 = vpack.c.b16 %v2117, %v2116
  %v2133 = vpack.c.b16 %v2119, %v2118
  %v2134 = vpack.c.b16 %v2121, %v2120
  %v2135 = vpack.c.b16 %v2123, %v2122
  %v2136 = vpack.c.b16 %v2125, %v2124
  %v2137 = vpack.c.b16 %v2127, %v2126
  %v2138 = vpack.c.b16 %v2129, %v2128
  %v2139 = vpack.c.b16 %v2131, %v2130
  %2148 = vmatprep.subr.bf16.mxu0 0
  %2149 = vmatpush1.bf16.msra.mxu0 %v2139
  %2150 = vmatprep.subr.bf16.mxu0 0
  %2151 = vmatpush1.bf16.msra.mxu0 %v2138
  %2152 = vmatprep.subr.bf16.mxu0 0
  %2153 = vmatpush1.bf16.msra.mxu0 %v2137
  %2154 = vmatprep.subr.bf16.mxu0 0
  %2155 = vmatpush1.bf16.msra.mxu0 %v2136
  %2156 = vmatprep.subr.bf16.mxu0 0
  %2157 = vmatpush1.bf16.msra.mxu0 %v2135
  %2158 = vmatprep.subr.bf16.mxu0 0
  %2159 = vmatpush1.bf16.msra.mxu0 %v2134
  %2160 = vmatprep.subr.bf16.mxu0 0
  %2161 = vmatpush1.bf16.msra.mxu0 %v2133
  %2162 = vmatprep.subr.bf16.mxu0 0
  %2163 = vmatpush1.bf16.msra.mxu0 %v2132
  %2164 = vmatprep.subr.bf16.mxu0 0
  %2165 = vmatpush2.bf16.msra.mxu0 0
  %2166 = vmatprep.subr.bf16.mxu0 0
  %2167 = vmatpush2.bf16.msra.mxu0 0
  %2168 = vmatprep.subr.bf16.mxu0 0
  %2169 = vmatpush2.bf16.msra.mxu0 0
  %2170 = vmatprep.subr.bf16.mxu0 0
  %2171 = vmatpush2.bf16.msra.mxu0 0
  %2172 = vmatprep.subr.bf16.mxu0 0
  %2173 = vmatpush2.bf16.msra.mxu0 0
  %2174 = vmatprep.subr.bf16.mxu0 0
  %2175 = vmatpush2.bf16.msra.mxu0 0
  %2176 = vmatprep.subr.bf16.mxu0 0
  %2177 = vmatpush2.bf16.msra.mxu0 0
  %2178 = vmatprep.subr.bf16.mxu0 0
  %2179 = vmatpush2.bf16.msra.mxu0 0
  %2180 = vmatprep.mubr.bf16.mxu0 0
  %2181 = vmatmul.mubr.bf16.gmra.mxu0 %v667
  %v2182 = vpop.f32.mrf.mxu0
  %v2183 = vadd.f32 0.0, %v2182
  %v2184 = vpop.f32.mrf.mxu0
  %v2185 = vpop.f32.mrf.mxu0
  %v2186 = vadd.f32 0.0, %v2185
  %v2187 = vpop.f32.mrf.mxu0
  %2188 = vmatprep.mubr.bf16.mxu0 0
  %2189 = vmatmul.mubr.bf16.gmra.mxu0 %v668
  %v2190 = vpop.f32.mrf.mxu0
  %v2191 = vadd.f32 0.0, %v2190
  %v2192 = vpop.f32.mrf.mxu0
  %v2193 = vpop.f32.mrf.mxu0
  %v2194 = vadd.f32 0.0, %v2193
  %v2195 = vpop.f32.mrf.mxu0
  %2196 = vmatprep.mubr.bf16.mxu0 0
  %2197 = vmatmul.mubr.bf16.gmra.mxu0 %v669
  %v2198 = vpop.f32.mrf.mxu0
  %v2199 = vadd.f32 0.0, %v2198
  %v2200 = vpop.f32.mrf.mxu0
  %v2201 = vpop.f32.mrf.mxu0
  %v2202 = vadd.f32 0.0, %v2201
  %v2203 = vpop.f32.mrf.mxu0
  %2204 = vmatprep.mubr.bf16.mxu0 0
  %2205 = vmatmul.mubr.bf16.gmra.mxu0 %v670
  %v2206 = vpop.f32.mrf.mxu0
  %v2207 = vadd.f32 0.0, %v2206
  %v2208 = vpop.f32.mrf.mxu0
  %v2209 = vpop.f32.mrf.mxu0
  %v2210 = vadd.f32 0.0, %v2209
  %v2211 = vpop.f32.mrf.mxu0
  %2212 = vmatprep.mubr.bf16.mxu0 0
  %2213 = vmatmul.mubr.bf16.gmra.mxu0 %v671
  %v2214 = vpop.f32.mrf.mxu0
  %v2215 = vadd.f32 0.0, %v2214
  %v2216 = vpop.f32.mrf.mxu0
  %v2217 = vpop.f32.mrf.mxu0
  %v2218 = vadd.f32 0.0, %v2217
  %v2219 = vpop.f32.mrf.mxu0
  %2220 = vmatprep.mubr.bf16.mxu0 0
  %2221 = vmatmul.mubr.bf16.gmra.mxu0 %v672
  %v2222 = vpop.f32.mrf.mxu0
  %v2223 = vadd.f32 0.0, %v2222
  %v2224 = vpop.f32.mrf.mxu0
  %v2225 = vpop.f32.mrf.mxu0
  %v2226 = vadd.f32 0.0, %v2225
  %v2227 = vpop.f32.mrf.mxu0
  %2228 = vmatprep.mubr.bf16.mxu0 0
  %2229 = vmatmul.mubr.bf16.gmra.mxu0 %v673
  %v2230 = vpop.f32.mrf.mxu0
  %v2231 = vadd.f32 0.0, %v2230
  %v2232 = vpop.f32.mrf.mxu0
  %v2233 = vpop.f32.mrf.mxu0
  %v2234 = vadd.f32 0.0, %v2233
  %v2235 = vpop.f32.mrf.mxu0
  %2236 = vmatprep.mubr.bf16.mxu0 0
  %2237 = vmatmul.mubr.bf16.gmra.mxu0 %v2078
  %v2238 = vpop.f32.mrf.mxu0
  %v2239 = vadd.f32 0.0, %v2238
  %v2240 = vpop.f32.mrf.mxu0
  %v2241 = vpop.f32.mrf.mxu0
  %v2242 = vadd.f32 0.0, %v2241
  %v2243 = vpop.f32.mrf.mxu0
  %2244 = vmatprep.mubr.bf16.mxu0 0
  %2245 = vmatmul.mubr.bf16.gmra.mxu0 %v2079
  %v2246 = vpop.f32.mrf.mxu0
  %v2247 = vadd.f32 0.0, %v2246
  %v2248 = vpop.f32.mrf.mxu0
  %v2249 = vpop.f32.mrf.mxu0
  %v2250 = vadd.f32 0.0, %v2249
  %v2251 = vpop.f32.mrf.mxu0
  %2252 = vmatprep.mubr.bf16.mxu0 0
  %2253 = vmatmul.mubr.bf16.gmra.mxu0 %v2080
  %v2254 = vpop.f32.mrf.mxu0
  %v2255 = vadd.f32 0.0, %v2254
  %v2256 = vpop.f32.mrf.mxu0
  %v2257 = vpop.f32.mrf.mxu0
  %v2258 = vadd.f32 0.0, %v2257
  %v2259 = vpop.f32.mrf.mxu0
  %2260 = vmatprep.mubr.bf16.mxu0 0
  %2261 = vmatmul.mubr.bf16.gmra.mxu0 %v2081
  %v2262 = vpop.f32.mrf.mxu0
  %v2263 = vadd.f32 0.0, %v2262
  %v2264 = vpop.f32.mrf.mxu0
  %v2265 = vpop.f32.mrf.mxu0
  %v2266 = vadd.f32 0.0, %v2265
  %v2267 = vpop.f32.mrf.mxu0
  %2268 = vmatprep.mubr.bf16.mxu0 0
  %2269 = vmatmul.mubr.bf16.gmra.mxu0 %v2082
  %v2270 = vpop.f32.mrf.mxu0
  %v2271 = vadd.f32 0.0, %v2270
  %v2272 = vpop.f32.mrf.mxu0
  %v2273 = vpop.f32.mrf.mxu0
  %v2274 = vadd.f32 0.0, %v2273
  %v2275 = vpop.f32.mrf.mxu0
  %2276 = vmatprep.mubr.bf16.mxu0 0
  %2277 = vmatmul.mubr.bf16.gmra.mxu0 %v2083
  %v2278 = vpop.f32.mrf.mxu0
  %v2279 = vadd.f32 0.0, %v2278
  %v2280 = vpop.f32.mrf.mxu0
  %v2281 = vpop.f32.mrf.mxu0
  %v2282 = vpop.f32.mrf.mxu0
  %2283 = vdwg.mxu0
  %v2284 = vadd.f32 %v2048, %v2183
  %v2285 = vadd.f32 %v2049, %v2186
  %v2286 = vadd.f32 %v2050, %v2191
  %v2287 = vadd.f32 %v2051, %v2194
  %v2288 = vadd.f32 %v2052, %v2199
  %v2289 = vadd.f32 %v2053, %v2202
  %v2290 = vadd.f32 %v2054, %v2207
  %v2291 = vadd.f32 %v2055, %v2210
  %v2292 = vadd.f32 %v2056, %v2215
  %v2293 = vadd.f32 %v2057, %v2218
  %v2294 = vadd.f32 %v2058, %v2223
  %v2295 = vadd.f32 %v2059, %v2226
  %v2296 = vadd.f32 %v2060, %v2231
  %v2297 = vadd.f32 %v2061, %v2234
  %v2298 = vadd.f32 %v2062, %v2239
  %v2299 = vadd.f32 %v2063, %v2242
  %v2300 = vadd.f32 %v2064, %v2247
  %v2301 = vadd.f32 %v2065, %v2250
  %v2302 = vadd.f32 %v2066, %v2255
  %v2303 = vadd.f32 %v2067, %v2258
  %v2304 = vadd.f32 %v2068, %v2263
  %v2305 = vadd.f32 %v2069, %v2266
  %v2306 = vadd.f32 %v2070, %v2271
  %v2307 = vadd.f32 %v2071, %v2274
  %v2308 = vadd.f32 %v2072, %v2279
  %v2309 = vld [vmem:[#allocation2 + $0x158] sm:$0xff]
  %v2310 = vld [vmem:[#allocation2 + $0x160] sm:$0xff]
  %v2311 = vld [vmem:[#allocation2 + $0x168] sm:$0xff]
  %v2312 = vld [vmem:[#allocation2 + $0x170] sm:$0xff]
  %v2313 = vld [vmem:[#allocation2 + $0x178] sm:$0xff]
  %v2314 = vpack.c.bf16 %v1593, %v695
  %v2315 = vpack.c.bf16 %v1595, %v1594
  %v2316 = vpack.c.bf16 %v1597, %v1596
  %v2317 = vpack.c.bf16 %v2310, %v2309
  %v2318 = vpack.c.bf16 %v2312, %v2311
  %v2319 = vpack.c.bf16 %v2313, %v2313
  %v2320 = vld [vmem:[%s3 + $0x1c0] sm:$0xf]
  %v2321 = vld [vmem:[%s3 + $0x1c4] sm:$0xf]
  %v2322 = vld [vmem:[%s3 + $0x1c8] sm:$0xf]
  %v2323 = vld [vmem:[%s3 + $0x1cc] sm:$0xf]
  %v2324 = vld [vmem:[%s3 + $0x1d0] sm:$0xf]
  %v2325 = vld [vmem:[%s3 + $0x1d4] sm:$0xf]
  %v2326 = vld [vmem:[%s3 + $0x1d8] sm:$0xf]
  %v2327 = vld [vmem:[%s3 + $0x1dc] sm:$0xf]
  %v2328 = vld [vmem:[%s3 + $0x1e0] sm:$0xf]
  %v2329 = vld [vmem:[%s3 + $0x1e4] sm:$0xf]
  %v2330 = vld [vmem:[%s3 + $0x1e8] sm:$0xf]
  %v2331 = vld [vmem:[%s3 + $0x1ec] sm:$0xf]
  %v2332 = vld [vmem:[%s3 + $0x1f0] sm:$0xf]
  %v2333 = vld [vmem:[%s3 + $0x1f4] sm:$0xf]
  %v2334 = vld [vmem:[%s3 + $0x1f8] sm:$0xf]
  %v2335 = vld [vmem:[%s3 + $0x1fc] sm:$0xf]
  %v2352 = vunpack.c.l.b16 %v2320
  %v2353 = vunpack.c.l.b16 %v2321
  %v2354 = vunpack.c.l.b16 %v2322
  %v2355 = vunpack.c.l.b16 %v2323
  %v2356 = vunpack.c.l.b16 %v2324
  %v2357 = vunpack.c.l.b16 %v2325
  %v2358 = vunpack.c.l.b16 %v2326
  %v2359 = vunpack.c.l.b16 %v2327
  %v2360 = vunpack.c.l.b16 %v2328
  %v2361 = vunpack.c.l.b16 %v2329
  %v2362 = vunpack.c.l.b16 %v2330
  %v2363 = vunpack.c.l.b16 %v2331
  %v2364 = vunpack.c.l.b16 %v2332
  %v2365 = vunpack.c.l.b16 %v2333
  %v2366 = vunpack.c.l.b16 %v2334
  %v2367 = vunpack.c.l.b16 %v2335
  %v2368 = vpack.c.b16 %v2353, %v2352
  %v2369 = vpack.c.b16 %v2355, %v2354
  %v2370 = vpack.c.b16 %v2357, %v2356
  %v2371 = vpack.c.b16 %v2359, %v2358
  %v2372 = vpack.c.b16 %v2361, %v2360
  %v2373 = vpack.c.b16 %v2363, %v2362
  %v2374 = vpack.c.b16 %v2365, %v2364
  %v2375 = vpack.c.b16 %v2367, %v2366
  %2384 = vmatprep.subr.bf16.mxu0 0
  %2385 = vmatpush1.bf16.msra.mxu0 %v2375
  %2386 = vmatprep.subr.bf16.mxu0 0
  %2387 = vmatpush1.bf16.msra.mxu0 %v2374
  %2388 = vmatprep.subr.bf16.mxu0 0
  %2389 = vmatpush1.bf16.msra.mxu0 %v2373
  %2390 = vmatprep.subr.bf16.mxu0 0
  %2391 = vmatpush1.bf16.msra.mxu0 %v2372
  %2392 = vmatprep.subr.bf16.mxu0 0
  %2393 = vmatpush1.bf16.msra.mxu0 %v2371
  %2394 = vmatprep.subr.bf16.mxu0 0
  %2395 = vmatpush1.bf16.msra.mxu0 %v2370
  %2396 = vmatprep.subr.bf16.mxu0 0
  %2397 = vmatpush1.bf16.msra.mxu0 %v2369
  %2398 = vmatprep.subr.bf16.mxu0 0
  %2399 = vmatpush1.bf16.msra.mxu0 %v2368
  %2400 = vmatprep.subr.bf16.mxu0 0
  %2401 = vmatpush2.bf16.msra.mxu0 0
  %2402 = vmatprep.subr.bf16.mxu0 0
  %2403 = vmatpush2.bf16.msra.mxu0 0
  %2404 = vmatprep.subr.bf16.mxu0 0
  %2405 = vmatpush2.bf16.msra.mxu0 0
  %2406 = vmatprep.subr.bf16.mxu0 0
  %2407 = vmatpush2.bf16.msra.mxu0 0
  %2408 = vmatprep.subr.bf16.mxu0 0
  %2409 = vmatpush2.bf16.msra.mxu0 0
  %2410 = vmatprep.subr.bf16.mxu0 0
  %2411 = vmatpush2.bf16.msra.mxu0 0
  %2412 = vmatprep.subr.bf16.mxu0 0
  %2413 = vmatpush2.bf16.msra.mxu0 0
  %2414 = vmatprep.subr.bf16.mxu0 0
  %2415 = vmatpush2.bf16.msra.mxu0 0
  %2416 = vmatprep.mubr.bf16.mxu0 0
  %2417 = vmatmul.mubr.bf16.gmra.mxu0 %v701
  %v2418 = vpop.f32.mrf.mxu0
  %v2419 = vadd.f32 0.0, %v2418
  %v2420 = vpop.f32.mrf.mxu0
  %v2421 = vpop.f32.mrf.mxu0
  %v2422 = vadd.f32 0.0, %v2421
  %v2423 = vpop.f32.mrf.mxu0
  %2424 = vmatprep.mubr.bf16.mxu0 0
  %2425 = vmatmul.mubr.bf16.gmra.mxu0 %v702
  %v2426 = vpop.f32.mrf.mxu0
  %v2427 = vadd.f32 0.0, %v2426
  %v2428 = vpop.f32.mrf.mxu0
  %v2429 = vpop.f32.mrf.mxu0
  %v2430 = vadd.f32 0.0, %v2429
  %v2431 = vpop.f32.mrf.mxu0
  %2432 = vmatprep.mubr.bf16.mxu0 0
  %2433 = vmatmul.mubr.bf16.gmra.mxu0 %v703
  %v2434 = vpop.f32.mrf.mxu0
  %v2435 = vadd.f32 0.0, %v2434
  %v2436 = vpop.f32.mrf.mxu0
  %v2437 = vpop.f32.mrf.mxu0
  %v2438 = vadd.f32 0.0, %v2437
  %v2439 = vpop.f32.mrf.mxu0
  %2440 = vmatprep.mubr.bf16.mxu0 0
  %2441 = vmatmul.mubr.bf16.gmra.mxu0 %v704
  %v2442 = vpop.f32.mrf.mxu0
  %v2443 = vadd.f32 0.0, %v2442
  %v2444 = vpop.f32.mrf.mxu0
  %v2445 = vpop.f32.mrf.mxu0
  %v2446 = vadd.f32 0.0, %v2445
  %v2447 = vpop.f32.mrf.mxu0
  %2448 = vmatprep.mubr.bf16.mxu0 0
  %2449 = vmatmul.mubr.bf16.gmra.mxu0 %v705
  %v2450 = vpop.f32.mrf.mxu0
  %v2451 = vadd.f32 0.0, %v2450
  %v2452 = vpop.f32.mrf.mxu0
  %v2453 = vpop.f32.mrf.mxu0
  %v2454 = vadd.f32 0.0, %v2453
  %v2455 = vpop.f32.mrf.mxu0
  %2456 = vmatprep.mubr.bf16.mxu0 0
  %2457 = vmatmul.mubr.bf16.gmra.mxu0 %v706
  %v2458 = vpop.f32.mrf.mxu0
  %v2459 = vadd.f32 0.0, %v2458
  %v2460 = vpop.f32.mrf.mxu0
  %v2461 = vpop.f32.mrf.mxu0
  %v2462 = vadd.f32 0.0, %v2461
  %v2463 = vpop.f32.mrf.mxu0
  %2464 = vmatprep.mubr.bf16.mxu0 0
  %2465 = vmatmul.mubr.bf16.gmra.mxu0 %v707
  %v2466 = vpop.f32.mrf.mxu0
  %v2467 = vadd.f32 0.0, %v2466
  %v2468 = vpop.f32.mrf.mxu0
  %v2469 = vpop.f32.mrf.mxu0
  %v2470 = vadd.f32 0.0, %v2469
  %v2471 = vpop.f32.mrf.mxu0
  %2472 = vmatprep.mubr.bf16.mxu0 0
  %2473 = vmatmul.mubr.bf16.gmra.mxu0 %v2314
  %v2474 = vpop.f32.mrf.mxu0
  %v2475 = vadd.f32 0.0, %v2474
  %v2476 = vpop.f32.mrf.mxu0
  %v2477 = vpop.f32.mrf.mxu0
  %v2478 = vadd.f32 0.0, %v2477
  %v2479 = vpop.f32.mrf.mxu0
  %2480 = vmatprep.mubr.bf16.mxu0 0
  %2481 = vmatmul.mubr.bf16.gmra.mxu0 %v2315
  %v2482 = vpop.f32.mrf.mxu0
  %v2483 = vadd.f32 0.0, %v2482
  %v2484 = vpop.f32.mrf.mxu0
  %v2485 = vpop.f32.mrf.mxu0
  %v2486 = vadd.f32 0.0, %v2485
  %v2487 = vpop.f32.mrf.mxu0
  %2488 = vmatprep.mubr.bf16.mxu0 0
  %2489 = vmatmul.mubr.bf16.gmra.mxu0 %v2316
  %v2490 = vpop.f32.mrf.mxu0
  %v2491 = vadd.f32 0.0, %v2490
  %v2492 = vpop.f32.mrf.mxu0
  %v2493 = vpop.f32.mrf.mxu0
  %v2494 = vadd.f32 0.0, %v2493
  %v2495 = vpop.f32.mrf.mxu0
  %2496 = vmatprep.mubr.bf16.mxu0 0
  %2497 = vmatmul.mubr.bf16.gmra.mxu0 %v2317
  %v2498 = vpop.f32.mrf.mxu0
  %v2499 = vadd.f32 0.0, %v2498
  %v2500 = vpop.f32.mrf.mxu0
  %v2501 = vpop.f32.mrf.mxu0
  %v2502 = vadd.f32 0.0, %v2501
  %v2503 = vpop.f32.mrf.mxu0
  %2504 = vmatprep.mubr.bf16.mxu0 0
  %2505 = vmatmul.mubr.bf16.gmra.mxu0 %v2318
  %v2506 = vpop.f32.mrf.mxu0
  %v2507 = vadd.f32 0.0, %v2506
  %v2508 = vpop.f32.mrf.mxu0
  %v2509 = vpop.f32.mrf.mxu0
  %v2510 = vadd.f32 0.0, %v2509
  %v2511 = vpop.f32.mrf.mxu0
  %2512 = vmatprep.mubr.bf16.mxu0 0
  %2513 = vmatmul.mubr.bf16.gmra.mxu0 %v2319
  %v2514 = vpop.f32.mrf.mxu0
  %v2515 = vadd.f32 0.0, %v2514
  %v2516 = vpop.f32.mrf.mxu0
  %v2517 = vpop.f32.mrf.mxu0
  %v2518 = vpop.f32.mrf.mxu0
  %2519 = vdwg.mxu0
  %v2520 = vadd.f32 %v2284, %v2419
  %v2521 = vadd.f32 %v2285, %v2422
  %v2522 = vadd.f32 %v2286, %v2427
  %v2523 = vadd.f32 %v2287, %v2430
  %v2524 = vadd.f32 %v2288, %v2435
  %v2525 = vadd.f32 %v2289, %v2438
  %v2526 = vadd.f32 %v2290, %v2443
  %v2527 = vadd.f32 %v2291, %v2446
  %v2528 = vadd.f32 %v2292, %v2451
  %v2529 = vadd.f32 %v2293, %v2454
  %v2530 = vadd.f32 %v2294, %v2459
  %v2531 = vadd.f32 %v2295, %v2462
  %v2532 = vadd.f32 %v2296, %v2467
  %v2533 = vadd.f32 %v2297, %v2470
  %v2534 = vadd.f32 %v2298, %v2475
  %v2535 = vadd.f32 %v2299, %v2478
  %v2536 = vadd.f32 %v2300, %v2483
  %v2537 = vadd.f32 %v2301, %v2486
  %v2538 = vadd.f32 %v2302, %v2491
  %v2539 = vadd.f32 %v2303, %v2494
  %v2540 = vadd.f32 %v2304, %v2499
  %v2541 = vadd.f32 %v2305, %v2502
  %v2542 = vadd.f32 %v2306, %v2507
  %v2543 = vadd.f32 %v2307, %v2510
  %v2544 = vadd.f32 %v2308, %v2515
  %v2545 = vld [vmem:[#allocation2 + $0x160] sm:$0xff]
  %v2546 = vld [vmem:[#allocation2 + $0x168] sm:$0xff]
  %v2547 = vld [vmem:[#allocation2 + $0x170] sm:$0xff]
  %v2548 = vld [vmem:[#allocation2 + $0x178] sm:$0xff]
  %v2549 = vld [vmem:[#allocation2 + $0x180] sm:$0xff]
  %v2550 = vpack.c.bf16 %v1830, %v1117
  %v2551 = vpack.c.bf16 %v1832, %v1831
  %v2552 = vpack.c.bf16 %v1834, %v1833
  %v2553 = vpack.c.bf16 %v2546, %v2545
  %v2554 = vpack.c.bf16 %v2548, %v2547
  %v2555 = vpack.c.bf16 %v2549, %v2549
  %v2556 = vld [vmem:[%s3 + $0x200] sm:$0xf]
  %v2557 = vld [vmem:[%s3 + $0x204] sm:$0xf]
  %v2558 = vld [vmem:[%s3 + $0x208] sm:$0xf]
  %v2559 = vld [vmem:[%s3 + $0x20c] sm:$0xf]
  %v2560 = vld [vmem:[%s3 + $0x210] sm:$0xf]
  %v2561 = vld [vmem:[%s3 + $0x214] sm:$0xf]
  %v2562 = vld [vmem:[%s3 + $0x218] sm:$0xf]
  %v2563 = vld [vmem:[%s3 + $0x21c] sm:$0xf]
  %v2564 = vld [vmem:[%s3 + $0x220] sm:$0xf]
  %v2565 = vld [vmem:[%s3 + $0x224] sm:$0xf]
  %v2566 = vld [vmem:[%s3 + $0x228] sm:$0xf]
  %v2567 = vld [vmem:[%s3 + $0x22c] sm:$0xf]
  %v2568 = vld [vmem:[%s3 + $0x230] sm:$0xf]
  %v2569 = vld [vmem:[%s3 + $0x234] sm:$0xf]
  %v2570 = vld [vmem:[%s3 + $0x238] sm:$0xf]
  %v2571 = vld [vmem:[%s3 + $0x23c] sm:$0xf]
  %v2588 = vunpack.c.l.b16 %v2556
  %v2589 = vunpack.c.l.b16 %v2557
  %v2590 = vunpack.c.l.b16 %v2558
  %v2591 = vunpack.c.l.b16 %v2559
  %v2592 = vunpack.c.l.b16 %v2560
  %v2593 = vunpack.c.l.b16 %v2561
  %v2594 = vunpack.c.l.b16 %v2562
  %v2595 = vunpack.c.l.b16 %v2563
  %v2596 = vunpack.c.l.b16 %v2564
  %v2597 = vunpack.c.l.b16 %v2565
  %v2598 = vunpack.c.l.b16 %v2566
  %v2599 = vunpack.c.l.b16 %v2567
  %v2600 = vunpack.c.l.b16 %v2568
  %v2601 = vunpack.c.l.b16 %v2569
  %v2602 = vunpack.c.l.b16 %v2570
  %v2603 = vunpack.c.l.b16 %v2571
  %v2604 = vpack.c.b16 %v2589, %v2588
  %v2605 = vpack.c.b16 %v2591, %v2590
  %v2606 = vpack.c.b16 %v2593, %v2592
  %v2607 = vpack.c.b16 %v2595, %v2594
  %v2608 = vpack.c.b16 %v2597, %v2596
  %v2609 = vpack.c.b16 %v2599, %v2598
  %v2610 = vpack.c.b16 %v2601, %v2600
  %v2611 = vpack.c.b16 %v2603, %v2602
  %2620 = vmatprep.subr.bf16.mxu0 0
  %2621 = vmatpush1.bf16.msra.mxu0 %v2611
  %2622 = vmatprep.subr.bf16.mxu0 0
  %2623 = vmatpush1.bf16.msra.mxu0 %v2610
  %2624 = vmatprep.subr.bf16.mxu0 0
  %2625 = vmatpush1.bf16.msra.mxu0 %v2609
  %2626 = vmatprep.subr.bf16.mxu0 0
  %2627 = vmatpush1.bf16.msra.mxu0 %v2608
  %2628 = vmatprep.subr.bf16.mxu0 0
  %2629 = vmatpush1.bf16.msra.mxu0 %v2607
  %2630 = vmatprep.subr.bf16.mxu0 0
  %2631 = vmatpush1.bf16.msra.mxu0 %v2606
  %2632 = vmatprep.subr.bf16.mxu0 0
  %2633 = vmatpush1.bf16.msra.mxu0 %v2605
  %2634 = vmatprep.subr.bf16.mxu0 0
  %2635 = vmatpush1.bf16.msra.mxu0 %v2604
  %2636 = vmatprep.subr.bf16.mxu0 0
  %2637 = vmatpush2.bf16.msra.mxu0 0
  %2638 = vmatprep.subr.bf16.mxu0 0
  %2639 = vmatpush2.bf16.msra.mxu0 0
  %2640 = vmatprep.subr.bf16.mxu0 0
  %2641 = vmatpush2.bf16.msra.mxu0 0
  %2642 = vmatprep.subr.bf16.mxu0 0
  %2643 = vmatpush2.bf16.msra.mxu0 0
  %2644 = vmatprep.subr.bf16.mxu0 0
  %2645 = vmatpush2.bf16.msra.mxu0 0
  %2646 = vmatprep.subr.bf16.mxu0 0
  %2647 = vmatpush2.bf16.msra.mxu0 0
  %2648 = vmatprep.subr.bf16.mxu0 0
  %2649 = vmatpush2.bf16.msra.mxu0 0
  %2650 = vmatprep.subr.bf16.mxu0 0
  %2651 = vmatpush2.bf16.msra.mxu0 0
  %2652 = vmatprep.mubr.bf16.mxu0 0
  %2653 = vmatmul.mubr.bf16.gmra.mxu0 %v1123
  %v2654 = vpop.f32.mrf.mxu0
  %v2655 = vadd.f32 0.0, %v2654
  %v2656 = vpop.f32.mrf.mxu0
  %v2657 = vpop.f32.mrf.mxu0
  %v2658 = vadd.f32 0.0, %v2657
  %v2659 = vpop.f32.mrf.mxu0
  %2660 = vmatprep.mubr.bf16.mxu0 0
  %2661 = vmatmul.mubr.bf16.gmra.mxu0 %v1124
  %v2662 = vpop.f32.mrf.mxu0
  %v2663 = vadd.f32 0.0, %v2662
  %v2664 = vpop.f32.mrf.mxu0
  %v2665 = vpop.f32.mrf.mxu0
  %v2666 = vadd.f32 0.0, %v2665
  %v2667 = vpop.f32.mrf.mxu0
  %2668 = vmatprep.mubr.bf16.mxu0 0
  %2669 = vmatmul.mubr.bf16.gmra.mxu0 %v1125
  %v2670 = vpop.f32.mrf.mxu0
  %v2671 = vadd.f32 0.0, %v2670
  %v2672 = vpop.f32.mrf.mxu0
  %v2673 = vpop.f32.mrf.mxu0
  %v2674 = vadd.f32 0.0, %v2673
  %v2675 = vpop.f32.mrf.mxu0
  %2676 = vmatprep.mubr.bf16.mxu0 0
  %2677 = vmatmul.mubr.bf16.gmra.mxu0 %v1126
  %v2678 = vpop.f32.mrf.mxu0
  %v2679 = vadd.f32 0.0, %v2678
  %v2680 = vpop.f32.mrf.mxu0
  %v2681 = vpop.f32.mrf.mxu0
  %v2682 = vadd.f32 0.0, %v2681
  %v2683 = vpop.f32.mrf.mxu0
  %2684 = vmatprep.mubr.bf16.mxu0 0
  %2685 = vmatmul.mubr.bf16.gmra.mxu0 %v1127
  %v2686 = vpop.f32.mrf.mxu0
  %v2687 = vadd.f32 0.0, %v2686
  %v2688 = vpop.f32.mrf.mxu0
  %v2689 = vpop.f32.mrf.mxu0
  %v2690 = vadd.f32 0.0, %v2689
  %v2691 = vpop.f32.mrf.mxu0
  %2692 = vmatprep.mubr.bf16.mxu0 0
  %2693 = vmatmul.mubr.bf16.gmra.mxu0 %v1128
  %v2694 = vpop.f32.mrf.mxu0
  %v2695 = vadd.f32 0.0, %v2694
  %v2696 = vpop.f32.mrf.mxu0
  %v2697 = vpop.f32.mrf.mxu0
  %v2698 = vadd.f32 0.0, %v2697
  %v2699 = vpop.f32.mrf.mxu0
  %2700 = vmatprep.mubr.bf16.mxu0 0
  %2701 = vmatmul.mubr.bf16.gmra.mxu0 %v1129
  %v2702 = vpop.f32.mrf.mxu0
  %v2703 = vadd.f32 0.0, %v2702
  %v2704 = vpop.f32.mrf.mxu0
  %v2705 = vpop.f32.mrf.mxu0
  %v2706 = vadd.f32 0.0, %v2705
  %v2707 = vpop.f32.mrf.mxu0
  %2708 = vmatprep.mubr.bf16.mxu0 0
  %2709 = vmatmul.mubr.bf16.gmra.mxu0 %v2550
  %v2710 = vpop.f32.mrf.mxu0
  %v2711 = vadd.f32 0.0, %v2710
  %v2712 = vpop.f32.mrf.mxu0
  %v2713 = vpop.f32.mrf.mxu0
  %v2714 = vadd.f32 0.0, %v2713
  %v2715 = vpop.f32.mrf.mxu0
  %2716 = vmatprep.mubr.bf16.mxu0 0
  %2717 = vmatmul.mubr.bf16.gmra.mxu0 %v2551
  %v2718 = vpop.f32.mrf.mxu0
  %v2719 = vadd.f32 0.0, %v2718
  %v2720 = vpop.f32.mrf.mxu0
  %v2721 = vpop.f32.mrf.mxu0
  %v2722 = vadd.f32 0.0, %v2721
  %v2723 = vpop.f32.mrf.mxu0
  %2724 = vmatprep.mubr.bf16.mxu0 0
  %2725 = vmatmul.mubr.bf16.gmra.mxu0 %v2552
  %v2726 = vpop.f32.mrf.mxu0
  %v2727 = vadd.f32 0.0, %v2726
  %v2728 = vpop.f32.mrf.mxu0
  %v2729 = vpop.f32.mrf.mxu0
  %v2730 = vadd.f32 0.0, %v2729
  %v2731 = vpop.f32.mrf.mxu0
  %2732 = vmatprep.mubr.bf16.mxu0 0
  %2733 = vmatmul.mubr.bf16.gmra.mxu0 %v2553
  %v2734 = vpop.f32.mrf.mxu0
  %v2735 = vadd.f32 0.0, %v2734
  %v2736 = vpop.f32.mrf.mxu0
  %v2737 = vpop.f32.mrf.mxu0
  %v2738 = vadd.f32 0.0, %v2737
  %v2739 = vpop.f32.mrf.mxu0
  %2740 = vmatprep.mubr.bf16.mxu0 0
  %2741 = vmatmul.mubr.bf16.gmra.mxu0 %v2554
  %v2742 = vpop.f32.mrf.mxu0
  %v2743 = vadd.f32 0.0, %v2742
  %v2744 = vpop.f32.mrf.mxu0
  %v2745 = vpop.f32.mrf.mxu0
  %v2746 = vadd.f32 0.0, %v2745
  %v2747 = vpop.f32.mrf.mxu0
  %2748 = vmatprep.mubr.bf16.mxu0 0
  %2749 = vmatmul.mubr.bf16.gmra.mxu0 %v2555
  %v2750 = vpop.f32.mrf.mxu0
  %v2751 = vadd.f32 0.0, %v2750
  %v2752 = vpop.f32.mrf.mxu0
  %v2753 = vpop.f32.mrf.mxu0
  %v2754 = vpop.f32.mrf.mxu0
  %2755 = vdwg.mxu0
  %v2756 = vadd.f32 %v2520, %v2655
  %v2757 = vadd.f32 %v2521, %v2658
  %v2758 = vadd.f32 %v2522, %v2663
  %v2759 = vadd.f32 %v2523, %v2666
  %v2760 = vadd.f32 %v2524, %v2671
  %v2761 = vadd.f32 %v2525, %v2674
  %v2762 = vadd.f32 %v2526, %v2679
  %v2763 = vadd.f32 %v2527, %v2682
  %v2764 = vadd.f32 %v2528, %v2687
  %v2765 = vadd.f32 %v2529, %v2690
  %v2766 = vadd.f32 %v2530, %v2695
  %v2767 = vadd.f32 %v2531, %v2698
  %v2768 = vadd.f32 %v2532, %v2703
  %v2769 = vadd.f32 %v2533, %v2706
  %v2770 = vadd.f32 %v2534, %v2711
  %v2771 = vadd.f32 %v2535, %v2714
  %v2772 = vadd.f32 %v2536, %v2719
  %v2773 = vadd.f32 %v2537, %v2722
  %v2774 = vadd.f32 %v2538, %v2727
  %v2775 = vadd.f32 %v2539, %v2730
  %v2776 = vadd.f32 %v2540, %v2735
  %v2777 = vadd.f32 %v2541, %v2738
  %v2778 = vadd.f32 %v2542, %v2743
  %v2779 = vadd.f32 %v2543, %v2746
  %v2780 = vadd.f32 %v2544, %v2751
  %v2781 = vld [vmem:[%s4] sm:$0x1]
  %v2783 = vlaneseq
  %v2784 = vshrl.u32 %v2783, 7
  %v2785 = vsub.s32 0, %v2784
  %v2786 = vrot.slane %v2781, %v2785
  %v2788 = vadd.f32 %v2756, %v2786
  %v2789 = vadd.f32 %v2757, %v2786
  %v2790 = vadd.f32 %v2758, %v2786
  %v2791 = vadd.f32 %v2759, %v2786
  %v2792 = vadd.f32 %v2760, %v2786
  %v2793 = vadd.f32 %v2761, %v2786
  %v2794 = vadd.f32 %v2762, %v2786
  %v2795 = vadd.f32 %v2763, %v2786
  %v2796 = vadd.f32 %v2764, %v2786
  %v2797 = vadd.f32 %v2765, %v2786
  %v2798 = vadd.f32 %v2766, %v2786
  %v2799 = vadd.f32 %v2767, %v2786
  %v2800 = vadd.f32 %v2768, %v2786
  %v2801 = vadd.f32 %v2769, %v2786
  %v2802 = vadd.f32 %v2770, %v2786
  %v2803 = vadd.f32 %v2771, %v2786
  %v2804 = vadd.f32 %v2772, %v2786
  %v2805 = vadd.f32 %v2773, %v2786
  %v2806 = vadd.f32 %v2774, %v2786
  %v2807 = vadd.f32 %v2775, %v2786
  %v2808 = vadd.f32 %v2776, %v2786
  %v2809 = vadd.f32 %v2777, %v2786
  %v2810 = vadd.f32 %v2778, %v2786
  %v2811 = vadd.f32 %v2779, %v2786
  %v2812 = vadd.f32 %v2780, %v2786
  %v2813 = vmax.f32 %v2788, 0.0
  %v2814 = vmax.f32 %v2789, 0.0
  %v2815 = vmax.f32 %v2790, 0.0
  %v2816 = vmax.f32 %v2791, 0.0
  %v2817 = vmax.f32 %v2792, 0.0
  %v2818 = vmax.f32 %v2793, 0.0
  %v2819 = vmax.f32 %v2794, 0.0
  %v2820 = vmax.f32 %v2795, 0.0
  %v2821 = vmax.f32 %v2796, 0.0
  %v2822 = vmax.f32 %v2797, 0.0
  %v2823 = vmax.f32 %v2798, 0.0
  %v2824 = vmax.f32 %v2799, 0.0
  %v2825 = vmax.f32 %v2800, 0.0
  %v2826 = vmax.f32 %v2801, 0.0
  %v2827 = vmax.f32 %v2802, 0.0
  %v2828 = vmax.f32 %v2803, 0.0
  %v2829 = vmax.f32 %v2804, 0.0
  %v2830 = vmax.f32 %v2805, 0.0
  %v2831 = vmax.f32 %v2806, 0.0
  %v2832 = vmax.f32 %v2807, 0.0
  %v2833 = vmax.f32 %v2808, 0.0
  %v2834 = vmax.f32 %v2809, 0.0
  %v2835 = vmax.f32 %v2810, 0.0
  %v2836 = vmax.f32 %v2811, 0.0
  %v2837 = vmax.f32 %v2812, 0.0
  %2839 = vrot.lane.b32.xlu0 %v2814, 16
  %v2840 = vpop.permute.xlu0 %2839
  %2843 = vrot.lane.b32.xlu0 %v2815, 32
  %v2844 = vpop.permute.xlu0 %2843
  %2847 = vrot.lane.b32.xlu0 %v2816, 48
  %v2848 = vpop.permute.xlu0 %2847
  %2851 = vrot.lane.b32.xlu0 %v2817, 64
  %v2852 = vpop.permute.xlu0 %2851
  %2855 = vrot.lane.b32.xlu0 %v2818, 80
  %v2856 = vpop.permute.xlu0 %2855
  %2859 = vrot.lane.b32.xlu0 %v2819, 96
  %v2860 = vpop.permute.xlu0 %2859
  %2863 = vrot.lane.b32.xlu0 %v2820, 112
  %v2864 = vpop.permute.xlu0 %2863
  %2867 = vrot.lane.b32.xlu0 %v2822, 16
  %v2868 = vpop.permute.xlu0 %2867
  %2871 = vrot.lane.b32.xlu0 %v2823, 32
  %v2872 = vpop.permute.xlu0 %2871
  %2875 = vrot.lane.b32.xlu0 %v2824, 48
  %v2876 = vpop.permute.xlu0 %2875
  %2879 = vrot.lane.b32.xlu0 %v2825, 64
  %v2880 = vpop.permute.xlu0 %2879
  %2883 = vrot.lane.b32.xlu0 %v2826, 80
  %v2884 = vpop.permute.xlu0 %2883
  %2887 = vrot.lane.b32.xlu0 %v2827, 96
  %v2888 = vpop.permute.xlu0 %2887
  %2891 = vrot.lane.b32.xlu0 %v2828, 112
  %v2892 = vpop.permute.xlu0 %2891
  %vm2894 = vcmask 130048
  %v2895 = vsel %vm2894, %v2813, %v2840
  %vm2896 = vcmask 261120
  %v2897 = vsel %vm2896, %v2895, %v2844
  %vm2898 = vcmask 392192
  %v2899 = vsel %vm2898, %v2897, %v2848
  %vm2900 = vcmask 523264
  %v2901 = vsel %vm2900, %v2899, %v2852
  %vm2902 = vcmask 654336
  %v2903 = vsel %vm2902, %v2901, %v2856
  %vm2904 = vcmask 785408
  %v2905 = vsel %vm2904, %v2903, %v2860
  %vm2906 = vcmask 916480
  %v2907 = vsel %vm2906, %v2905, %v2864
  %v2908 = vsel %vm2894, %v2821, %v2868
  %v2909 = vsel %vm2896, %v2908, %v2872
  %v2910 = vsel %vm2898, %v2909, %v2876
  %v2911 = vsel %vm2900, %v2910, %v2880
  %v2912 = vsel %vm2902, %v2911, %v2884
  %v2913 = vsel %vm2904, %v2912, %v2888
  %v2914 = vsel %vm2906, %v2913, %v2892
  %2916 = vrot.lane.b32.xlu0 %v2830, 16
  %v2917 = vpop.permute.xlu0 %2916
  %2920 = vrot.lane.b32.xlu0 %v2831, 32
  %v2921 = vpop.permute.xlu0 %2920
  %2924 = vrot.lane.b32.xlu0 %v2832, 48
  %v2925 = vpop.permute.xlu0 %2924
  %2928 = vrot.lane.b32.xlu0 %v2833, 64
  %v2929 = vpop.permute.xlu0 %2928
  %2932 = vrot.lane.b32.xlu0 %v2834, 80
  %v2933 = vpop.permute.xlu0 %2932
  %2936 = vrot.lane.b32.xlu0 %v2835, 96
  %v2937 = vpop.permute.xlu0 %2936
  %2940 = vrot.lane.b32.xlu0 %v2836, 112
  %v2941 = vpop.permute.xlu0 %2940
  %v2943 = vsel %vm2894, %v2829, %v2917
  %v2944 = vsel %vm2896, %v2943, %v2921
  %v2945 = vsel %vm2898, %v2944, %v2925
  %v2946 = vsel %vm2900, %v2945, %v2929
  %v2947 = vsel %vm2902, %v2946, %v2933
  %v2948 = vsel %vm2904, %v2947, %v2937
  %v2949 = vsel %vm2906, %v2948, %v2941
  %v2950 = vsel %vm2894, %v2837, 0.0
  %v2951 = vpack.c.bf16 %v2907, %v2907
  %v2952 = vpack.c.bf16 %v2914, %v2914
  %v2953 = vpack.c.bf16 %v2949, %v2949
  %v2954 = vpack.c.bf16 %v2950, %v2950
  %v2955 = vld [vmem:[%s5] sm:$0xf]
  %v2956 = vld [vmem:[%s5 + $0x4] sm:$0xf]
  %v2957 = vld [vmem:[%s5 + $0x8] sm:$0xf]
  %v2958 = vld [vmem:[%s5 + $0xc] sm:$0xf]
  %v2959 = vld [vmem:[%s5 + $0x10] sm:$0xf]
  %v2960 = vld [vmem:[%s5 + $0x14] sm:$0xf]
  %v2961 = vld [vmem:[%s5 + $0x18] sm:$0xf]
  %v2962 = vld [vmem:[%s5 + $0x1c] sm:$0xf]
  %v2963 = vld [vmem:[%s5 + $0x20] sm:$0xf]
  %v2964 = vld [vmem:[%s5 + $0x24] sm:$0xf]
  %v2965 = vld [vmem:[%s5 + $0x28] sm:$0xf]
  %v2966 = vld [vmem:[%s5 + $0x2c] sm:$0xf]
  %v2967 = vld [vmem:[%s5 + $0x30] sm:$0xf]
  %v2968 = vld [vmem:[%s5 + $0x34] sm:$0xf]
  %v2969 = vld [vmem:[%s5 + $0x38] sm:$0xf]
  %v2970 = vld [vmem:[%s5 + $0x3c] sm:$0xf]
  %v2971 = vld [vmem:[%s5 + $0x40] sm:$0xf]
  %v2972 = vld [vmem:[%s5 + $0x44] sm:$0xf]
  %v2973 = vld [vmem:[%s5 + $0x48] sm:$0xf]
  %v2974 = vld [vmem:[%s5 + $0x4c] sm:$0xf]
  %v2975 = vld [vmem:[%s5 + $0x50] sm:$0xf]
  %v2976 = vld [vmem:[%s5 + $0x54] sm:$0xf]
  %v2977 = vld [vmem:[%s5 + $0x58] sm:$0xf]
  %v2978 = vld [vmem:[%s5 + $0x5c] sm:$0xf]
  %v2979 = vld [vmem:[%s5 + $0x60] sm:$0xf]
  %v2980 = vld [vmem:[%s5 + $0x64] sm:$0xf]
  %v2981 = vld [vmem:[%s5 + $0x68] sm:$0xf]
  %v2982 = vld [vmem:[%s5 + $0x6c] sm:$0xf]
  %v2983 = vld [vmem:[%s5 + $0x70] sm:$0xf]
  %v2984 = vld [vmem:[%s5 + $0x74] sm:$0xf]
  %v2985 = vld [vmem:[%s5 + $0x78] sm:$0xf]
  %v2986 = vld [vmem:[%s5 + $0x7c] sm:$0xf]
  %v2987 = vld [vmem:[%s5 + $0x80] sm:$0xf]
  %v2988 = vld [vmem:[%s5 + $0x84] sm:$0xf]
  %v2989 = vld [vmem:[%s5 + $0x88] sm:$0xf]
  %v2990 = vld [vmem:[%s5 + $0x8c] sm:$0xf]
  %v2991 = vld [vmem:[%s5 + $0x90] sm:$0xf]
  %v2992 = vld [vmem:[%s5 + $0x94] sm:$0xf]
  %v2993 = vld [vmem:[%s5 + $0x98] sm:$0xf]
  %v2994 = vld [vmem:[%s5 + $0x9c] sm:$0xf]
  %v2995 = vld [vmem:[%s5 + $0xa0] sm:$0xf]
  %v2996 = vld [vmem:[%s5 + $0xa4] sm:$0xf]
  %v2997 = vld [vmem:[%s5 + $0xa8] sm:$0xf]
  %v2998 = vld [vmem:[%s5 + $0xac] sm:$0xf]
  %v2999 = vld [vmem:[%s5 + $0xb0] sm:$0xf]
  %v3000 = vld [vmem:[%s5 + $0xb4] sm:$0xf]
  %v3001 = vld [vmem:[%s5 + $0xb8] sm:$0xf]
  %v3002 = vld [vmem:[%s5 + $0xbc] sm:$0xf]
  %v3003 = vld [vmem:[%s5 + $0xc0] sm:$0xf]
  %v3004 = vld [vmem:[%s5 + $0xc4] sm:$0xf]
  %v3005 = vld [vmem:[%s5 + $0xc8] sm:$0xf]
  %v3006 = vld [vmem:[%s5 + $0xcc] sm:$0xf]
  %v3007 = vld [vmem:[%s5 + $0xd0] sm:$0xf]
  %v3008 = vld [vmem:[%s5 + $0xd4] sm:$0xf]
  %v3009 = vld [vmem:[%s5 + $0xd8] sm:$0xf]
  %v3010 = vld [vmem:[%s5 + $0xdc] sm:$0xf]
  %v3011 = vld [vmem:[%s5 + $0xe0] sm:$0xf]
  %v3012 = vld [vmem:[%s5 + $0xe4] sm:$0xf]
  %v3013 = vld [vmem:[%s5 + $0xe8] sm:$0xf]
  %v3014 = vld [vmem:[%s5 + $0xec] sm:$0xf]
  %v3015 = vld [vmem:[%s5 + $0xf0] sm:$0xf]
  %v3016 = vld [vmem:[%s5 + $0xf4] sm:$0xf]
  %v3017 = vld [vmem:[%s5 + $0xf8] sm:$0xf]
  %v3018 = vld [vmem:[%s5 + $0xfc] sm:$0xf]
  %v3019 = vld [vmem:[%s6] sm:$0x1]
  %v3021 = vlaneseq
  %v3022 = vshrl.u32 %v3021, 7
  %v3023 = vsub.s32 0, %v3022
  %v3024 = vrot.slane %v3019, %v3023
  %v3090 = vunpack.c.l.b16 %v2955
  %v3091 = vunpack.c.l.b16 %v2956
  %v3092 = vunpack.c.l.b16 %v2957
  %v3093 = vunpack.c.l.b16 %v2958
  %v3094 = vunpack.c.l.b16 %v2959
  %v3095 = vunpack.c.l.b16 %v2960
  %v3096 = vunpack.c.l.b16 %v2961
  %v3097 = vunpack.c.l.b16 %v2962
  %v3098 = vunpack.c.l.b16 %v2963
  %v3099 = vunpack.c.l.b16 %v2964
  %v3100 = vunpack.c.l.b16 %v2965
  %v3101 = vunpack.c.l.b16 %v2966
  %v3102 = vunpack.c.l.b16 %v2967
  %v3103 = vunpack.c.l.b16 %v2968
  %v3104 = vunpack.c.l.b16 %v2969
  %v3105 = vunpack.c.l.b16 %v2970
  %v3106 = vunpack.c.l.b16 %v2971
  %v3107 = vunpack.c.l.b16 %v2972
  %v3108 = vunpack.c.l.b16 %v2973
  %v3109 = vunpack.c.l.b16 %v2974
  %v3110 = vunpack.c.l.b16 %v2975
  %v3111 = vunpack.c.l.b16 %v2976
  %v3112 = vunpack.c.l.b16 %v2977
  %v3113 = vunpack.c.l.b16 %v2978
  %v3114 = vunpack.c.l.b16 %v2979
  %v3115 = vunpack.c.l.b16 %v2980
  %v3116 = vunpack.c.l.b16 %v2981
  %v3117 = vunpack.c.l.b16 %v2982
  %v3118 = vunpack.c.l.b16 %v2983
  %v3119 = vunpack.c.l.b16 %v2984
  %v3120 = vunpack.c.l.b16 %v2985
  %v3121 = vunpack.c.l.b16 %v2986
  %v3122 = vunpack.c.l.b16 %v2987
  %v3123 = vunpack.c.l.b16 %v2988
  %v3124 = vunpack.c.l.b16 %v2989
  %v3125 = vunpack.c.l.b16 %v2990
  %v3126 = vunpack.c.l.b16 %v2991
  %v3127 = vunpack.c.l.b16 %v2992
  %v3128 = vunpack.c.l.b16 %v2993
  %v3129 = vunpack.c.l.b16 %v2994
  %v3130 = vunpack.c.l.b16 %v2995
  %v3131 = vunpack.c.l.b16 %v2996
  %v3132 = vunpack.c.l.b16 %v2997
  %v3133 = vunpack.c.l.b16 %v2998
  %v3134 = vunpack.c.l.b16 %v2999
  %v3135 = vunpack.c.l.b16 %v3000
  %v3136 = vunpack.c.l.b16 %v3001
  %v3137 = vunpack.c.l.b16 %v3002
  %v3138 = vunpack.c.l.b16 %v3003
  %v3139 = vunpack.c.l.b16 %v3004
  %v3140 = vunpack.c.l.b16 %v3005
  %v3141 = vunpack.c.l.b16 %v3006
  %v3142 = vunpack.c.l.b16 %v3007
  %v3143 = vunpack.c.l.b16 %v3008
  %v3144 = vunpack.c.l.b16 %v3009
  %v3145 = vunpack.c.l.b16 %v3010
  %v3146 = vunpack.c.l.b16 %v3011
  %v3147 = vunpack.c.l.b16 %v3012
  %v3148 = vunpack.c.l.b16 %v3013
  %v3149 = vunpack.c.l.b16 %v3014
  %v3150 = vunpack.c.l.b16 %v3015
  %v3151 = vunpack.c.l.b16 %v3016
  %v3152 = vunpack.c.l.b16 %v3017
  %v3153 = vunpack.c.l.b16 %v3018
  %v3154 = vpack.c.b16 %v3091, %v3090
  %v3155 = vpack.c.b16 %v3093, %v3092
  %v3156 = vpack.c.b16 %v3095, %v3094
  %v3157 = vpack.c.b16 %v3097, %v3096
  %v3158 = vpack.c.b16 %v3099, %v3098
  %v3159 = vpack.c.b16 %v3101, %v3100
  %v3160 = vpack.c.b16 %v3103, %v3102
  %v3161 = vpack.c.b16 %v3105, %v3104
  %v3162 = vpack.c.b16 %v3107, %v3106
  %v3163 = vpack.c.b16 %v3109, %v3108
  %v3164 = vpack.c.b16 %v3111, %v3110
  %v3165 = vpack.c.b16 %v3113, %v3112
  %v3166 = vpack.c.b16 %v3115, %v3114
  %v3167 = vpack.c.b16 %v3117, %v3116
  %v3168 = vpack.c.b16 %v3119, %v3118
  %v3169 = vpack.c.b16 %v3121, %v3120
  %v3170 = vpack.c.b16 %v3123, %v3122
  %v3171 = vpack.c.b16 %v3125, %v3124
  %v3172 = vpack.c.b16 %v3127, %v3126
  %v3173 = vpack.c.b16 %v3129, %v3128
  %v3174 = vpack.c.b16 %v3131, %v3130
  %v3175 = vpack.c.b16 %v3133, %v3132
  %v3176 = vpack.c.b16 %v3135, %v3134
  %v3177 = vpack.c.b16 %v3137, %v3136
  %v3178 = vpack.c.b16 %v3139, %v3138
  %v3179 = vpack.c.b16 %v3141, %v3140
  %v3180 = vpack.c.b16 %v3143, %v3142
  %v3181 = vpack.c.b16 %v3145, %v3144
  %v3182 = vpack.c.b16 %v3147, %v3146
  %v3183 = vpack.c.b16 %v3149, %v3148
  %v3184 = vpack.c.b16 %v3151, %v3150
  %v3185 = vpack.c.b16 %v3153, %v3152
  %3218 = vmatprep.subr.bf16.mxu0 0
  %3219 = vmatpush1.bf16.msra.mxu0 %v3161
  %3220 = vmatprep.subr.bf16.mxu0 0
  %3221 = vmatpush1.bf16.msra.mxu0 %v3160
  %3222 = vmatprep.subr.bf16.mxu0 0
  %3223 = vmatpush1.bf16.msra.mxu0 %v3159
  %3224 = vmatprep.subr.bf16.mxu0 0
  %3225 = vmatpush1.bf16.msra.mxu0 %v3158
  %3226 = vmatprep.subr.bf16.mxu0 0
  %3227 = vmatpush1.bf16.msra.mxu0 %v3157
  %3228 = vmatprep.subr.bf16.mxu0 0
  %3229 = vmatpush1.bf16.msra.mxu0 %v3156
  %3230 = vmatprep.subr.bf16.mxu0 0
  %3231 = vmatpush1.bf16.msra.mxu0 %v3155
  %3232 = vmatprep.subr.bf16.mxu0 0
  %3233 = vmatpush1.bf16.msra.mxu0 %v3154
  %3234 = vmatprep.subr.bf16.mxu0 0
  %3235 = vmatpush2.bf16.msra.mxu0 %v3169
  %3236 = vmatprep.subr.bf16.mxu0 0
  %3237 = vmatpush2.bf16.msra.mxu0 %v3168
  %3238 = vmatprep.subr.bf16.mxu0 0
  %3239 = vmatpush2.bf16.msra.mxu0 %v3167
  %3240 = vmatprep.subr.bf16.mxu0 0
  %3241 = vmatpush2.bf16.msra.mxu0 %v3166
  %3242 = vmatprep.subr.bf16.mxu0 0
  %3243 = vmatpush2.bf16.msra.mxu0 %v3165
  %3244 = vmatprep.subr.bf16.mxu0 0
  %3245 = vmatpush2.bf16.msra.mxu0 %v3164
  %3246 = vmatprep.subr.bf16.mxu0 0
  %3247 = vmatpush2.bf16.msra.mxu0 %v3163
  %3248 = vmatprep.subr.bf16.mxu0 0
  %3249 = vmatpush2.bf16.msra.mxu0 %v3162
  %3250 = vmatprep.mubr.bf16.mxu0 %v2952
  %3251 = vmatmul.mubr.bf16.gmra.mxu0 %v2951
  %v3252 = vpop.f32.mrf.mxu0
  %v3253 = vadd.f32 %v3024, %v3252
  %v3254 = vpop.f32.mrf.mxu0
  %v3255 = vpop.f32.mrf.mxu0
  %v3256 = vpop.f32.mrf.mxu0
  %3257 = vdwg.mxu0
  %3258 = vmatprep.subr.bf16.mxu0 0
  %3259 = vmatpush1.bf16.msra.mxu0 %v3177
  %3260 = vmatprep.subr.bf16.mxu0 0
  %3261 = vmatpush1.bf16.msra.mxu0 %v3176
  %3262 = vmatprep.subr.bf16.mxu0 0
  %3263 = vmatpush1.bf16.msra.mxu0 %v3175
  %3264 = vmatprep.subr.bf16.mxu0 0
  %3265 = vmatpush1.bf16.msra.mxu0 %v3174
  %3266 = vmatprep.subr.bf16.mxu0 0
  %3267 = vmatpush1.bf16.msra.mxu0 %v3173
  %3268 = vmatprep.subr.bf16.mxu0 0
  %3269 = vmatpush1.bf16.msra.mxu0 %v3172
  %3270 = vmatprep.subr.bf16.mxu0 0
  %3271 = vmatpush1.bf16.msra.mxu0 %v3171
  %3272 = vmatprep.subr.bf16.mxu0 0
  %3273 = vmatpush1.bf16.msra.mxu0 %v3170
  %3274 = vmatprep.subr.bf16.mxu0 0
  %3275 = vmatpush2.bf16.msra.mxu0 %v3185
  %3276 = vmatprep.subr.bf16.mxu0 0
  %3277 = vmatpush2.bf16.msra.mxu0 %v3184
  %3278 = vmatprep.subr.bf16.mxu0 0
  %3279 = vmatpush2.bf16.msra.mxu0 %v3183
  %3280 = vmatprep.subr.bf16.mxu0 0
  %3281 = vmatpush2.bf16.msra.mxu0 %v3182
  %3282 = vmatprep.subr.bf16.mxu0 0
  %3283 = vmatpush2.bf16.msra.mxu0 %v3181
  %3284 = vmatprep.subr.bf16.mxu0 0
  %3285 = vmatpush2.bf16.msra.mxu0 %v3180
  %3286 = vmatprep.subr.bf16.mxu0 0
  %3287 = vmatpush2.bf16.msra.mxu0 %v3179
  %3288 = vmatprep.subr.bf16.mxu0 0
  %3289 = vmatpush2.bf16.msra.mxu0 %v3178
  %3290 = vmatprep.mubr.bf16.mxu0 %v2954
  %3291 = vmatmul.mubr.bf16.gmra.mxu0 %v2953
  %v3292 = vpop.f32.mrf.mxu0
  %v3293 = vadd.f32 %v3253, %v3292
  %v3294 = vpop.f32.mrf.mxu0
  %v3295 = vpop.f32.mrf.mxu0
  %v3296 = vpop.f32.mrf.mxu0
  %3297 = vdwg.mxu0
  %v3298 = vmax.f32 %v3293, 0.0
  %v3299 = vpack.c.bf16 %v3298, %v3298
  %v3300 = vld [vmem:[%s7] sm:$0xf]
  %v3301 = vld [vmem:[%s7 + $0x4] sm:$0xf]
  %v3302 = vld [vmem:[%s7 + $0x8] sm:$0xf]
  %v3303 = vld [vmem:[%s7 + $0xc] sm:$0xf]
  %v3304 = vld [vmem:[%s7 + $0x10] sm:$0xf]
  %v3305 = vld [vmem:[%s7 + $0x14] sm:$0xf]
  %v3306 = vld [vmem:[%s7 + $0x18] sm:$0xf]
  %v3307 = vld [vmem:[%s7 + $0x1c] sm:$0xf]
  %v3308 = vld [vmem:[%s7 + $0x20] sm:$0xf]
  %v3309 = vld [vmem:[%s7 + $0x24] sm:$0xf]
  %v3310 = vld [vmem:[%s7 + $0x28] sm:$0xf]
  %v3311 = vld [vmem:[%s7 + $0x2c] sm:$0xf]
  %v3312 = vld [vmem:[%s7 + $0x30] sm:$0xf]
  %v3313 = vld [vmem:[%s7 + $0x34] sm:$0xf]
  %v3314 = vld [vmem:[%s7 + $0x38] sm:$0xf]
  %v3315 = vld [vmem:[%s7 + $0x3c] sm:$0xf]
  %v3316 = vld [vmem:[%s8] sm:$0x1]
  %v3318 = vlaneseq
  %v3319 = vshrl.u32 %v3318, 7
  %v3320 = vsub.s32 0, %v3319
  %v3321 = vrot.slane %v3316, %v3320
  %v3339 = vunpack.c.l.b16 %v3300
  %v3340 = vunpack.c.l.b16 %v3301
  %v3341 = vunpack.c.l.b16 %v3302
  %v3342 = vunpack.c.l.b16 %v3303
  %v3343 = vunpack.c.l.b16 %v3304
  %v3344 = vunpack.c.l.b16 %v3305
  %v3345 = vunpack.c.l.b16 %v3306
  %v3346 = vunpack.c.l.b16 %v3307
  %v3347 = vunpack.c.l.b16 %v3308
  %v3348 = vunpack.c.l.b16 %v3309
  %v3349 = vunpack.c.l.b16 %v3310
  %v3350 = vunpack.c.l.b16 %v3311
  %v3351 = vunpack.c.l.b16 %v3312
  %v3352 = vunpack.c.l.b16 %v3313
  %v3353 = vunpack.c.l.b16 %v3314
  %v3354 = vunpack.c.l.b16 %v3315
  %v3355 = vpack.c.b16 %v3340, %v3339
  %v3356 = vpack.c.b16 %v3342, %v3341
  %v3357 = vpack.c.b16 %v3344, %v3343
  %v3358 = vpack.c.b16 %v3346, %v3345
  %v3359 = vpack.c.b16 %v3348, %v3347
  %v3360 = vpack.c.b16 %v3350, %v3349
  %v3361 = vpack.c.b16 %v3352, %v3351
  %v3362 = vpack.c.b16 %v3354, %v3353
  %3371 = vmatprep.subr.bf16.mxu0 0
  %3372 = vmatpush1.bf16.msra.mxu0 %v3362
  %3373 = vmatprep.subr.bf16.mxu0 0
  %3374 = vmatpush1.bf16.msra.mxu0 %v3361
  %3375 = vmatprep.subr.bf16.mxu0 0
  %3376 = vmatpush1.bf16.msra.mxu0 %v3360
  %3377 = vmatprep.subr.bf16.mxu0 0
  %3378 = vmatpush1.bf16.msra.mxu0 %v3359
  %3379 = vmatprep.subr.bf16.mxu0 0
  %3380 = vmatpush1.bf16.msra.mxu0 %v3358
  %3381 = vmatprep.subr.bf16.mxu0 0
  %3382 = vmatpush1.bf16.msra.mxu0 %v3357
  %3383 = vmatprep.subr.bf16.mxu0 0
  %3384 = vmatpush1.bf16.msra.mxu0 %v3356
  %3385 = vmatprep.subr.bf16.mxu0 0
  %3386 = vmatpush1.bf16.msra.mxu0 %v3355
  %3387 = vmatprep.subr.bf16.mxu0 0
  %3388 = vmatpush2.bf16.msra.mxu0 0
  %3389 = vmatprep.subr.bf16.mxu0 0
  %3390 = vmatpush2.bf16.msra.mxu0 0
  %3391 = vmatprep.subr.bf16.mxu0 0
  %3392 = vmatpush2.bf16.msra.mxu0 0
  %3393 = vmatprep.subr.bf16.mxu0 0
  %3394 = vmatpush2.bf16.msra.mxu0 0
  %3395 = vmatprep.subr.bf16.mxu0 0
  %3396 = vmatpush2.bf16.msra.mxu0 0
  %3397 = vmatprep.subr.bf16.mxu0 0
  %3398 = vmatpush2.bf16.msra.mxu0 0
  %3399 = vmatprep.subr.bf16.mxu0 0
  %3400 = vmatpush2.bf16.msra.mxu0 0
  %3401 = vmatprep.subr.bf16.mxu0 0
  %3402 = vmatpush2.bf16.msra.mxu0 0
  %3403 = vmatprep.mubr.bf16.mxu0 0
  %3404 = vmatmul.mubr.bf16.gmra.mxu0 %v3299
  %v3405 = vpop.f32.mrf.mxu0
  %v3406 = vadd.f32 %v3321, %v3405
  %v3407 = vpop.f32.mrf.mxu0
  %v3408 = vpop.f32.mrf.mxu0
  %v3409 = vpop.f32.mrf.mxu0
  %3410 = vdwg.mxu0
  %3411 = vst [vmem:[%s9] sm:$0xff] %v3406
  // Predicated region
  $region38: #{cnn_actor_critic_forward.1} parent=0 // pred_check
    _
  $region39: #{cnn_actor_critic_forward.1} parent=0 // pred_check_branch
    %3413 = sbr.rel (0) target = $region41
  $region40: #{cnn_actor_critic_forward.1} parent=0 // pred_region
    _
  $region41: #{cnn_actor_critic_forward.1} parent=0 // pred_fallthru
    _
  // Predicated region
  $region42: #{cnn_actor_critic_forward.1} parent=0 // pred_check
    _
  $region43: #{cnn_actor_critic_forward.1} parent=0 // pred_check_branch
    %3415 = sbr.rel (0) target = $region45
  $region44: #{cnn_actor_critic_forward.1} parent=0 // pred_region
    _
  $region45: #{cnn_actor_critic_forward.1} parent=0 // pred_fallthru
    _

</llo_original>
